<compile_context>
chip_gen: v7x
topology: tpu7x:2x2x1
jax: 0.10.0
libtpu: 0.0.40
codegen_flags: <defaults>
</compile_context>

<pallas_src>
import jax
import jax.numpy as jnp
from jax.experimental import pallas as pl
from jax.experimental.pallas import tpu as pltpu

EPS = 1e-5  # PyTorch BatchNorm2d default eps


def _round_up(x, m):
    return (x + m - 1) // m * m


def _largest_divisor_leq(n, cap):
    best = 1
    for t in range(1, min(n, cap) + 1):
        if n % t == 0:
            best = t
    return best


# ---------------------------------------------------------------------------
# Fused kernel factory
# ---------------------------------------------------------------------------
def _make_fused_kernel(*, stride, th_out, th_in, wo, h_in, w_in,
                       use_res, has_expand):
    """expand -> depthwise 3x3 -> project, one grid step = th_out output rows."""
    s = stride

    def body(x_ref, w1_ref, b1_ref, wdw_ref, b2_ref, w3_ref, b3_ref, o_ref):
        r = pl.program_id(1)
        wpa = x_ref.shape[2]                      # padded (8-aligned) width
        cin = x_ref.shape[3]
        chid = wdw_ref.shape[2]

        row_start = pl.multiple_of(r * (th_out * s), th_out * s)

        # ---- stage 1: 1x1 expand + bias + ReLU6, ONE matmul per tile --------
        xa = x_ref[0, pl.ds(row_start, th_in), :, :]          # (th_in, Wpa, Cin)
        if has_expand:
            h = jnp.dot(xa.reshape(th_in * wpa, cin), w1_ref[...],
                        preferred_element_type=jnp.float32)
            h = jnp.clip(h + b1_ref[...], 0.0, 6.0)
            h = h.reshape(th_in, wpa, chid)
            # Zero the depthwise conv's zero-padding positions: the padding is
            # applied in hidden space, AFTER conv1+BN+ReLU6 (as in PyTorch).
            rows = row_start + jax.lax.broadcasted_iota(
                jnp.int32, (th_in, wpa, 1), 0)
            cols = jax.lax.broadcasted_iota(jnp.int32, (th_in, wpa, 1), 1)
            valid = ((rows >= 1) & (rows <= h_in)
                     & (cols >= 1) & (cols <= w_in))
            hid = jnp.where(valid, h, 0.0)
        else:
            hid = xa                      # expand_ratio == 1: identity expand

        # ---- stage 2: depthwise 3x3 + bias + ReLU6, vectorized over tile ----
        wdw = wdw_ref[...]                                    # (3, 3, Chid)
        # One column slab per kw (contiguous slice for stride 1, de-strided
        # ONCE for stride 2) so all 9 taps below are plain leading-dim slices.
        slabs = [
            jax.lax.slice(hid, (0, kw, 0),
                          (th_in, kw + (wo - 1) * s + 1, chid),
                          (1, s, 1))
            for kw in range(3)]                               # (th_in, Wo, Chid)
        acc = jnp.zeros((th_out, wo, chid), jnp.float32)
        for kh in range(3):
            for kw in range(3):
                tap = jax.lax.slice(slabs[kw], (kh, 0, 0),
                                    (kh + (th_out - 1) * s + 1, wo, chid),
                                    (s, 1, 1))                # (th_out, Wo, Chid)
                acc = acc + tap * wdw[kh, kw]
        y = jnp.clip(acc.reshape(th_out * wo, chid) + b2_ref[...], 0.0, 6.0)

        # ---- stage 3: 1x1 project + bias (+ residual), single store ---------
        z = jnp.dot(y, w3_ref[...], preferred_element_type=jnp.float32)
        z = (z + b3_ref[...]).reshape(th_out, wo, -1)
        if use_res:
            # residual rows live at padded rows [row_start+1, ...), cols [1, W]
            xr = x_ref[0, pl.ds(row_start + 1, th_out), :, :]
            z = z + jax.lax.slice(xr, (0, 1, 0), (th_out, 1 + wo, cin))
        o_ref[0] = z.astype(o_ref.dtype)

    if has_expand:
        return body

    def body_no_expand(x_ref, wdw_ref, b2_ref, w3_ref, b3_ref, o_ref):
        return body(x_ref, None, None, wdw_ref, b2_ref, w3_ref, b3_ref, o_ref)

    return body_no_expand


# ---------------------------------------------------------------------------
# Wrapper
# ---------------------------------------------------------------------------
def _fold_bn(gamma, beta, mean, var):
    scale = gamma / jnp.sqrt(var + EPS)
    bias = beta - mean * scale
    return scale.astype(jnp.float32), bias.astype(jnp.float32)


def inverted_residual_forward(x_nchw, params, *, stride, expand_ratio, oup,
                              row_tile=32):
    """Pallas implementation of InvertedResidual.forward. Input/output NCHW."""
    assert stride in (1, 2)
    N, Cin, H, W = x_nchw.shape

    Ho = (H - 1) // stride + 1
    Wo = (W - 1) // stride + 1
    # th_out divides Ho exactly -> no over-allocation, no post-kernel slice.
    th_out = _largest_divisor_leq(Ho, max(1, row_tile))
    R = Ho // th_out
    th_in = (th_out - 1) * stride + 3             # input rows incl. 3x3 halo
    Hp = (Ho - 1) * stride + 3                    # padded input height needed
    Wp = (Wo - 1) * stride + 3                    # padded input width needed
    Wpa = _round_up(Wp, 8)                        # 8-aligned -> free reshapes

    use_res = (stride == 1 and Cin == oup)
    has_expand = (expand_ratio != 1)

    w_dw = params["w_dw"]                         # (3, 3, Chid)
    Chid = w_dw.shape[-1]
    s2, b2 = _fold_bn(*params["bn2"])
    s3, b3 = _fold_bn(*params["bn3"])
    # Fold BN scales into the conv weights; only bias+clip remain in-kernel.
    wdw_f = (w_dw * s2[None, None, :]).astype(jnp.float32)
    w3_f = (params["w3"] * s3[None, :]).astype(jnp.float32)

    # NCHW -> NHWC (required at the PyTorch boundary) + halo zero-pad; XLA
    # fuses the pad into the transpose, so this is a single HBM pass.
    # TODO(synk): in a full network keep activations NHWC end-to-end so this
    # boundary transpose disappears entirely.
    x = jnp.transpose(x_nchw, (0, 2, 3, 1)).astype(jnp.float32)
    xpad = jnp.pad(x, ((0, 0), (1, Hp - H - 1), (1, Wpa - W - 1), (0, 0)))

    const2 = lambda n, r: (0, 0)
    const3 = lambda n, r: (0, 0, 0)

    inputs = [xpad]
    in_specs = [pl.BlockSpec((1, Hp, Wpa, Cin), lambda n, r: (n, 0, 0, 0))]
    if has_expand:
        s1, b1 = _fold_bn(*params["bn1"])
        w1_f = (params["w1"] * s1[None, :]).astype(jnp.float32)
        inputs += [w1_f, b1.reshape(1, Chid)]
        in_specs += [pl.BlockSpec((Cin, Chid), const2),
                     pl.BlockSpec((1, Chid), const2)]
    inputs += [wdw_f, b2.reshape(1, Chid), w3_f, b3.reshape(1, oup)]
    in_specs += [pl.BlockSpec((3, 3, Chid), const3),
                 pl.BlockSpec((1, Chid), const2),
                 pl.BlockSpec((Chid, oup), const2),
                 pl.BlockSpec((1, oup), const2)]

    kernel = _make_fused_kernel(stride=stride, th_out=th_out, th_in=th_in,
                                wo=Wo, h_in=H, w_in=W,
                                use_res=use_res, has_expand=has_expand)

    # Honest VMEM budget: double-buffered input/output blocks + resident
    # weights + headroom for the compiler-managed hidden-tile temporaries.
    data_bytes = 4 * (2 * Hp * Wpa * Cin
                      + 2 * th_out * Wo * oup
                      + 2 * (Cin * Chid + Chid * oup + 11 * Chid + 2 * oup))
    temp_bytes = 4 * 6 * th_in * Wpa * Chid
    vmem_limit = int(max(16 << 20, min(60 << 20, 2 * (data_bytes + temp_bytes))))

    # NOTE(v7x): with batch 1 and R == 1 only one TensorCore is used; lowering
    # row_tile (so R >= 2) restores megacore parallelism for tiny late layers.
    out = pl.pallas_call(
        kernel,
        out_shape=jax.ShapeDtypeStruct((N, Ho, Wo, oup), jnp.float32),
        grid=(N, R),
        in_specs=in_specs,
        out_specs=pl.BlockSpec((1, th_out, Wo, oup), lambda n, r: (n, r, 0, 0)),
        compiler_params=pltpu.CompilerParams(
            dimension_semantics=("parallel", "parallel"),
            vmem_limit_bytes=vmem_limit),
    )(*inputs)

    return jnp.transpose(out, (0, 3, 1, 2))       # -> NCHW


# ---------------------------------------------------------------------------
# Pure-JAX reference (NCHW, mirrors the PyTorch module) for validation
# ---------------------------------------------------------------------------
def _ref_forward(x, raw, *, stride, expand_ratio, oup):
    def bn(z, gamma, beta, mean, var):
        sh = (1, -1, 1, 1)
        return (z - mean.reshape(sh)) / jnp.sqrt(var.reshape(sh) + EPS) \
            * gamma.reshape(sh) + beta.reshape(sh)

    def conv(z, w, s=1, p=0, groups=1):
        return jax.lax.conv_general_dilated(
            z, w, (s, s), [(p, p), (p, p)], feature_group_count=groups,
            dimension_numbers=("NCHW", "OIHW", "NCHW"))

    inp = x
    if expand_ratio != 1:
        x = jnp.clip(bn(conv(x, raw["w1_oihw"]), *raw["bn1"]), 0.0, 6.0)
    hidden = raw["w_dw_oihw"].shape[0]
    x = jnp.clip(bn(conv(x, raw["w_dw_oihw"], s=stride, p=1, groups=hidden),
                    *raw["bn2"]), 0.0, 6.0)
    x = bn(conv(x, raw["w3_oihw"]), *raw["bn3"])
    if stride == 1 and inp.shape[1] == oup:
        x = x + inp
    return x


# ---------------------------------------------------------------------------
def make_params(key, inp, oup, expand_ratio):
    hidden = int(round(inp * expand_ratio))
    ks = jax.random.split(key, 6)

    def bn_params(k, c):
        k1, k2, k3, k4 = jax.random.split(k, 4)
        gamma = 1.0 + 0.1 * jax.random.normal(k1, (c,), jnp.float32)
        beta = 0.1 * jax.random.normal(k2, (c,), jnp.float32)
        mean = 0.1 * jax.random.normal(k3, (c,), jnp.float32)
        var = 0.5 + jax.random.uniform(k4, (c,), jnp.float32)
        return (gamma, beta, mean, var)

    w1_oihw = 0.2 * jax.random.normal(ks[0], (hidden, inp, 1, 1), jnp.float32)
    w_dw_oihw = 0.2 * jax.random.normal(ks[1], (hidden, 1, 3, 3), jnp.float32)
    w3_oihw = 0.2 * jax.random.normal(ks[2], (oup, hidden, 1, 1), jnp.float32)

    raw = {
        "w1_oihw": w1_oihw, "w_dw_oihw": w_dw_oihw, "w3_oihw": w3_oihw,
        "bn1": bn_params(ks[3], hidden),
        "bn2": bn_params(ks[4], hidden),
        "bn3": bn_params(ks[5], oup),
    }
    # Pallas/NHWC layouts: 1x1 convs as (Cin, Cout) matmul weights,
    # depthwise as (3, 3, C).
    params = {
        "w1": jnp.transpose(w1_oihw[:, :, 0, 0], (1, 0)),         # (inp, hidden)
        "w_dw": jnp.transpose(w_dw_oihw[:, 0, :, :], (1, 2, 0)),  # (3, 3, hidden)
        "w3": jnp.transpose(w3_oihw[:, :, 0, 0], (1, 0)),         # (hidden, oup)
        "bn1": raw["bn1"], "bn2": raw["bn2"], "bn3": raw["bn3"],
    }
    return params, raw


if __name__ == "__main__":
    key = jax.random.PRNGKey(0)

    configs = [
        # (N, inp, oup, H, W, stride, expand_ratio)
        (2, 8, 8, 16, 16, 1, 4),    # residual branch exercised
        (2, 8, 16, 16, 16, 2, 6),   # stride 2, no residual
    ]
    for idx, (N, INP, OUP, H, W, STRIDE, EXPAND) in enumerate(configs):
        kx, kp, key = jax.random.split(key, 3)
        x = jax.random.normal(kx, (N, INP, H, W), jnp.float32)
        params, raw = make_params(kp, INP, OUP, EXPAND)

        out = jax.block_until_ready(
            inverted_residual_forward(x, params, stride=STRIDE,
                                      expand_ratio=EXPAND, oup=OUP))
        ref = jax.block_until_ready(
            _ref_forward(x, raw, stride=STRIDE, expand_ratio=EXPAND, oup=OUP))

        assert out.shape == ref.shape, (idx, out.shape, ref.shape)
        err = float(jnp.max(jnp.abs(out - ref)))
        assert jnp.allclose(out, ref, atol=1e-4, rtol=1e-4), (idx, err)

    print("KERNEL_OK")
</pallas_src>

<mosaic_0001>
module attributes {stable_mosaic.version = 11 : i64} {
  func.func @body(%arg0: i32, %arg1: i32, %arg2: memref<1x18x24x8xf32, #tpu.memory_space<vmem>>, %arg3: memref<8x32xf32, #tpu.memory_space<vmem>>, %arg4: memref<1x32xf32, #tpu.memory_space<vmem>>, %arg5: memref<3x3x32xf32, #tpu.memory_space<vmem>>, %arg6: memref<1x32xf32, #tpu.memory_space<vmem>>, %arg7: memref<32x8xf32, #tpu.memory_space<vmem>>, %arg8: memref<1x8xf32, #tpu.memory_space<vmem>>, %arg9: memref<1x16x16x8xf32, #tpu.memory_space<vmem>>) attributes {dimension_semantics = [#tpu.dimension_semantics<parallel>, #tpu.dimension_semantics<parallel>], iteration_bounds = array<i64: 2, 1>, scalar_prefetch = 0 : i64, scratch_operands = 0 : i64, tpu.core_type = #tpu.core_type<tc>, window_params = [{transform_indices = @transform_0, window_bounds = array<i64: 1, 18, 24, 8>}, {pipeline_mode = #tpu.pipeline_mode<synchronous>, transform_indices = @transform_1, window_bounds = array<i64: 8, 32>}, {pipeline_mode = #tpu.pipeline_mode<synchronous>, transform_indices = @transform_2, window_bounds = array<i64: 1, 32>}, {pipeline_mode = #tpu.pipeline_mode<synchronous>, transform_indices = @transform_3, window_bounds = array<i64: 3, 3, 32>}, {pipeline_mode = #tpu.pipeline_mode<synchronous>, transform_indices = @transform_4, window_bounds = array<i64: 1, 32>}, {pipeline_mode = #tpu.pipeline_mode<synchronous>, transform_indices = @transform_5, window_bounds = array<i64: 32, 8>}, {pipeline_mode = #tpu.pipeline_mode<synchronous>, transform_indices = @transform_6, window_bounds = array<i64: 1, 8>}, {transform_indices = @transform_7, window_bounds = array<i64: 1, 16, 16, 8>}]} {
    %c16_i32 = arith.constant 16 : i32
    %0 = arith.muli %arg1, %c16_i32 : i32
    %1 = tpu.assume_multiple %0, 16 : i32
    %c0 = arith.constant 0 : index
    %2 = arith.index_cast %1 : i32 to index
    %c0_0 = arith.constant 0 : index
    %c0_1 = arith.constant 0 : index
    %3 = vector.load %arg2[%c0, %2, %c0_0, %c0_1] : memref<1x18x24x8xf32, #tpu.memory_space<vmem>>, vector<1x18x24x8xf32>
    %4 = vector.shape_cast %3 : vector<1x18x24x8xf32> to vector<18x24x8xf32>
    %5 = vector.shape_cast %4 : vector<18x24x8xf32> to vector<432x8xf32>
    %c0_2 = arith.constant 0 : index
    %c0_3 = arith.constant 0 : index
    %6 = vector.load %arg3[%c0_2, %c0_3] : memref<8x32xf32, #tpu.memory_space<vmem>>, vector<8x32xf32>
    %cst = arith.constant dense<0.000000e+00> : vector<432x32xf32>
    %7 = tpu.matmul %5, %6, %cst {dimension_numbers = #tpu.dot_dimension_numbers<[1], [0], [0], [1], [0, 0, 1, 1], [], []>} : vector<432x8xf32>, vector<8x32xf32>, vector<432x32xf32> -> vector<432x32xf32>
    %c0_4 = arith.constant 0 : index
    %c0_5 = arith.constant 0 : index
    %8 = vector.load %arg4[%c0_4, %c0_5] : memref<1x32xf32, #tpu.memory_space<vmem>>, vector<1x32xf32>
    %9 = vector.broadcast %8 : vector<1x32xf32> to vector<432x32xf32>
    %10 = arith.addf %7, %9 : vector<432x32xf32>
    %cst_6 = arith.constant 0.000000e+00 : f32
    %cst_7 = arith.constant 6.000000e+00 : f32
    %11 = vector.broadcast %cst_6 : f32 to vector<432x32xf32>
    %12 = arith.maximumf %11, %10 : vector<432x32xf32>
    %13 = vector.broadcast %cst_7 : f32 to vector<432x32xf32>
    %14 = arith.minimumf %13, %12 : vector<432x32xf32>
    %15 = vector.shape_cast %14 : vector<432x32xf32> to vector<18x24x32xf32>
    %16 = tpu.iota {dimensions = array<i32: 0>} : vector<18x24x1xi32>
    %17 = vector.broadcast %1 : i32 to vector<18x24x1xi32>
    %18 = arith.addi %17, %16 : vector<18x24x1xi32>
    %19 = tpu.iota {dimensions = array<i32: 1>} : vector<18x24x1xi32>
    %c1_i32 = arith.constant 1 : i32
    %20 = vector.broadcast %c1_i32 : i32 to vector<18x24x1xi32>
    %21 = arith.cmpi sge, %18, %20 : vector<18x24x1xi32>
    %c16_i32_8 = arith.constant 16 : i32
    %22 = vector.broadcast %c16_i32_8 : i32 to vector<18x24x1xi32>
    %23 = arith.cmpi sle, %18, %22 : vector<18x24x1xi32>
    %24 = arith.andi %21, %23 : vector<18x24x1xi1>
    %c1_i32_9 = arith.constant 1 : i32
    %25 = vector.broadcast %c1_i32_9 : i32 to vector<18x24x1xi32>
    %26 = arith.cmpi sge, %19, %25 : vector<18x24x1xi32>
    %27 = arith.andi %24, %26 : vector<18x24x1xi1>
    %c16_i32_10 = arith.constant 16 : i32
    %28 = vector.broadcast %c16_i32_10 : i32 to vector<18x24x1xi32>
    %29 = arith.cmpi sle, %19, %28 : vector<18x24x1xi32>
    %30 = arith.andi %27, %29 : vector<18x24x1xi1>
    %cst_11 = arith.constant 0.000000e+00 : f32
    %31 = vector.shape_cast %30 : vector<18x24x1xi1> to vector<18x24x1xi1>
    %32 = vector.broadcast %31 : vector<18x24x1xi1> to vector<18x24x32xi1>
    %33 = vector.broadcast %cst_11 : f32 to vector<18x24x32xf32>
    %34 = arith.select %32, %15, %33 : vector<18x24x32xi1>, vector<18x24x32xf32>
    %c0_12 = arith.constant 0 : index
    %c0_13 = arith.constant 0 : index
    %c0_14 = arith.constant 0 : index
    %35 = vector.load %arg5[%c0_12, %c0_13, %c0_14] : memref<3x3x32xf32, #tpu.memory_space<vmem>>, vector<3x3x32xf32>
    %36 = vector.extract_strided_slice %34 {offsets = [0, 0, 0], sizes = [18, 16, 32], strides = [1, 1, 1]} : vector<18x24x32xf32> to vector<18x16x32xf32>
    %37 = vector.extract_strided_slice %34 {offsets = [0, 1, 0], sizes = [18, 16, 32], strides = [1, 1, 1]} : vector<18x24x32xf32> to vector<18x16x32xf32>
    %38 = vector.extract_strided_slice %34 {offsets = [0, 2, 0], sizes = [18, 16, 32], strides = [1, 1, 1]} : vector<18x24x32xf32> to vector<18x16x32xf32>
    %cst_15 = arith.constant 0.000000e+00 : f32
    %39 = vector.broadcast %cst_15 : f32 to vector<16x16x32xf32>
    %40 = vector.extract_strided_slice %36 {offsets = [0, 0, 0], sizes = [16, 16, 32], strides = [1, 1, 1]} : vector<18x16x32xf32> to vector<16x16x32xf32>
    %41 = vector.extract_strided_slice %35 {offsets = [0, 0, 0], sizes = [1, 1, 32], strides = [1, 1, 1]} : vector<3x3x32xf32> to vector<1x1x32xf32>
    %42 = vector.shape_cast %41 : vector<1x1x32xf32> to vector<32xf32>
    %43 = vector.shape_cast %42 : vector<32xf32> to vector<1x1x32xf32>
    %44 = vector.broadcast %43 : vector<1x1x32xf32> to vector<16x16x32xf32>
    %45 = arith.mulf %40, %44 : vector<16x16x32xf32>
    %46 = arith.addf %39, %45 : vector<16x16x32xf32>
    %47 = vector.extract_strided_slice %37 {offsets = [0, 0, 0], sizes = [16, 16, 32], strides = [1, 1, 1]} : vector<18x16x32xf32> to vector<16x16x32xf32>
    %48 = vector.extract_strided_slice %35 {offsets = [0, 1, 0], sizes = [1, 1, 32], strides = [1, 1, 1]} : vector<3x3x32xf32> to vector<1x1x32xf32>
    %49 = vector.shape_cast %48 : vector<1x1x32xf32> to vector<32xf32>
    %50 = vector.shape_cast %49 : vector<32xf32> to vector<1x1x32xf32>
    %51 = vector.broadcast %50 : vector<1x1x32xf32> to vector<16x16x32xf32>
    %52 = arith.mulf %47, %51 : vector<16x16x32xf32>
    %53 = arith.addf %46, %52 : vector<16x16x32xf32>
    %54 = vector.extract_strided_slice %38 {offsets = [0, 0, 0], sizes = [16, 16, 32], strides = [1, 1, 1]} : vector<18x16x32xf32> to vector<16x16x32xf32>
    %55 = vector.extract_strided_slice %35 {offsets = [0, 2, 0], sizes = [1, 1, 32], strides = [1, 1, 1]} : vector<3x3x32xf32> to vector<1x1x32xf32>
    %56 = vector.shape_cast %55 : vector<1x1x32xf32> to vector<32xf32>
    %57 = vector.shape_cast %56 : vector<32xf32> to vector<1x1x32xf32>
    %58 = vector.broadcast %57 : vector<1x1x32xf32> to vector<16x16x32xf32>
    %59 = arith.mulf %54, %58 : vector<16x16x32xf32>
    %60 = arith.addf %53, %59 : vector<16x16x32xf32>
    %61 = vector.extract_strided_slice %36 {offsets = [1, 0, 0], sizes = [16, 16, 32], strides = [1, 1, 1]} : vector<18x16x32xf32> to vector<16x16x32xf32>
    %62 = vector.extract_strided_slice %35 {offsets = [1, 0, 0], sizes = [1, 1, 32], strides = [1, 1, 1]} : vector<3x3x32xf32> to vector<1x1x32xf32>
    %63 = vector.shape_cast %62 : vector<1x1x32xf32> to vector<32xf32>
    %64 = vector.shape_cast %63 : vector<32xf32> to vector<1x1x32xf32>
    %65 = vector.broadcast %64 : vector<1x1x32xf32> to vector<16x16x32xf32>
    %66 = arith.mulf %61, %65 : vector<16x16x32xf32>
    %67 = arith.addf %60, %66 : vector<16x16x32xf32>
    %68 = vector.extract_strided_slice %37 {offsets = [1, 0, 0], sizes = [16, 16, 32], strides = [1, 1, 1]} : vector<18x16x32xf32> to vector<16x16x32xf32>
    %69 = vector.extract_strided_slice %35 {offsets = [1, 1, 0], sizes = [1, 1, 32], strides = [1, 1, 1]} : vector<3x3x32xf32> to vector<1x1x32xf32>
    %70 = vector.shape_cast %69 : vector<1x1x32xf32> to vector<32xf32>
    %71 = vector.shape_cast %70 : vector<32xf32> to vector<1x1x32xf32>
    %72 = vector.broadcast %71 : vector<1x1x32xf32> to vector<16x16x32xf32>
    %73 = arith.mulf %68, %72 : vector<16x16x32xf32>
    %74 = arith.addf %67, %73 : vector<16x16x32xf32>
    %75 = vector.extract_strided_slice %38 {offsets = [1, 0, 0], sizes = [16, 16, 32], strides = [1, 1, 1]} : vector<18x16x32xf32> to vector<16x16x32xf32>
    %76 = vector.extract_strided_slice %35 {offsets = [1, 2, 0], sizes = [1, 1, 32], strides = [1, 1, 1]} : vector<3x3x32xf32> to vector<1x1x32xf32>
    %77 = vector.shape_cast %76 : vector<1x1x32xf32> to vector<32xf32>
    %78 = vector.shape_cast %77 : vector<32xf32> to vector<1x1x32xf32>
    %79 = vector.broadcast %78 : vector<1x1x32xf32> to vector<16x16x32xf32>
    %80 = arith.mulf %75, %79 : vector<16x16x32xf32>
    %81 = arith.addf %74, %80 : vector<16x16x32xf32>
    %82 = vector.extract_strided_slice %36 {offsets = [2, 0, 0], sizes = [16, 16, 32], strides = [1, 1, 1]} : vector<18x16x32xf32> to vector<16x16x32xf32>
    %83 = vector.extract_strided_slice %35 {offsets = [2, 0, 0], sizes = [1, 1, 32], strides = [1, 1, 1]} : vector<3x3x32xf32> to vector<1x1x32xf32>
    %84 = vector.shape_cast %83 : vector<1x1x32xf32> to vector<32xf32>
    %85 = vector.shape_cast %84 : vector<32xf32> to vector<1x1x32xf32>
    %86 = vector.broadcast %85 : vector<1x1x32xf32> to vector<16x16x32xf32>
    %87 = arith.mulf %82, %86 : vector<16x16x32xf32>
    %88 = arith.addf %81, %87 : vector<16x16x32xf32>
    %89 = vector.extract_strided_slice %37 {offsets = [2, 0, 0], sizes = [16, 16, 32], strides = [1, 1, 1]} : vector<18x16x32xf32> to vector<16x16x32xf32>
    %90 = vector.extract_strided_slice %35 {offsets = [2, 1, 0], sizes = [1, 1, 32], strides = [1, 1, 1]} : vector<3x3x32xf32> to vector<1x1x32xf32>
    %91 = vector.shape_cast %90 : vector<1x1x32xf32> to vector<32xf32>
    %92 = vector.shape_cast %91 : vector<32xf32> to vector<1x1x32xf32>
    %93 = vector.broadcast %92 : vector<1x1x32xf32> to vector<16x16x32xf32>
    %94 = arith.mulf %89, %93 : vector<16x16x32xf32>
    %95 = arith.addf %88, %94 : vector<16x16x32xf32>
    %96 = vector.extract_strided_slice %38 {offsets = [2, 0, 0], sizes = [16, 16, 32], strides = [1, 1, 1]} : vector<18x16x32xf32> to vector<16x16x32xf32>
    %97 = vector.extract_strided_slice %35 {offsets = [2, 2, 0], sizes = [1, 1, 32], strides = [1, 1, 1]} : vector<3x3x32xf32> to vector<1x1x32xf32>
    %98 = vector.shape_cast %97 : vector<1x1x32xf32> to vector<32xf32>
    %99 = vector.shape_cast %98 : vector<32xf32> to vector<1x1x32xf32>
    %100 = vector.broadcast %99 : vector<1x1x32xf32> to vector<16x16x32xf32>
    %101 = arith.mulf %96, %100 : vector<16x16x32xf32>
    %102 = arith.addf %95, %101 : vector<16x16x32xf32>
    %103 = vector.shape_cast %102 : vector<16x16x32xf32> to vector<256x32xf32>
    %c0_16 = arith.constant 0 : index
    %c0_17 = arith.constant 0 : index
    %104 = vector.load %arg6[%c0_16, %c0_17] : memref<1x32xf32, #tpu.memory_space<vmem>>, vector<1x32xf32>
    %105 = vector.broadcast %104 : vector<1x32xf32> to vector<256x32xf32>
    %106 = arith.addf %103, %105 : vector<256x32xf32>
    %cst_18 = arith.constant 0.000000e+00 : f32
    %cst_19 = arith.constant 6.000000e+00 : f32
    %107 = vector.broadcast %cst_18 : f32 to vector<256x32xf32>
    %108 = arith.maximumf %107, %106 : vector<256x32xf32>
    %109 = vector.broadcast %cst_19 : f32 to vector<256x32xf32>
    %110 = arith.minimumf %109, %108 : vector<256x32xf32>
    %c0_20 = arith.constant 0 : index
    %c0_21 = arith.constant 0 : index
    %111 = vector.load %arg7[%c0_20, %c0_21] : memref<32x8xf32, #tpu.memory_space<vmem>>, vector<32x8xf32>
    %cst_22 = arith.constant dense<0.000000e+00> : vector<256x8xf32>
    %112 = tpu.matmul %110, %111, %cst_22 {dimension_numbers = #tpu.dot_dimension_numbers<[1], [0], [0], [1], [0, 0, 1, 1], [], []>} : vector<256x32xf32>, vector<32x8xf32>, vector<256x8xf32> -> vector<256x8xf32>
    %c0_23 = arith.constant 0 : index
    %c0_24 = arith.constant 0 : index
    %113 = vector.load %arg8[%c0_23, %c0_24] : memref<1x8xf32, #tpu.memory_space<vmem>>, vector<1x8xf32>
    %114 = vector.broadcast %113 : vector<1x8xf32> to vector<256x8xf32>
    %115 = arith.addf %112, %114 : vector<256x8xf32>
    %116 = vector.shape_cast %115 : vector<256x8xf32> to vector<16x16x8xf32>
    %c1_i32_25 = arith.constant 1 : i32
    %117 = arith.addi %1, %c1_i32_25 : i32
    %c0_26 = arith.constant 0 : index
    %118 = arith.index_cast %117 : i32 to index
    %c0_27 = arith.constant 0 : index
    %c0_28 = arith.constant 0 : index
    %119 = vector.load %arg2[%c0_26, %118, %c0_27, %c0_28] : memref<1x18x24x8xf32, #tpu.memory_space<vmem>>, vector<1x16x24x8xf32>
    %120 = vector.shape_cast %119 : vector<1x16x24x8xf32> to vector<16x24x8xf32>
    %121 = vector.extract_strided_slice %120 {offsets = [0, 1, 0], sizes = [16, 16, 8], strides = [1, 1, 1]} : vector<16x24x8xf32> to vector<16x16x8xf32>
    %122 = arith.addf %116, %121 : vector<16x16x8xf32>
    %c0_29 = arith.constant 0 : index
    %c0_30 = arith.constant 0 : index
    %c0_31 = arith.constant 0 : index
    %c0_32 = arith.constant 0 : index
    %123 = vector.load %arg9[%c0_29, %c0_30, %c0_31, %c0_32] : memref<1x16x16x8xf32, #tpu.memory_space<vmem>>, vector<1x16x16x8xf32>
    %124 = vector.shape_cast %123 : vector<1x16x16x8xf32> to vector<16x16x8xf32>
    %125 = vector.shape_cast %122 : vector<16x16x8xf32> to vector<1x16x16x8xf32>
    tpu.vector_store %arg9[%c0_29, %c0_30, %c0_31, %c0_32], %125 {strides = array<i32>} : memref<1x16x16x8xf32, #tpu.memory_space<vmem>>, vector<1x16x16x8xf32>,
    return
  }
  func.func @transform_0(%arg0: i32, %arg1: i32) -> (i32, i32, i32, i32) {
    %c0_i32 = arith.constant 0 : i32
    %c0_i32_0 = arith.constant 0 : i32
    %c0_i32_1 = arith.constant 0 : i32
    %c0_i32_2 = arith.constant 0 : i32
    return %arg0, %c0_i32, %c0_i32_0, %c0_i32_1 : i32, i32, i32, i32
  }
  func.func @transform_1(%arg0: i32, %arg1: i32) -> (i32, i32) {
    %c0_i32 = arith.constant 0 : i32
    %c0_i32_0 = arith.constant 0 : i32
    %c0_i32_1 = arith.constant 0 : i32
    return %c0_i32, %c0_i32_0 : i32, i32
  }
  func.func @transform_2(%arg0: i32, %arg1: i32) -> (i32, i32) {
    %c0_i32 = arith.constant 0 : i32
    %c0_i32_0 = arith.constant 0 : i32
    %c0_i32_1 = arith.constant 0 : i32
    return %c0_i32, %c0_i32_0 : i32, i32
  }
  func.func @transform_3(%arg0: i32, %arg1: i32) -> (i32, i32, i32) {
    %c0_i32 = arith.constant 0 : i32
    %c0_i32_0 = arith.constant 0 : i32
    %c0_i32_1 = arith.constant 0 : i32
    %c0_i32_2 = arith.constant 0 : i32
    return %c0_i32, %c0_i32_0, %c0_i32_1 : i32, i32, i32
  }
  func.func @transform_4(%arg0: i32, %arg1: i32) -> (i32, i32) {
    %c0_i32 = arith.constant 0 : i32
    %c0_i32_0 = arith.constant 0 : i32
    %c0_i32_1 = arith.constant 0 : i32
    return %c0_i32, %c0_i32_0 : i32, i32
  }
  func.func @transform_5(%arg0: i32, %arg1: i32) -> (i32, i32) {
    %c0_i32 = arith.constant 0 : i32
    %c0_i32_0 = arith.constant 0 : i32
    %c0_i32_1 = arith.constant 0 : i32
    return %c0_i32, %c0_i32_0 : i32, i32
  }
  func.func @transform_6(%arg0: i32, %arg1: i32) -> (i32, i32) {
    %c0_i32 = arith.constant 0 : i32
    %c0_i32_0 = arith.constant 0 : i32
    %c0_i32_1 = arith.constant 0 : i32
    return %c0_i32, %c0_i32_0 : i32, i32
  }
  func.func @transform_7(%arg0: i32, %arg1: i32) -> (i32, i32, i32, i32) {
    %c0_i32 = arith.constant 0 : i32
    %c0_i32_0 = arith.constant 0 : i32
    %c0_i32_1 = arith.constant 0 : i32
    return %arg0, %arg1, %c0_i32, %c0_i32_0 : i32, i32, i32, i32
  }
}

</mosaic_0001>

<llo_original>
// kernel: tpu_custom_call.1
$region0: #{tpu_custom_call.1}
  #allocation0 [shape = 'u32[]', space=smem, size = 0x4, offset = 0x4, fixed_abs, tag = 'smem constant byte address 0x4 - core index']
  #allocation1 [shape = 'u32[144,128]{1,0:T(1,128)}', space=vmem, size = 0x12000, scoped, tag = 'internal scratch']
  %s0 = inlined_call_operand.vmem [shape: f32[2,18,24,8], index: 0, kind: input, shape index: {}]
  %s1 = inlined_call_operand.vmem [shape: f32[8,32], index: 1, kind: input, shape index: {}]
  %s2 = inlined_call_operand.vmem [shape: f32[1,32], index: 2, kind: input, shape index: {}]
  %s3 = inlined_call_operand.vmem [shape: f32[3,3,32], index: 3, kind: input, shape index: {}]
  %s4 = inlined_call_operand.vmem [shape: f32[1,32], index: 4, kind: input, shape index: {}]
  %s5 = inlined_call_operand.vmem [shape: f32[32,8], index: 5, kind: input, shape index: {}]
  %s6 = inlined_call_operand.vmem [shape: f32[1,8], index: 6, kind: input, shape index: {}]
  %s7 = inlined_call_operand.vmem [shape: f32[2,16,16,8], index: 7, kind: output, shape index: {}]
  %s8 = sld [smem:[#allocation0]]
  $region61: #{tpu_custom_call.1} parent=0
    _
  %s10 = ssub.s32 1, %s8
  %s11 = scalar_select 0, %s10, %s8
  loop: start=0, step=1, limit=4
  $region2: #{tpu_custom_call.1} parent=0 // loop_pre_header
    _
  $region3: #{tpu_custom_call.1} parent=0 // loop_header
    %s13 = sphi 0, %s17
    %p14 = scmp.ge.s32.totalorder %s13, 4
    %s20 = sphi 0, %s32
    %s21 = sphi 0, %s28
    %s22 = sphi 0, %s20
    %s23 = sphi 0, %s21
    %s24 = sphi 0, %s22
    %s25 = sphi 0, %s23
    %s35 = sphi 0, %s37
    %s38 = sphi 0, %s35
    %s39 = sphi 0, %s38
    %s55 = sphi 0, %s39
    %s59 = sphi 0, %s59
    %s61 = sphi 0, %s59
    %s62 = sphi 0, %s61
    %s76 = sphi 0, %s62
    %s80 = sphi 0, %s80
    %s82 = sphi 0, %s80
    %s83 = sphi 0, %s82
    %s97 = sphi 0, %s83
    %s101 = sphi 0, %s101
    %s103 = sphi 0, %s101
    %s104 = sphi 0, %s103
    %s118 = sphi 0, %s104
    %s122 = sphi 0, %s122
    %s124 = sphi 0, %s122
    %s125 = sphi 0, %s124
    %s139 = sphi 0, %s125
    %s143 = sphi 0, %s143
    %s145 = sphi 0, %s143
    %s146 = sphi 0, %s145
    %s160 = sphi 0, %s146
    %s164 = sphi 0, %s164
    %s166 = sphi 0, %s164
    %s167 = sphi 0, %s166
    %s181 = sphi 0, %s167
    %s189 = sphi 0, %s191
    %s192 = sphi 0, %s189
    %s193 = sphi 0, %s192
    %s209 = sphi 0, %s193
  $region4: #{tpu_custom_call.1} parent=0 // loop_header_branch
    %16 = sbr.rel (%p14) target = $region8
  $region5: #{tpu_custom_call.1} parent=0 // loop_body
    %s18 = ssub.s32 %s13, 1
    %s19 = ssub.s32 %s13, 2
    %s26 = sadd.s32 1, %s21
    %p27 = scmp.ge.s32.totalorder %s26, 1
    %s28 = scalar_select %p27, 0, %s26
    %s29 = sadd.s32 1, %s20
    %s30 = scalar_select %p27, %s29, %s20
    %p31 = scmp.ge.s32.totalorder %s30, 2
    %s32 = scalar_select %p31, 0, %s30
    %s33 = ssub.s32 %s20, %s32
    %p34 = scmp.eq.s32.totalorder %s33, 0
    %s36 = sadd.s32 %s35, 1
    %s37 = scalar_select %p34, %s35, %s36
    %p40 = pneg %p34
    %p41 = scmp.eq.s32.totalorder %s13, 1
    %p42 = por %p40, %p41
    %p43 = scmp.ne.s32.totalorder %s35, %s38
    %p44 = scmp.eq.s32.totalorder %s13, 0
    %p45 = por %p43, %p44
    %p46 = scmp.ne.s32.totalorder %s35, %s38
    %p47 = scmp.eq.s32.totalorder %s18, 1
    %p48 = por %p46, %p47
    %p49 = scmp.ne.s32.totalorder %s38, %s39
    %p50 = scmp.eq.s32.totalorder %s18, 0
    %p51 = por %p49, %p50
    %p52 = scmp.ne.s32.totalorder %s38, %s39
    %p53 = scmp.eq.s32.totalorder %s19, 1
    %p54 = por %p52, %p53
    %p56 = scmp.ne.s32.totalorder %s39, %s55
    %p57 = scmp.eq.s32.totalorder %s19, 0
    %p58 = por %p56, %p57
    %s60 = sadd.s32 %s59, 1
    %p63 = scmp.eq.s32.totalorder %s13, 1
    %p64 = scmp.ne.s32.totalorder %s59, %s61
    %p65 = scmp.eq.s32.totalorder %s13, 0
    %p66 = por %p64, %p65
    %p67 = scmp.ne.s32.totalorder %s59, %s61
    %p68 = scmp.eq.s32.totalorder %s18, 1
    %p69 = por %p67, %p68
    %p70 = scmp.ne.s32.totalorder %s61, %s62
    %p71 = scmp.eq.s32.totalorder %s18, 0
    %p72 = por %p70, %p71
    %p73 = scmp.ne.s32.totalorder %s61, %s62
    %p74 = scmp.eq.s32.totalorder %s19, 1
    %p75 = por %p73, %p74
    %p77 = scmp.ne.s32.totalorder %s62, %s76
    %p78 = scmp.eq.s32.totalorder %s19, 0
    %p79 = por %p77, %p78
    %s81 = sadd.s32 %s80, 1
    %p84 = scmp.eq.s32.totalorder %s13, 1
    %p85 = scmp.ne.s32.totalorder %s80, %s82
    %p86 = scmp.eq.s32.totalorder %s13, 0
    %p87 = por %p85, %p86
    %p88 = scmp.ne.s32.totalorder %s80, %s82
    %p89 = scmp.eq.s32.totalorder %s18, 1
    %p90 = por %p88, %p89
    %p91 = scmp.ne.s32.totalorder %s82, %s83
    %p92 = scmp.eq.s32.totalorder %s18, 0
    %p93 = por %p91, %p92
    %p94 = scmp.ne.s32.totalorder %s82, %s83
    %p95 = scmp.eq.s32.totalorder %s19, 1
    %p96 = por %p94, %p95
    %p98 = scmp.ne.s32.totalorder %s83, %s97
    %p99 = scmp.eq.s32.totalorder %s19, 0
    %p100 = por %p98, %p99
    %s102 = sadd.s32 %s101, 1
    %p105 = scmp.eq.s32.totalorder %s13, 1
    %p106 = scmp.ne.s32.totalorder %s101, %s103
    %p107 = scmp.eq.s32.totalorder %s13, 0
    %p108 = por %p106, %p107
    %p109 = scmp.ne.s32.totalorder %s101, %s103
    %p110 = scmp.eq.s32.totalorder %s18, 1
    %p111 = por %p109, %p110
    %p112 = scmp.ne.s32.totalorder %s103, %s104
    %p113 = scmp.eq.s32.totalorder %s18, 0
    %p114 = por %p112, %p113
    %p115 = scmp.ne.s32.totalorder %s103, %s104
    %p116 = scmp.eq.s32.totalorder %s19, 1
    %p117 = por %p115, %p116
    %p119 = scmp.ne.s32.totalorder %s104, %s118
    %p120 = scmp.eq.s32.totalorder %s19, 0
    %p121 = por %p119, %p120
    %s123 = sadd.s32 %s122, 1
    %p126 = scmp.eq.s32.totalorder %s13, 1
    %p127 = scmp.ne.s32.totalorder %s122, %s124
    %p128 = scmp.eq.s32.totalorder %s13, 0
    %p129 = por %p127, %p128
    %p130 = scmp.ne.s32.totalorder %s122, %s124
    %p131 = scmp.eq.s32.totalorder %s18, 1
    %p132 = por %p130, %p131
    %p133 = scmp.ne.s32.totalorder %s124, %s125
    %p134 = scmp.eq.s32.totalorder %s18, 0
    %p135 = por %p133, %p134
    %p136 = scmp.ne.s32.totalorder %s124, %s125
    %p137 = scmp.eq.s32.totalorder %s19, 1
    %p138 = por %p136, %p137
    %p140 = scmp.ne.s32.totalorder %s125, %s139
    %p141 = scmp.eq.s32.totalorder %s19, 0
    %p142 = por %p140, %p141
    %s144 = sadd.s32 %s143, 1
    %p147 = scmp.eq.s32.totalorder %s13, 1
    %p148 = scmp.ne.s32.totalorder %s143, %s145
    %p149 = scmp.eq.s32.totalorder %s13, 0
    %p150 = por %p148, %p149
    %p151 = scmp.ne.s32.totalorder %s143, %s145
    %p152 = scmp.eq.s32.totalorder %s18, 1
    %p153 = por %p151, %p152
    %p154 = scmp.ne.s32.totalorder %s145, %s146
    %p155 = scmp.eq.s32.totalorder %s18, 0
    %p156 = por %p154, %p155
    %p157 = scmp.ne.s32.totalorder %s145, %s146
    %p158 = scmp.eq.s32.totalorder %s19, 1
    %p159 = por %p157, %p158
    %p161 = scmp.ne.s32.totalorder %s146, %s160
    %p162 = scmp.eq.s32.totalorder %s19, 0
    %p163 = por %p161, %p162
    %s165 = sadd.s32 %s164, 1
    %p168 = scmp.eq.s32.totalorder %s13, 1
    %p169 = scmp.ne.s32.totalorder %s164, %s166
    %p170 = scmp.eq.s32.totalorder %s13, 0
    %p171 = por %p169, %p170
    %p172 = scmp.ne.s32.totalorder %s164, %s166
    %p173 = scmp.eq.s32.totalorder %s18, 1
    %p174 = por %p172, %p173
    %p175 = scmp.ne.s32.totalorder %s166, %s167
    %p176 = scmp.eq.s32.totalorder %s18, 0
    %p177 = por %p175, %p176
    %p178 = scmp.ne.s32.totalorder %s166, %s167
    %p179 = scmp.eq.s32.totalorder %s19, 1
    %p180 = por %p178, %p179
    %p182 = scmp.ne.s32.totalorder %s167, %s181
    %p183 = scmp.eq.s32.totalorder %s19, 0
    %p184 = por %p182, %p183
    %s185 = ssub.s32 %s20, %s32
    %s186 = ssub.s32 %s21, %s28
    %s187 = sor.u32 %s185, %s186
    %p188 = scmp.eq.s32.totalorder %s187, 0
    %s190 = sadd.s32 %s189, 1
    %s191 = scalar_select %p188, %s189, %s190
    %p194 = pneg %p188
    %p195 = scmp.eq.s32.totalorder %s13, 1
    %p196 = por %p194, %p195
    %p197 = scmp.ne.s32.totalorder %s189, %s192
    %p198 = scmp.eq.s32.totalorder %s13, 0
    %p199 = por %p197, %p198
    %p200 = scmp.ne.s32.totalorder %s189, %s192
    %p201 = scmp.eq.s32.totalorder %s18, 1
    %p202 = por %p200, %p201
    %p203 = scmp.ne.s32.totalorder %s192, %s193
    %p204 = scmp.eq.s32.totalorder %s18, 0
    %p205 = por %p203, %p204
    %p206 = scmp.ne.s32.totalorder %s192, %s193
    %p207 = scmp.eq.s32.totalorder %s19, 1
    %p208 = por %p206, %p207
    %p210 = scmp.ne.s32.totalorder %s193, %s209
    %p211 = scmp.eq.s32.totalorder %s19, 0
    %p212 = por %p210, %p211
    %p213 = scmp.le.s32.totalorder 1, %s13
    %p214 = scmp.lt.s32.totalorder %s13, 3
    %p215 = pnand %p213, %p214
    %p216 = pneg %p215
    // Predicated region
    $region9: #{tpu_custom_call.1} parent=5 // pred_check
      _
    $region10: #{tpu_custom_call.1} parent=5 // pred_check_branch
      %218 = sbr.rel (%p215) target = $region12
    $region11: #{tpu_custom_call.1} parent=5 // pred_region
      %s219 = ssub.s32 %s13, 1
      // Predicated region
      $region13: #{tpu_custom_call.1} parent=11 // pred_check
        %p220 = pneg %p72
      $region14: #{tpu_custom_call.1} parent=11 // pred_check_branch
        %222 = sbr.rel (%p220) target = $region16
      $region15: #{tpu_custom_call.1} parent=11 // pred_region
        _
      $region16: #{tpu_custom_call.1} parent=11 // pred_fallthru
        _
      // Predicated region
      $region17: #{tpu_custom_call.1} parent=11 // pred_check
        %p223 = pneg %p93
      $region18: #{tpu_custom_call.1} parent=11 // pred_check_branch
        %225 = sbr.rel (%p223) target = $region20
      $region19: #{tpu_custom_call.1} parent=11 // pred_region
        _
      $region20: #{tpu_custom_call.1} parent=11 // pred_fallthru
        _
      // Predicated region
      $region21: #{tpu_custom_call.1} parent=11 // pred_check
        %p226 = pneg %p114
      $region22: #{tpu_custom_call.1} parent=11 // pred_check_branch
        %228 = sbr.rel (%p226) target = $region24
      $region23: #{tpu_custom_call.1} parent=11 // pred_region
        _
      $region24: #{tpu_custom_call.1} parent=11 // pred_fallthru
        _
      // Predicated region
      $region25: #{tpu_custom_call.1} parent=11 // pred_check
        %p229 = pneg %p135
      $region26: #{tpu_custom_call.1} parent=11 // pred_check_branch
        %231 = sbr.rel (%p229) target = $region28
      $region27: #{tpu_custom_call.1} parent=11 // pred_region
        _
      $region28: #{tpu_custom_call.1} parent=11 // pred_fallthru
        _
      // Predicated region
      $region29: #{tpu_custom_call.1} parent=11 // pred_check
        %p232 = pneg %p156
      $region30: #{tpu_custom_call.1} parent=11 // pred_check_branch
        %234 = sbr.rel (%p232) target = $region32
      $region31: #{tpu_custom_call.1} parent=11 // pred_region
        _
      $region32: #{tpu_custom_call.1} parent=11 // pred_fallthru
        _
      // Predicated region
      $region33: #{tpu_custom_call.1} parent=11 // pred_check
        %p235 = pneg %p177
      $region34: #{tpu_custom_call.1} parent=11 // pred_check_branch
        %237 = sbr.rel (%p235) target = $region36
      $region35: #{tpu_custom_call.1} parent=11 // pred_region
        _
      $region36: #{tpu_custom_call.1} parent=11 // pred_fallthru
        _
    $region12: #{tpu_custom_call.1} parent=5 // pred_fallthru
      _
    %p238 = scmp.lt.s32.totalorder %s13, 2
    // Predicated region
    $region37: #{tpu_custom_call.1} parent=5 // pred_check
      %p239 = pneg %p238
    $region38: #{tpu_custom_call.1} parent=5 // pred_check_branch
      %241 = sbr.rel (%p239) target = $region40
    $region39: #{tpu_custom_call.1} parent=5 // pred_region
      // Predicated region
      $region41: #{tpu_custom_call.1} parent=39 // pred_check
        %p242 = pneg %p45
      $region42: #{tpu_custom_call.1} parent=39 // pred_check_branch
        %244 = sbr.rel (%p242) target = $region44
      $region43: #{tpu_custom_call.1} parent=39 // pred_region
        %p245 = scmp.lt.s32.totalorder %s20, 1
        %s246 = scalar_select %p245, %s20, 1
        %s247 = smul.addr %s246, 54
        %s248 = smul.addr %s247, 8
        %s249 = scalar_lea.vmem %s0, %s248
      $region44: #{tpu_custom_call.1} parent=39 // pred_fallthru
        _
    $region40: #{tpu_custom_call.1} parent=5 // pred_fallthru
      _
    %p250 = scmp.le.s32.totalorder 1, %s13
    %p251 = scmp.lt.s32.totalorder %s13, 3
    %p252 = pnand %p250, %p251
    %p253 = pneg %p252
    // Predicated region
    $region45: #{tpu_custom_call.1} parent=5 // pred_check
      _
    $region46: #{tpu_custom_call.1} parent=5 // pred_check_branch
      %255 = sbr.rel (%p252) target = $region48
    $region47: #{tpu_custom_call.1} parent=5 // pred_region
      %s256 = ssub.s32 %s13, 1
      %p257 = scmp.lt.s32.totalorder %s22, 1
      %s258 = scalar_select %p257, %s22, 1
      %s259 = smul.addr %s258, 54
      %s260 = smul.addr %s259, 8
      %s261 = scalar_lea.vmem %s0, %s260
      %p262 = pneg %p51
      %p263 = pneg %p48
      %p264 = pneg %p72
      %p265 = pneg %p69
      %p266 = pneg %p93
      %p267 = pneg %p90
      %p268 = pneg %p114
      %p269 = pneg %p111
      %p270 = pneg %p135
      %p271 = pneg %p132
      %p272 = pneg %p156
      %p273 = pneg %p153
      %p274 = pneg %p177
      %p275 = pneg %p174
      %p276 = pneg %p205
      %p277 = pneg %p202
      %s278 = smul.u32 16, %s23
      %p279 = scmp.lt.s32.totalorder %s22, 1
      %s280 = scalar_select %p279, %s22, 1
      %p281 = scmp.lt.s32.totalorder %s278, 15
      %s282 = scalar_select %p281, %s278, 15
      %s283 = smul.addr %s282, 2
      %s284 = smul.addr %s280, 32
      %s285 = sadd.s32 %s283, %s284
      %s286 = smul.addr %s285, 8
      %s287 = scalar_lea.vmem %s7, %s286
      %p288 = scmp.lt.s32.totalorder %s22, 1
      %s289 = scalar_select %p288, %s22, 1
      %s290 = smul.addr %s289, 54
      %s291 = smul.addr %s290, 8
      %s292 = scalar_lea.vmem %s0, %s291
      %s293 = smul.u32 16, %s23
      %p294 = scmp.lt.s32.totalorder %s22, 1
      %s295 = scalar_select %p294, %s22, 1
      %p296 = scmp.lt.s32.totalorder %s293, 15
      %s297 = scalar_select %p296, %s293, 15
      %s298 = smul.addr %s297, 2
      %s299 = smul.addr %s295, 32
      %s300 = sadd.s32 %s298, %s299
      %s301 = smul.addr %s300, 8
      %s302 = scalar_lea.vmem %s7, %s301
      %s303 = smul.u32 16, %s23
      %s304 = smul.u32 %s23, 16
      %s305 = smul.u32 %s304, 24
      %s306 = scalar_lea.vmem %s292, %s305
      %v307 = vld [vmem:[%s306] sm:$0xff]
      %v308 = vld [vmem:[%s306 + $0x8] sm:$0xff]
      %v309 = vld [vmem:[%s306 + $0x10] sm:$0xff]
      %v310 = vld [vmem:[%s306 + $0x18] sm:$0xff]
      %v311 = vld [vmem:[%s306 + $0x20] sm:$0xff]
      %v312 = vld [vmem:[%s306 + $0x28] sm:$0xff]
      %v313 = vld [vmem:[%s306 + $0x30] sm:$0xff]
      %v314 = vld [vmem:[%s306 + $0x38] sm:$0xff]
      %v315 = vld [vmem:[%s306 + $0x40] sm:$0xff]
      %v316 = vld [vmem:[%s306 + $0x48] sm:$0xff]
      %v317 = vld [vmem:[%s306 + $0x50] sm:$0xff]
      %v318 = vld [vmem:[%s306 + $0x58] sm:$0xff]
      %v319 = vld [vmem:[%s306 + $0x60] sm:$0xff]
      %v320 = vld [vmem:[%s306 + $0x68] sm:$0xff]
      %v321 = vld [vmem:[%s306 + $0x70] sm:$0xff]
      %v322 = vld [vmem:[%s306 + $0x78] sm:$0xff]
      %v323 = vld [vmem:[%s306 + $0x80] sm:$0xff]
      %v324 = vld [vmem:[%s306 + $0x88] sm:$0xff]
      %v325 = vld [vmem:[%s306 + $0x90] sm:$0xff]
      %v326 = vld [vmem:[%s306 + $0x98] sm:$0xff]
      %v327 = vld [vmem:[%s306 + $0xa0] sm:$0xff]
      %v328 = vld [vmem:[%s306 + $0xa8] sm:$0xff]
      %v329 = vld [vmem:[%s306 + $0xb0] sm:$0xff]
      %v330 = vld [vmem:[%s306 + $0xb8] sm:$0xff]
      %v331 = vld [vmem:[%s306 + $0xc0] sm:$0xff]
      %v332 = vld [vmem:[%s306 + $0xc8] sm:$0xff]
      %v333 = vld [vmem:[%s306 + $0xd0] sm:$0xff]
      %v334 = vld [vmem:[%s306 + $0xd8] sm:$0xff]
      %v335 = vld [vmem:[%s306 + $0xe0] sm:$0xff]
      %v336 = vld [vmem:[%s306 + $0xe8] sm:$0xff]
      %v337 = vld [vmem:[%s306 + $0xf0] sm:$0xff]
      %v338 = vld [vmem:[%s306 + $0xf8] sm:$0xff]
      %v339 = vld [vmem:[%s306 + $0x100] sm:$0xff]
      %v340 = vld [vmem:[%s306 + $0x108] sm:$0xff]
      %v341 = vld [vmem:[%s306 + $0x110] sm:$0xff]
      %v342 = vld [vmem:[%s306 + $0x118] sm:$0xff]
      %v343 = vld [vmem:[%s306 + $0x120] sm:$0xff]
      %v344 = vld [vmem:[%s306 + $0x128] sm:$0xff]
      %v345 = vld [vmem:[%s306 + $0x130] sm:$0xff]
      %v346 = vld [vmem:[%s306 + $0x138] sm:$0xff]
      %v347 = vld [vmem:[%s306 + $0x140] sm:$0xff]
      %v348 = vld [vmem:[%s306 + $0x148] sm:$0xff]
      %v349 = vld [vmem:[%s306 + $0x150] sm:$0xff]
      %v350 = vld [vmem:[%s306 + $0x158] sm:$0xff]
      %v351 = vld [vmem:[%s306 + $0x160] sm:$0xff]
      %v352 = vld [vmem:[%s306 + $0x168] sm:$0xff]
      %v353 = vld [vmem:[%s306 + $0x170] sm:$0xff]
      %v354 = vld [vmem:[%s306 + $0x178] sm:$0xff]
      %v355 = vld [vmem:[%s306 + $0x180] sm:$0xff]
      %v356 = vld [vmem:[%s306 + $0x188] sm:$0xff]
      %v357 = vld [vmem:[%s306 + $0x190] sm:$0xff]
      %v358 = vld [vmem:[%s306 + $0x198] sm:$0xff]
      %v359 = vld [vmem:[%s306 + $0x1a0] sm:$0xff]
      %v360 = vld [vmem:[%s306 + $0x1a8] sm:$0xff]
      %v361 = vld [vmem:[%s1] sm:$0xff]
      %v362 = vld [vmem:[%s2] sm:$0x1]
      %v364 = vlaneseq
      %v365 = vshrl.u32 %v364, 7
      %v366 = vsub.s32 0, %v365
      %v367 = vrot.slane %v362, %v366
      %vm369 = vcmask 64512
      %v371 = vsel %vm369, %v307, 0
      %v374 = vsel %vm369, %v308, 0
      %v377 = vsel %vm369, %v309, 0
      %v380 = vsel %vm369, %v310, 0
      %v383 = vsel %vm369, %v311, 0
      %v386 = vsel %vm369, %v312, 0
      %v389 = vsel %vm369, %v313, 0
      %v392 = vsel %vm369, %v314, 0
      %v395 = vsel %vm369, %v315, 0
      %v398 = vsel %vm369, %v316, 0
      %v401 = vsel %vm369, %v317, 0
      %v404 = vsel %vm369, %v318, 0
      %v407 = vsel %vm369, %v319, 0
      %v410 = vsel %vm369, %v320, 0
      %v413 = vsel %vm369, %v321, 0
      %v416 = vsel %vm369, %v322, 0
      %v419 = vsel %vm369, %v323, 0
      %v422 = vsel %vm369, %v324, 0
      %v425 = vsel %vm369, %v325, 0
      %v428 = vsel %vm369, %v326, 0
      %v431 = vsel %vm369, %v327, 0
      %v434 = vsel %vm369, %v328, 0
      %v437 = vsel %vm369, %v329, 0
      %v440 = vsel %vm369, %v330, 0
      %v443 = vsel %vm369, %v331, 0
      %v446 = vsel %vm369, %v332, 0
      %v449 = vsel %vm369, %v333, 0
      %v452 = vsel %vm369, %v334, 0
      %v455 = vsel %vm369, %v335, 0
      %v458 = vsel %vm369, %v336, 0
      %v461 = vsel %vm369, %v337, 0
      %v464 = vsel %vm369, %v338, 0
      %v467 = vsel %vm369, %v339, 0
      %v470 = vsel %vm369, %v340, 0
      %v473 = vsel %vm369, %v341, 0
      %v476 = vsel %vm369, %v342, 0
      %v479 = vsel %vm369, %v343, 0
      %v482 = vsel %vm369, %v344, 0
      %v485 = vsel %vm369, %v345, 0
      %v488 = vsel %vm369, %v346, 0
      %v491 = vsel %vm369, %v347, 0
      %v494 = vsel %vm369, %v348, 0
      %v497 = vsel %vm369, %v349, 0
      %v500 = vsel %vm369, %v350, 0
      %v503 = vsel %vm369, %v351, 0
      %v506 = vsel %vm369, %v352, 0
      %v509 = vsel %vm369, %v353, 0
      %v512 = vsel %vm369, %v354, 0
      %v515 = vsel %vm369, %v355, 0
      %v518 = vsel %vm369, %v356, 0
      %v521 = vsel %vm369, %v357, 0
      %v524 = vsel %vm369, %v358, 0
      %v527 = vsel %vm369, %v359, 0
      %v530 = vsel %vm369, %v360, 0
      %532 = vmatprep.subr.mxu0 0.0
      %533 = vmatpush1.msra.mxu0 %v361
      %534 = vmatprep.subr.mxu0 0.0
      %535 = vmatpush1.msra.mxu0 0.0
      %536 = vmatprep.subr.mxu0 0.0
      %537 = vmatpush1.msra.mxu0 0.0
      %538 = vmatprep.subr.mxu0 0.0
      %539 = vmatpush1.msra.mxu0 0.0
      %540 = vmatprep.subr.mxu0 0.0
      %541 = vmatpush1.msra.mxu0 0.0
      %542 = vmatprep.subr.mxu0 0.0
      %543 = vmatpush1.msra.mxu0 0.0
      %544 = vmatprep.subr.mxu0 0.0
      %545 = vmatpush1.msra.mxu0 0.0
      %546 = vmatprep.subr.mxu0 0.0
      %547 = vmatpush1.msra.mxu0 0.0
      %548 = vmatprep.subr.mxu0 0.0
      %549 = vmatpush1.msra.mxu0 0.0
      %550 = vmatprep.subr.mxu0 0.0
      %551 = vmatpush1.msra.mxu0 0.0
      %552 = vmatprep.subr.mxu0 0.0
      %553 = vmatpush1.msra.mxu0 0.0
      %554 = vmatprep.subr.mxu0 0.0
      %555 = vmatpush1.msra.mxu0 0.0
      %556 = vmatprep.subr.mxu0 0.0
      %557 = vmatpush1.msra.mxu0 0.0
      %558 = vmatprep.subr.mxu0 0.0
      %559 = vmatpush1.msra.mxu0 0.0
      %560 = vmatprep.subr.mxu0 0.0
      %561 = vmatpush1.msra.mxu0 0.0
      %562 = vmatprep.subr.mxu0 0.0
      %563 = vmatpush1.msra.mxu0 0.0
      %564 = vmatprep.subr.mxu0 0.0
      %565 = vmatpush1.msra.mxu0 0.0
      %566 = vmatprep.subr.mxu0 0.0
      %567 = vmatpush1.msra.mxu0 0.0
      %568 = vmatprep.subr.mxu0 0.0
      %569 = vmatpush1.msra.mxu0 0.0
      %570 = vmatprep.subr.mxu0 0.0
      %571 = vmatpush1.msra.mxu0 0.0
      %572 = vmatprep.subr.mxu0 0.0
      %573 = vmatpush1.msra.mxu0 0.0
      %574 = vmatprep.subr.mxu0 0.0
      %575 = vmatpush1.msra.mxu0 0.0
      %576 = vmatprep.subr.mxu0 0.0
      %577 = vmatpush1.msra.mxu0 0.0
      %578 = vmatprep.subr.mxu0 0.0
      %579 = vmatpush1.msra.mxu0 0.0
      %580 = vmatprep.subr.mxu0 0.0
      %581 = vmatpush1.msra.mxu0 0.0
      %582 = vmatprep.subr.mxu0 0.0
      %583 = vmatpush1.msra.mxu0 0.0
      %584 = vmatprep.subr.mxu0 0.0
      %585 = vmatpush1.msra.mxu0 0.0
      %586 = vmatprep.subr.mxu0 0.0
      %587 = vmatpush1.msra.mxu0 0.0
      %588 = vmatprep.subr.mxu0 0.0
      %589 = vmatpush1.msra.mxu0 0.0
      %590 = vmatprep.subr.mxu0 0.0
      %591 = vmatpush1.msra.mxu0 0.0
      %592 = vmatprep.subr.mxu0 0.0
      %593 = vmatpush1.msra.mxu0 0.0
      %594 = vmatprep.subr.mxu0 0.0
      %595 = vmatpush1.msra.mxu0 0.0
      %596 = vmatprep.mubr.f32.mxu0 0.0
      %597 = vmatmul.mubr.f32.gmra.mrb[0].mxu0 %v371
      %v598 = vpop.f32.mrb[0].mxu0
      %v599 = vadd.f32 %v367, %v598
      %v600 = vpop.f32.mrb[0].mxu0
      %601 = vmatprep.mubr.f32.mxu0 0.0
      %602 = vmatmul.mubr.f32.gmra.mrb[0].mxu0 %v374
      %v603 = vpop.f32.mrb[0].mxu0
      %v604 = vadd.f32 %v367, %v603
      %v605 = vpop.f32.mrb[0].mxu0
      %606 = vmatprep.mubr.f32.mxu0 0.0
      %607 = vmatmul.mubr.f32.gmra.mrb[0].mxu0 %v377
      %v608 = vpop.f32.mrb[0].mxu0
      %v609 = vadd.f32 %v367, %v608
      %v610 = vpop.f32.mrb[0].mxu0
      %611 = vmatprep.mubr.f32.mxu0 0.0
      %612 = vmatmul.mubr.f32.gmra.mrb[0].mxu0 %v380
      %v613 = vpop.f32.mrb[0].mxu0
      %v614 = vadd.f32 %v367, %v613
      %v615 = vpop.f32.mrb[0].mxu0
      %616 = vmatprep.mubr.f32.mxu0 0.0
      %617 = vmatmul.mubr.f32.gmra.mrb[0].mxu0 %v383
      %v618 = vpop.f32.mrb[0].mxu0
      %v619 = vadd.f32 %v367, %v618
      %v620 = vpop.f32.mrb[0].mxu0
      %621 = vmatprep.mubr.f32.mxu0 0.0
      %622 = vmatmul.mubr.f32.gmra.mrb[0].mxu0 %v386
      %v623 = vpop.f32.mrb[0].mxu0
      %v624 = vadd.f32 %v367, %v623
      %v625 = vpop.f32.mrb[0].mxu0
      %626 = vmatprep.mubr.f32.mxu0 0.0
      %627 = vmatmul.mubr.f32.gmra.mrb[0].mxu0 %v389
      %v628 = vpop.f32.mrb[0].mxu0
      %v629 = vadd.f32 %v367, %v628
      %v630 = vpop.f32.mrb[0].mxu0
      %631 = vmatprep.mubr.f32.mxu0 0.0
      %632 = vmatmul.mubr.f32.gmra.mrb[0].mxu0 %v392
      %v633 = vpop.f32.mrb[0].mxu0
      %v634 = vadd.f32 %v367, %v633
      %v635 = vpop.f32.mrb[0].mxu0
      %636 = vmatprep.mubr.f32.mxu0 0.0
      %637 = vmatmul.mubr.f32.gmra.mrb[0].mxu0 %v395
      %v638 = vpop.f32.mrb[0].mxu0
      %v639 = vadd.f32 %v367, %v638
      %v640 = vpop.f32.mrb[0].mxu0
      %641 = vmatprep.mubr.f32.mxu0 0.0
      %642 = vmatmul.mubr.f32.gmra.mrb[0].mxu0 %v398
      %v643 = vpop.f32.mrb[0].mxu0
      %v644 = vadd.f32 %v367, %v643
      %v645 = vpop.f32.mrb[0].mxu0
      %646 = vmatprep.mubr.f32.mxu0 0.0
      %647 = vmatmul.mubr.f32.gmra.mrb[0].mxu0 %v401
      %v648 = vpop.f32.mrb[0].mxu0
      %v649 = vadd.f32 %v367, %v648
      %v650 = vpop.f32.mrb[0].mxu0
      %651 = vmatprep.mubr.f32.mxu0 0.0
      %652 = vmatmul.mubr.f32.gmra.mrb[0].mxu0 %v404
      %v653 = vpop.f32.mrb[0].mxu0
      %v654 = vadd.f32 %v367, %v653
      %v655 = vpop.f32.mrb[0].mxu0
      %656 = vmatprep.mubr.f32.mxu0 0.0
      %657 = vmatmul.mubr.f32.gmra.mrb[0].mxu0 %v407
      %v658 = vpop.f32.mrb[0].mxu0
      %v659 = vadd.f32 %v367, %v658
      %v660 = vpop.f32.mrb[0].mxu0
      %661 = vmatprep.mubr.f32.mxu0 0.0
      %662 = vmatmul.mubr.f32.gmra.mrb[0].mxu0 %v410
      %v663 = vpop.f32.mrb[0].mxu0
      %v664 = vadd.f32 %v367, %v663
      %v665 = vpop.f32.mrb[0].mxu0
      %666 = vmatprep.mubr.f32.mxu0 0.0
      %667 = vmatmul.mubr.f32.gmra.mrb[0].mxu0 %v413
      %v668 = vpop.f32.mrb[0].mxu0
      %v669 = vadd.f32 %v367, %v668
      %v670 = vpop.f32.mrb[0].mxu0
      %671 = vmatprep.mubr.f32.mxu0 0.0
      %672 = vmatmul.mubr.f32.gmra.mrb[0].mxu0 %v416
      %v673 = vpop.f32.mrb[0].mxu0
      %v674 = vadd.f32 %v367, %v673
      %v675 = vpop.f32.mrb[0].mxu0
      %676 = vmatprep.mubr.f32.mxu0 0.0
      %677 = vmatmul.mubr.f32.gmra.mrb[0].mxu0 %v419
      %v678 = vpop.f32.mrb[0].mxu0
      %v679 = vadd.f32 %v367, %v678
      %v680 = vpop.f32.mrb[0].mxu0
      %681 = vmatprep.mubr.f32.mxu0 0.0
      %682 = vmatmul.mubr.f32.gmra.mrb[0].mxu0 %v422
      %v683 = vpop.f32.mrb[0].mxu0
      %v684 = vadd.f32 %v367, %v683
      %v685 = vpop.f32.mrb[0].mxu0
      %686 = vmatprep.mubr.f32.mxu0 0.0
      %687 = vmatmul.mubr.f32.gmra.mrb[0].mxu0 %v425
      %v688 = vpop.f32.mrb[0].mxu0
      %v689 = vadd.f32 %v367, %v688
      %v690 = vpop.f32.mrb[0].mxu0
      %691 = vmatprep.mubr.f32.mxu0 0.0
      %692 = vmatmul.mubr.f32.gmra.mrb[0].mxu0 %v428
      %v693 = vpop.f32.mrb[0].mxu0
      %v694 = vadd.f32 %v367, %v693
      %v695 = vpop.f32.mrb[0].mxu0
      %696 = vmatprep.mubr.f32.mxu0 0.0
      %697 = vmatmul.mubr.f32.gmra.mrb[0].mxu0 %v431
      %v698 = vpop.f32.mrb[0].mxu0
      %v699 = vadd.f32 %v367, %v698
      %v700 = vpop.f32.mrb[0].mxu0
      %701 = vmatprep.mubr.f32.mxu0 0.0
      %702 = vmatmul.mubr.f32.gmra.mrb[0].mxu0 %v434
      %v703 = vpop.f32.mrb[0].mxu0
      %v704 = vadd.f32 %v367, %v703
      %v705 = vpop.f32.mrb[0].mxu0
      %706 = vmatprep.mubr.f32.mxu0 0.0
      %707 = vmatmul.mubr.f32.gmra.mrb[0].mxu0 %v437
      %v708 = vpop.f32.mrb[0].mxu0
      %v709 = vadd.f32 %v367, %v708
      %v710 = vpop.f32.mrb[0].mxu0
      %711 = vmatprep.mubr.f32.mxu0 0.0
      %712 = vmatmul.mubr.f32.gmra.mrb[0].mxu0 %v440
      %v713 = vpop.f32.mrb[0].mxu0
      %v714 = vadd.f32 %v367, %v713
      %v715 = vpop.f32.mrb[0].mxu0
      %716 = vmatprep.mubr.f32.mxu0 0.0
      %717 = vmatmul.mubr.f32.gmra.mrb[0].mxu0 %v443
      %v718 = vpop.f32.mrb[0].mxu0
      %v719 = vadd.f32 %v367, %v718
      %v720 = vpop.f32.mrb[0].mxu0
      %721 = vmatprep.mubr.f32.mxu0 0.0
      %722 = vmatmul.mubr.f32.gmra.mrb[0].mxu0 %v446
      %v723 = vpop.f32.mrb[0].mxu0
      %v724 = vadd.f32 %v367, %v723
      %v725 = vpop.f32.mrb[0].mxu0
      %726 = vmatprep.mubr.f32.mxu0 0.0
      %727 = vmatmul.mubr.f32.gmra.mrb[0].mxu0 %v449
      %v728 = vpop.f32.mrb[0].mxu0
      %v729 = vadd.f32 %v367, %v728
      %v730 = vpop.f32.mrb[0].mxu0
      %731 = vmatprep.mubr.f32.mxu0 0.0
      %732 = vmatmul.mubr.f32.gmra.mrb[0].mxu0 %v452
      %v733 = vpop.f32.mrb[0].mxu0
      %v734 = vadd.f32 %v367, %v733
      %v735 = vpop.f32.mrb[0].mxu0
      %736 = vmatprep.mubr.f32.mxu0 0.0
      %737 = vmatmul.mubr.f32.gmra.mrb[0].mxu0 %v455
      %v738 = vpop.f32.mrb[0].mxu0
      %v739 = vadd.f32 %v367, %v738
      %v740 = vpop.f32.mrb[0].mxu0
      %741 = vmatprep.mubr.f32.mxu0 0.0
      %742 = vmatmul.mubr.f32.gmra.mrb[0].mxu0 %v458
      %v743 = vpop.f32.mrb[0].mxu0
      %v744 = vadd.f32 %v367, %v743
      %v745 = vpop.f32.mrb[0].mxu0
      %746 = vmatprep.mubr.f32.mxu0 0.0
      %747 = vmatmul.mubr.f32.gmra.mrb[0].mxu0 %v461
      %v748 = vpop.f32.mrb[0].mxu0
      %v749 = vadd.f32 %v367, %v748
      %v750 = vpop.f32.mrb[0].mxu0
      %751 = vmatprep.mubr.f32.mxu0 0.0
      %752 = vmatmul.mubr.f32.gmra.mrb[0].mxu0 %v464
      %v753 = vpop.f32.mrb[0].mxu0
      %v754 = vadd.f32 %v367, %v753
      %v755 = vpop.f32.mrb[0].mxu0
      %756 = vmatprep.mubr.f32.mxu0 0.0
      %757 = vmatmul.mubr.f32.gmra.mrb[0].mxu0 %v467
      %v758 = vpop.f32.mrb[0].mxu0
      %v759 = vadd.f32 %v367, %v758
      %v760 = vpop.f32.mrb[0].mxu0
      %761 = vmatprep.mubr.f32.mxu0 0.0
      %762 = vmatmul.mubr.f32.gmra.mrb[0].mxu0 %v470
      %v763 = vpop.f32.mrb[0].mxu0
      %v764 = vadd.f32 %v367, %v763
      %v765 = vpop.f32.mrb[0].mxu0
      %766 = vmatprep.mubr.f32.mxu0 0.0
      %767 = vmatmul.mubr.f32.gmra.mrb[0].mxu0 %v473
      %v768 = vpop.f32.mrb[0].mxu0
      %v769 = vadd.f32 %v367, %v768
      %v770 = vpop.f32.mrb[0].mxu0
      %771 = vmatprep.mubr.f32.mxu0 0.0
      %772 = vmatmul.mubr.f32.gmra.mrb[0].mxu0 %v476
      %v773 = vpop.f32.mrb[0].mxu0
      %v774 = vadd.f32 %v367, %v773
      %v775 = vpop.f32.mrb[0].mxu0
      %776 = vmatprep.mubr.f32.mxu0 0.0
      %777 = vmatmul.mubr.f32.gmra.mrb[0].mxu0 %v479
      %v778 = vpop.f32.mrb[0].mxu0
      %v779 = vadd.f32 %v367, %v778
      %v780 = vpop.f32.mrb[0].mxu0
      %781 = vmatprep.mubr.f32.mxu0 0.0
      %782 = vmatmul.mubr.f32.gmra.mrb[0].mxu0 %v482
      %v783 = vpop.f32.mrb[0].mxu0
      %v784 = vadd.f32 %v367, %v783
      %v785 = vpop.f32.mrb[0].mxu0
      %786 = vmatprep.mubr.f32.mxu0 0.0
      %787 = vmatmul.mubr.f32.gmra.mrb[0].mxu0 %v485
      %v788 = vpop.f32.mrb[0].mxu0
      %v789 = vadd.f32 %v367, %v788
      %v790 = vpop.f32.mrb[0].mxu0
      %791 = vmatprep.mubr.f32.mxu0 0.0
      %792 = vmatmul.mubr.f32.gmra.mrb[0].mxu0 %v488
      %v793 = vpop.f32.mrb[0].mxu0
      %v794 = vadd.f32 %v367, %v793
      %v795 = vpop.f32.mrb[0].mxu0
      %796 = vmatprep.mubr.f32.mxu0 0.0
      %797 = vmatmul.mubr.f32.gmra.mrb[0].mxu0 %v491
      %v798 = vpop.f32.mrb[0].mxu0
      %v799 = vadd.f32 %v367, %v798
      %v800 = vpop.f32.mrb[0].mxu0
      %801 = vmatprep.mubr.f32.mxu0 0.0
      %802 = vmatmul.mubr.f32.gmra.mrb[0].mxu0 %v494
      %v803 = vpop.f32.mrb[0].mxu0
      %v804 = vadd.f32 %v367, %v803
      %v805 = vpop.f32.mrb[0].mxu0
      %806 = vmatprep.mubr.f32.mxu0 0.0
      %807 = vmatmul.mubr.f32.gmra.mrb[0].mxu0 %v497
      %v808 = vpop.f32.mrb[0].mxu0
      %v809 = vadd.f32 %v367, %v808
      %v810 = vpop.f32.mrb[0].mxu0
      %811 = vmatprep.mubr.f32.mxu0 0.0
      %812 = vmatmul.mubr.f32.gmra.mrb[0].mxu0 %v500
      %v813 = vpop.f32.mrb[0].mxu0
      %v814 = vadd.f32 %v367, %v813
      %v815 = vpop.f32.mrb[0].mxu0
      %816 = vmatprep.mubr.f32.mxu0 0.0
      %817 = vmatmul.mubr.f32.gmra.mrb[0].mxu0 %v503
      %v818 = vpop.f32.mrb[0].mxu0
      %v819 = vadd.f32 %v367, %v818
      %v820 = vpop.f32.mrb[0].mxu0
      %821 = vmatprep.mubr.f32.mxu0 0.0
      %822 = vmatmul.mubr.f32.gmra.mrb[0].mxu0 %v506
      %v823 = vpop.f32.mrb[0].mxu0
      %v824 = vadd.f32 %v367, %v823
      %v825 = vpop.f32.mrb[0].mxu0
      %826 = vmatprep.mubr.f32.mxu0 0.0
      %827 = vmatmul.mubr.f32.gmra.mrb[0].mxu0 %v509
      %v828 = vpop.f32.mrb[0].mxu0
      %v829 = vadd.f32 %v367, %v828
      %v830 = vpop.f32.mrb[0].mxu0
      %831 = vmatprep.mubr.f32.mxu0 0.0
      %832 = vmatmul.mubr.f32.gmra.mrb[0].mxu0 %v512
      %v833 = vpop.f32.mrb[0].mxu0
      %v834 = vadd.f32 %v367, %v833
      %v835 = vpop.f32.mrb[0].mxu0
      %836 = vmatprep.mubr.f32.mxu0 0.0
      %837 = vmatmul.mubr.f32.gmra.mrb[0].mxu0 %v515
      %v838 = vpop.f32.mrb[0].mxu0
      %v839 = vadd.f32 %v367, %v838
      %v840 = vpop.f32.mrb[0].mxu0
      %841 = vmatprep.mubr.f32.mxu0 0.0
      %842 = vmatmul.mubr.f32.gmra.mrb[0].mxu0 %v518
      %v843 = vpop.f32.mrb[0].mxu0
      %v844 = vadd.f32 %v367, %v843
      %v845 = vpop.f32.mrb[0].mxu0
      %846 = vmatprep.mubr.f32.mxu0 0.0
      %847 = vmatmul.mubr.f32.gmra.mrb[0].mxu0 %v521
      %v848 = vpop.f32.mrb[0].mxu0
      %v849 = vadd.f32 %v367, %v848
      %v850 = vpop.f32.mrb[0].mxu0
      %851 = vmatprep.mubr.f32.mxu0 0.0
      %852 = vmatmul.mubr.f32.gmra.mrb[0].mxu0 %v524
      %v853 = vpop.f32.mrb[0].mxu0
      %v854 = vadd.f32 %v367, %v853
      %v855 = vpop.f32.mrb[0].mxu0
      %856 = vmatprep.mubr.f32.mxu0 0.0
      %857 = vmatmul.mubr.f32.gmra.mrb[0].mxu0 %v527
      %v858 = vpop.f32.mrb[0].mxu0
      %v859 = vadd.f32 %v367, %v858
      %v860 = vpop.f32.mrb[0].mxu0
      %861 = vmatprep.mubr.f32.mxu0 0.0
      %862 = vmatmul.mubr.f32.gmra.mrb[0].mxu0 %v530
      %v863 = vpop.f32.mrb[0].mxu0
      %v864 = vadd.f32 %v367, %v863
      %v865 = vpop.f32.mrb[0].mxu0
      %866 = vdwg.mxu0
      %v867 = vmax.f32 %v599, 0.0
      %v868 = vmax.f32 %v604, 0.0
      %v869 = vmax.f32 %v609, 0.0
      %v870 = vmax.f32 %v614, 0.0
      %v871 = vmax.f32 %v619, 0.0
      %v872 = vmax.f32 %v624, 0.0
      %v873 = vmax.f32 %v629, 0.0
      %v874 = vmax.f32 %v634, 0.0
      %v875 = vmax.f32 %v639, 0.0
      %v876 = vmax.f32 %v644, 0.0
      %v877 = vmax.f32 %v649, 0.0
      %v878 = vmax.f32 %v654, 0.0
      %v879 = vmax.f32 %v659, 0.0
      %v880 = vmax.f32 %v664, 0.0
      %v881 = vmax.f32 %v669, 0.0
      %v882 = vmax.f32 %v674, 0.0
      %v883 = vmax.f32 %v679, 0.0
      %v884 = vmax.f32 %v684, 0.0
      %v885 = vmax.f32 %v689, 0.0
      %v886 = vmax.f32 %v694, 0.0
      %v887 = vmax.f32 %v699, 0.0
      %v888 = vmax.f32 %v704, 0.0
      %v889 = vmax.f32 %v709, 0.0
      %v890 = vmax.f32 %v714, 0.0
      %v891 = vmax.f32 %v719, 0.0
      %v892 = vmax.f32 %v724, 0.0
      %v893 = vmax.f32 %v729, 0.0
      %v894 = vmax.f32 %v734, 0.0
      %v895 = vmax.f32 %v739, 0.0
      %v896 = vmax.f32 %v744, 0.0
      %v897 = vmax.f32 %v749, 0.0
      %v898 = vmax.f32 %v754, 0.0
      %v899 = vmax.f32 %v759, 0.0
      %v900 = vmax.f32 %v764, 0.0
      %v901 = vmax.f32 %v769, 0.0
      %v902 = vmax.f32 %v774, 0.0
      %v903 = vmax.f32 %v779, 0.0
      %v904 = vmax.f32 %v784, 0.0
      %v905 = vmax.f32 %v789, 0.0
      %v906 = vmax.f32 %v794, 0.0
      %v907 = vmax.f32 %v799, 0.0
      %v908 = vmax.f32 %v804, 0.0
      %v909 = vmax.f32 %v809, 0.0
      %v910 = vmax.f32 %v814, 0.0
      %v911 = vmax.f32 %v819, 0.0
      %v912 = vmax.f32 %v824, 0.0
      %v913 = vmax.f32 %v829, 0.0
      %v914 = vmax.f32 %v834, 0.0
      %v915 = vmax.f32 %v839, 0.0
      %v916 = vmax.f32 %v844, 0.0
      %v917 = vmax.f32 %v849, 0.0
      %v918 = vmax.f32 %v854, 0.0
      %v919 = vmax.f32 %v859, 0.0
      %v920 = vmax.f32 %v864, 0.0
      %v921 = vmin.f32 %v867, 6.0
      %v922 = vmin.f32 %v868, 6.0
      %v923 = vmin.f32 %v869, 6.0
      %v924 = vmin.f32 %v870, 6.0
      %v925 = vmin.f32 %v871, 6.0
      %v926 = vmin.f32 %v872, 6.0
      %v927 = vmin.f32 %v873, 6.0
      %v928 = vmin.f32 %v874, 6.0
      %v929 = vmin.f32 %v875, 6.0
      %v930 = vmin.f32 %v876, 6.0
      %v931 = vmin.f32 %v877, 6.0
      %v932 = vmin.f32 %v878, 6.0
      %v933 = vmin.f32 %v879, 6.0
      %v934 = vmin.f32 %v880, 6.0
      %v935 = vmin.f32 %v881, 6.0
      %v936 = vmin.f32 %v882, 6.0
      %v937 = vmin.f32 %v883, 6.0
      %v938 = vmin.f32 %v884, 6.0
      %v939 = vmin.f32 %v885, 6.0
      %v940 = vmin.f32 %v886, 6.0
      %v941 = vmin.f32 %v887, 6.0
      %v942 = vmin.f32 %v888, 6.0
      %v943 = vmin.f32 %v889, 6.0
      %v944 = vmin.f32 %v890, 6.0
      %v945 = vmin.f32 %v891, 6.0
      %v946 = vmin.f32 %v892, 6.0
      %v947 = vmin.f32 %v893, 6.0
      %v948 = vmin.f32 %v894, 6.0
      %v949 = vmin.f32 %v895, 6.0
      %v950 = vmin.f32 %v896, 6.0
      %v951 = vmin.f32 %v897, 6.0
      %v952 = vmin.f32 %v898, 6.0
      %v953 = vmin.f32 %v899, 6.0
      %v954 = vmin.f32 %v900, 6.0
      %v955 = vmin.f32 %v901, 6.0
      %v956 = vmin.f32 %v902, 6.0
      %v957 = vmin.f32 %v903, 6.0
      %v958 = vmin.f32 %v904, 6.0
      %v959 = vmin.f32 %v905, 6.0
      %v960 = vmin.f32 %v906, 6.0
      %v961 = vmin.f32 %v907, 6.0
      %v962 = vmin.f32 %v908, 6.0
      %v963 = vmin.f32 %v909, 6.0
      %v964 = vmin.f32 %v910, 6.0
      %v965 = vmin.f32 %v911, 6.0
      %v966 = vmin.f32 %v912, 6.0
      %v967 = vmin.f32 %v913, 6.0
      %v968 = vmin.f32 %v914, 6.0
      %v969 = vmin.f32 %v915, 6.0
      %v970 = vmin.f32 %v916, 6.0
      %v971 = vmin.f32 %v917, 6.0
      %v972 = vmin.f32 %v918, 6.0
      %v973 = vmin.f32 %v919, 6.0
      %v974 = vmin.f32 %v920, 6.0
      %v975 = vstv %s304
      %v976 = vadd.s32 %v975, 1
      %v977 = vadd.s32 %v975, 2
      %v978 = vadd.s32 %v975, 3
      %v979 = vadd.s32 %v975, 4
      %v980 = vadd.s32 %v975, 5
      %v981 = vadd.s32 %v975, 6
      %v982 = vadd.s32 %v975, 7
      %v983 = vadd.s32 %v975, 8
      %v984 = vadd.s32 %v975, 9
      %v985 = vadd.s32 %v975, 10
      %v986 = vadd.s32 %v975, 11
      %v987 = vadd.s32 %v975, 12
      %v988 = vadd.s32 %v975, 13
      %v989 = vadd.s32 %v975, 14
      %v990 = vadd.s32 %v975, 15
      %v991 = vadd.s32 %v975, 16
      %v992 = vadd.s32 %v975, 17
      %v993 = vlaneseq
      %v994 = vshrl.u32 %v993, 7
      %v995 = vadd.s32 %v994, 8
      %v996 = vadd.s32 %v994, 16
      %vm997 = vcmp.ge.s32.totalorder %v975, 1
      %vm998 = vcmp.ge.s32.totalorder %v976, 1
      %vm999 = vcmp.ge.s32.totalorder %v977, 1
      %vm1000 = vcmp.ge.s32.totalorder %v978, 1
      %vm1001 = vcmp.ge.s32.totalorder %v979, 1
      %vm1002 = vcmp.ge.s32.totalorder %v980, 1
      %vm1003 = vcmp.ge.s32.totalorder %v981, 1
      %vm1004 = vcmp.ge.s32.totalorder %v982, 1
      %vm1005 = vcmp.ge.s32.totalorder %v983, 1
      %vm1006 = vcmp.ge.s32.totalorder %v984, 1
      %vm1007 = vcmp.ge.s32.totalorder %v985, 1
      %vm1008 = vcmp.ge.s32.totalorder %v986, 1
      %vm1009 = vcmp.ge.s32.totalorder %v987, 1
      %vm1010 = vcmp.ge.s32.totalorder %v988, 1
      %vm1011 = vcmp.ge.s32.totalorder %v989, 1
      %vm1012 = vcmp.ge.s32.totalorder %v990, 1
      %vm1013 = vcmp.ge.s32.totalorder %v991, 1
      %vm1014 = vcmp.ge.s32.totalorder %v992, 1
      %vm1015 = vcmp.le.s32.totalorder %v975, 16
      %vm1016 = vcmp.le.s32.totalorder %v976, 16
      %vm1017 = vcmp.le.s32.totalorder %v977, 16
      %vm1018 = vcmp.le.s32.totalorder %v978, 16
      %vm1019 = vcmp.le.s32.totalorder %v979, 16
      %vm1020 = vcmp.le.s32.totalorder %v980, 16
      %vm1021 = vcmp.le.s32.totalorder %v981, 16
      %vm1022 = vcmp.le.s32.totalorder %v982, 16
      %vm1023 = vcmp.le.s32.totalorder %v983, 16
      %vm1024 = vcmp.le.s32.totalorder %v984, 16
      %vm1025 = vcmp.le.s32.totalorder %v985, 16
      %vm1026 = vcmp.le.s32.totalorder %v986, 16
      %vm1027 = vcmp.le.s32.totalorder %v987, 16
      %vm1028 = vcmp.le.s32.totalorder %v988, 16
      %vm1029 = vcmp.le.s32.totalorder %v989, 16
      %vm1030 = vcmp.le.s32.totalorder %v990, 16
      %vm1031 = vcmp.le.s32.totalorder %v991, 16
      %vm1032 = vcmp.le.s32.totalorder %v992, 16
      %vm1033 = vmand %vm997, %vm1015
      %vm1034 = vmand %vm998, %vm1016
      %vm1035 = vmand %vm999, %vm1017
      %vm1036 = vmand %vm1000, %vm1018
      %vm1037 = vmand %vm1001, %vm1019
      %vm1038 = vmand %vm1002, %vm1020
      %vm1039 = vmand %vm1003, %vm1021
      %vm1040 = vmand %vm1004, %vm1022
      %vm1041 = vmand %vm1005, %vm1023
      %vm1042 = vmand %vm1006, %vm1024
      %vm1043 = vmand %vm1007, %vm1025
      %vm1044 = vmand %vm1008, %vm1026
      %vm1045 = vmand %vm1009, %vm1027
      %vm1046 = vmand %vm1010, %vm1028
      %vm1047 = vmand %vm1011, %vm1029
      %vm1048 = vmand %vm1012, %vm1030
      %vm1049 = vmand %vm1013, %vm1031
      %vm1050 = vmand %vm1014, %vm1032
      %vm1051 = vcmp.ge.s32.totalorder %v994, 1
      %vm1052 = vcmp.ge.s32.totalorder %v995, 1
      %vm1053 = vcmp.ge.s32.totalorder %v996, 1
      %vm1054 = vmand %vm1033, %vm1051
      %vm1055 = vmand %vm1033, %vm1052
      %vm1056 = vmand %vm1033, %vm1053
      %vm1057 = vmand %vm1034, %vm1051
      %vm1058 = vmand %vm1034, %vm1052
      %vm1059 = vmand %vm1034, %vm1053
      %vm1060 = vmand %vm1035, %vm1051
      %vm1061 = vmand %vm1035, %vm1052
      %vm1062 = vmand %vm1035, %vm1053
      %vm1063 = vmand %vm1036, %vm1051
      %vm1064 = vmand %vm1036, %vm1052
      %vm1065 = vmand %vm1036, %vm1053
      %vm1066 = vmand %vm1037, %vm1051
      %vm1067 = vmand %vm1037, %vm1052
      %vm1068 = vmand %vm1037, %vm1053
      %vm1069 = vmand %vm1038, %vm1051
      %vm1070 = vmand %vm1038, %vm1052
      %vm1071 = vmand %vm1038, %vm1053
      %vm1072 = vmand %vm1039, %vm1051
      %vm1073 = vmand %vm1039, %vm1052
      %vm1074 = vmand %vm1039, %vm1053
      %vm1075 = vmand %vm1040, %vm1051
      %vm1076 = vmand %vm1040, %vm1052
      %vm1077 = vmand %vm1040, %vm1053
      %vm1078 = vmand %vm1041, %vm1051
      %vm1079 = vmand %vm1041, %vm1052
      %vm1080 = vmand %vm1041, %vm1053
      %vm1081 = vmand %vm1042, %vm1051
      %vm1082 = vmand %vm1042, %vm1052
      %vm1083 = vmand %vm1042, %vm1053
      %vm1084 = vmand %vm1043, %vm1051
      %vm1085 = vmand %vm1043, %vm1052
      %vm1086 = vmand %vm1043, %vm1053
      %vm1087 = vmand %vm1044, %vm1051
      %vm1088 = vmand %vm1044, %vm1052
      %vm1089 = vmand %vm1044, %vm1053
      %vm1090 = vmand %vm1045, %vm1051
      %vm1091 = vmand %vm1045, %vm1052
      %vm1092 = vmand %vm1045, %vm1053
      %vm1093 = vmand %vm1046, %vm1051
      %vm1094 = vmand %vm1046, %vm1052
      %vm1095 = vmand %vm1046, %vm1053
      %vm1096 = vmand %vm1047, %vm1051
      %vm1097 = vmand %vm1047, %vm1052
      %vm1098 = vmand %vm1047, %vm1053
      %vm1099 = vmand %vm1048, %vm1051
      %vm1100 = vmand %vm1048, %vm1052
      %vm1101 = vmand %vm1048, %vm1053
      %vm1102 = vmand %vm1049, %vm1051
      %vm1103 = vmand %vm1049, %vm1052
      %vm1104 = vmand %vm1049, %vm1053
      %vm1105 = vmand %vm1050, %vm1051
      %vm1106 = vmand %vm1050, %vm1052
      %vm1107 = vmand %vm1050, %vm1053
      %vm1108 = vcmp.le.s32.totalorder %v994, 16
      %vm1109 = vcmp.le.s32.totalorder %v995, 16
      %vm1110 = vcmp.le.s32.totalorder %v996, 16
      %vm1111 = vmand %vm1054, %vm1108
      %vm1112 = vmand %vm1055, %vm1109
      %vm1113 = vmand %vm1056, %vm1110
      %vm1114 = vmand %vm1057, %vm1108
      %vm1115 = vmand %vm1058, %vm1109
      %vm1116 = vmand %vm1059, %vm1110
      %vm1117 = vmand %vm1060, %vm1108
      %vm1118 = vmand %vm1061, %vm1109
      %vm1119 = vmand %vm1062, %vm1110
      %vm1120 = vmand %vm1063, %vm1108
      %vm1121 = vmand %vm1064, %vm1109
      %vm1122 = vmand %vm1065, %vm1110
      %vm1123 = vmand %vm1066, %vm1108
      %vm1124 = vmand %vm1067, %vm1109
      %vm1125 = vmand %vm1068, %vm1110
      %vm1126 = vmand %vm1069, %vm1108
      %vm1127 = vmand %vm1070, %vm1109
      %vm1128 = vmand %vm1071, %vm1110
      %vm1129 = vmand %vm1072, %vm1108
      %vm1130 = vmand %vm1073, %vm1109
      %vm1131 = vmand %vm1074, %vm1110
      %vm1132 = vmand %vm1075, %vm1108
      %vm1133 = vmand %vm1076, %vm1109
      %vm1134 = vmand %vm1077, %vm1110
      %vm1135 = vmand %vm1078, %vm1108
      %vm1136 = vmand %vm1079, %vm1109
      %vm1137 = vmand %vm1080, %vm1110
      %vm1138 = vmand %vm1081, %vm1108
      %vm1139 = vmand %vm1082, %vm1109
      %vm1140 = vmand %vm1083, %vm1110
      %vm1141 = vmand %vm1084, %vm1108
      %vm1142 = vmand %vm1085, %vm1109
      %vm1143 = vmand %vm1086, %vm1110
      %vm1144 = vmand %vm1087, %vm1108
      %vm1145 = vmand %vm1088, %vm1109
      %vm1146 = vmand %vm1089, %vm1110
      %vm1147 = vmand %vm1090, %vm1108
      %vm1148 = vmand %vm1091, %vm1109
      %vm1149 = vmand %vm1092, %vm1110
      %vm1150 = vmand %vm1093, %vm1108
      %vm1151 = vmand %vm1094, %vm1109
      %vm1152 = vmand %vm1095, %vm1110
      %vm1153 = vmand %vm1096, %vm1108
      %vm1154 = vmand %vm1097, %vm1109
      %vm1155 = vmand %vm1098, %vm1110
      %vm1156 = vmand %vm1099, %vm1108
      %vm1157 = vmand %vm1100, %vm1109
      %vm1158 = vmand %vm1101, %vm1110
      %vm1159 = vmand %vm1102, %vm1108
      %vm1160 = vmand %vm1103, %vm1109
      %vm1161 = vmand %vm1104, %vm1110
      %vm1162 = vmand %vm1105, %vm1108
      %vm1163 = vmand %vm1106, %vm1109
      %vm1164 = vmand %vm1107, %vm1110
      %v1165 = vsel %vm1111, 1, 0
      %v1166 = vsel %vm1112, 1, 0
      %v1167 = vsel %vm1113, 1, 0
      %v1168 = vsel %vm1114, 1, 0
      %v1169 = vsel %vm1115, 1, 0
      %v1170 = vsel %vm1116, 1, 0
      %v1171 = vsel %vm1117, 1, 0
      %v1172 = vsel %vm1118, 1, 0
      %v1173 = vsel %vm1119, 1, 0
      %v1174 = vsel %vm1120, 1, 0
      %v1175 = vsel %vm1121, 1, 0
      %v1176 = vsel %vm1122, 1, 0
      %v1177 = vsel %vm1123, 1, 0
      %v1178 = vsel %vm1124, 1, 0
      %v1179 = vsel %vm1125, 1, 0
      %v1180 = vsel %vm1126, 1, 0
      %v1181 = vsel %vm1127, 1, 0
      %v1182 = vsel %vm1128, 1, 0
      %v1183 = vsel %vm1129, 1, 0
      %v1184 = vsel %vm1130, 1, 0
      %v1185 = vsel %vm1131, 1, 0
      %v1186 = vsel %vm1132, 1, 0
      %v1187 = vsel %vm1133, 1, 0
      %v1188 = vsel %vm1134, 1, 0
      %v1189 = vsel %vm1135, 1, 0
      %v1190 = vsel %vm1136, 1, 0
      %v1191 = vsel %vm1137, 1, 0
      %v1192 = vsel %vm1138, 1, 0
      %v1193 = vsel %vm1139, 1, 0
      %v1194 = vsel %vm1140, 1, 0
      %v1195 = vsel %vm1141, 1, 0
      %v1196 = vsel %vm1142, 1, 0
      %v1197 = vsel %vm1143, 1, 0
      %v1198 = vsel %vm1144, 1, 0
      %v1199 = vsel %vm1145, 1, 0
      %v1200 = vsel %vm1146, 1, 0
      %v1201 = vsel %vm1147, 1, 0
      %v1202 = vsel %vm1148, 1, 0
      %v1203 = vsel %vm1149, 1, 0
      %v1204 = vsel %vm1150, 1, 0
      %v1205 = vsel %vm1151, 1, 0
      %v1206 = vsel %vm1152, 1, 0
      %v1207 = vsel %vm1153, 1, 0
      %v1208 = vsel %vm1154, 1, 0
      %v1209 = vsel %vm1155, 1, 0
      %v1210 = vsel %vm1156, 1, 0
      %v1211 = vsel %vm1157, 1, 0
      %v1212 = vsel %vm1158, 1, 0
      %v1213 = vsel %vm1159, 1, 0
      %v1214 = vsel %vm1160, 1, 0
      %v1215 = vsel %vm1161, 1, 0
      %v1216 = vsel %vm1162, 1, 0
      %v1217 = vsel %vm1163, 1, 0
      %v1218 = vsel %vm1164, 1, 0
      %vm1219 = vcmp.eq.s32.totalorder %v1165, 1
      %vm1220 = vcmp.eq.s32.totalorder %v1166, 1
      %vm1221 = vcmp.eq.s32.totalorder %v1167, 1
      %vm1222 = vcmp.eq.s32.totalorder %v1168, 1
      %vm1223 = vcmp.eq.s32.totalorder %v1169, 1
      %vm1224 = vcmp.eq.s32.totalorder %v1170, 1
      %vm1225 = vcmp.eq.s32.totalorder %v1171, 1
      %vm1226 = vcmp.eq.s32.totalorder %v1172, 1
      %vm1227 = vcmp.eq.s32.totalorder %v1173, 1
      %vm1228 = vcmp.eq.s32.totalorder %v1174, 1
      %vm1229 = vcmp.eq.s32.totalorder %v1175, 1
      %vm1230 = vcmp.eq.s32.totalorder %v1176, 1
      %vm1231 = vcmp.eq.s32.totalorder %v1177, 1
      %vm1232 = vcmp.eq.s32.totalorder %v1178, 1
      %vm1233 = vcmp.eq.s32.totalorder %v1179, 1
      %vm1234 = vcmp.eq.s32.totalorder %v1180, 1
      %vm1235 = vcmp.eq.s32.totalorder %v1181, 1
      %vm1236 = vcmp.eq.s32.totalorder %v1182, 1
      %vm1237 = vcmp.eq.s32.totalorder %v1183, 1
      %vm1238 = vcmp.eq.s32.totalorder %v1184, 1
      %vm1239 = vcmp.eq.s32.totalorder %v1185, 1
      %vm1240 = vcmp.eq.s32.totalorder %v1186, 1
      %vm1241 = vcmp.eq.s32.totalorder %v1187, 1
      %vm1242 = vcmp.eq.s32.totalorder %v1188, 1
      %vm1243 = vcmp.eq.s32.totalorder %v1189, 1
      %vm1244 = vcmp.eq.s32.totalorder %v1190, 1
      %vm1245 = vcmp.eq.s32.totalorder %v1191, 1
      %vm1246 = vcmp.eq.s32.totalorder %v1192, 1
      %vm1247 = vcmp.eq.s32.totalorder %v1193, 1
      %vm1248 = vcmp.eq.s32.totalorder %v1194, 1
      %vm1249 = vcmp.eq.s32.totalorder %v1195, 1
      %vm1250 = vcmp.eq.s32.totalorder %v1196, 1
      %vm1251 = vcmp.eq.s32.totalorder %v1197, 1
      %vm1252 = vcmp.eq.s32.totalorder %v1198, 1
      %vm1253 = vcmp.eq.s32.totalorder %v1199, 1
      %vm1254 = vcmp.eq.s32.totalorder %v1200, 1
      %vm1255 = vcmp.eq.s32.totalorder %v1201, 1
      %vm1256 = vcmp.eq.s32.totalorder %v1202, 1
      %vm1257 = vcmp.eq.s32.totalorder %v1203, 1
      %vm1258 = vcmp.eq.s32.totalorder %v1204, 1
      %vm1259 = vcmp.eq.s32.totalorder %v1205, 1
      %vm1260 = vcmp.eq.s32.totalorder %v1206, 1
      %vm1261 = vcmp.eq.s32.totalorder %v1207, 1
      %vm1262 = vcmp.eq.s32.totalorder %v1208, 1
      %vm1263 = vcmp.eq.s32.totalorder %v1209, 1
      %vm1264 = vcmp.eq.s32.totalorder %v1210, 1
      %vm1265 = vcmp.eq.s32.totalorder %v1211, 1
      %vm1266 = vcmp.eq.s32.totalorder %v1212, 1
      %vm1267 = vcmp.eq.s32.totalorder %v1213, 1
      %vm1268 = vcmp.eq.s32.totalorder %v1214, 1
      %vm1269 = vcmp.eq.s32.totalorder %v1215, 1
      %vm1270 = vcmp.eq.s32.totalorder %v1216, 1
      %vm1271 = vcmp.eq.s32.totalorder %v1217, 1
      %vm1272 = vcmp.eq.s32.totalorder %v1218, 1
      %v1273 = vsel %vm1219, %v921, 0.0
      %v1274 = vsel %vm1220, %v922, 0.0
      %v1275 = vsel %vm1221, %v923, 0.0
      %v1276 = vsel %vm1222, %v924, 0.0
      %v1277 = vsel %vm1223, %v925, 0.0
      %v1278 = vsel %vm1224, %v926, 0.0
      %v1279 = vsel %vm1225, %v927, 0.0
      %v1280 = vsel %vm1226, %v928, 0.0
      %v1281 = vsel %vm1227, %v929, 0.0
      %v1282 = vsel %vm1228, %v930, 0.0
      %v1283 = vsel %vm1229, %v931, 0.0
      %v1284 = vsel %vm1230, %v932, 0.0
      %v1285 = vsel %vm1231, %v933, 0.0
      %v1286 = vsel %vm1232, %v934, 0.0
      %v1287 = vsel %vm1233, %v935, 0.0
      %v1288 = vsel %vm1234, %v936, 0.0
      %v1289 = vsel %vm1235, %v937, 0.0
      %v1290 = vsel %vm1236, %v938, 0.0
      %v1291 = vsel %vm1237, %v939, 0.0
      %v1292 = vsel %vm1238, %v940, 0.0
      %v1293 = vsel %vm1239, %v941, 0.0
      %v1294 = vsel %vm1240, %v942, 0.0
      %v1295 = vsel %vm1241, %v943, 0.0
      %v1296 = vsel %vm1242, %v944, 0.0
      %v1297 = vsel %vm1243, %v945, 0.0
      %v1298 = vsel %vm1244, %v946, 0.0
      %v1299 = vsel %vm1245, %v947, 0.0
      %v1300 = vsel %vm1246, %v948, 0.0
      %v1301 = vsel %vm1247, %v949, 0.0
      %v1302 = vsel %vm1248, %v950, 0.0
      %v1303 = vsel %vm1249, %v951, 0.0
      %v1304 = vsel %vm1250, %v952, 0.0
      %v1305 = vsel %vm1251, %v953, 0.0
      %v1306 = vsel %vm1252, %v954, 0.0
      %v1307 = vsel %vm1253, %v955, 0.0
      %v1308 = vsel %vm1254, %v956, 0.0
      %v1309 = vsel %vm1255, %v957, 0.0
      %v1310 = vsel %vm1256, %v958, 0.0
      %v1311 = vsel %vm1257, %v959, 0.0
      %v1312 = vsel %vm1258, %v960, 0.0
      %v1313 = vsel %vm1259, %v961, 0.0
      %v1314 = vsel %vm1260, %v962, 0.0
      %v1315 = vsel %vm1261, %v963, 0.0
      %v1316 = vsel %vm1262, %v964, 0.0
      %v1317 = vsel %vm1263, %v965, 0.0
      %v1318 = vsel %vm1264, %v966, 0.0
      %v1319 = vsel %vm1265, %v967, 0.0
      %v1320 = vsel %vm1266, %v968, 0.0
      %v1321 = vsel %vm1267, %v969, 0.0
      %v1322 = vsel %vm1268, %v970, 0.0
      %v1323 = vsel %vm1269, %v971, 0.0
      %v1324 = vsel %vm1270, %v972, 0.0
      %v1325 = vsel %vm1271, %v973, 0.0
      %v1326 = vsel %vm1272, %v974, 0.0
      %v1327 = vld [vmem:[%s3] sm:$0x7]
      %v1328 = vld [vmem:[%s3 + $0x4] sm:$0x7]
      %v1329 = vld [vmem:[%s3 + $0x8] sm:$0x7]
      %v1330 = vlaneseq
      %v1331 = vshrl.u32 %v1330, 7
      %v1332 = vsub.s32 0, %v1331
      %v1333 = vrot.slane %v1327, %v1332
      %v1334 = vmul.f32 %v1273, %v1333
      %v1335 = vmul.f32 %v1274, %v1333
      %v1336 = vmul.f32 %v1276, %v1333
      %v1337 = vmul.f32 %v1277, %v1333
      %v1338 = vmul.f32 %v1279, %v1333
      %v1339 = vmul.f32 %v1280, %v1333
      %v1340 = vmul.f32 %v1282, %v1333
      %v1341 = vmul.f32 %v1283, %v1333
      %v1342 = vmul.f32 %v1285, %v1333
      %v1343 = vmul.f32 %v1286, %v1333
      %v1344 = vmul.f32 %v1288, %v1333
      %v1345 = vmul.f32 %v1289, %v1333
      %v1346 = vmul.f32 %v1291, %v1333
      %v1347 = vmul.f32 %v1292, %v1333
      %v1348 = vmul.f32 %v1294, %v1333
      %v1349 = vmul.f32 %v1295, %v1333
      %v1350 = vmul.f32 %v1297, %v1333
      %v1351 = vmul.f32 %v1298, %v1333
      %v1352 = vmul.f32 %v1300, %v1333
      %v1353 = vmul.f32 %v1301, %v1333
      %v1354 = vmul.f32 %v1303, %v1333
      %v1355 = vmul.f32 %v1304, %v1333
      %v1356 = vmul.f32 %v1306, %v1333
      %v1357 = vmul.f32 %v1307, %v1333
      %v1358 = vmul.f32 %v1309, %v1333
      %v1359 = vmul.f32 %v1310, %v1333
      %v1360 = vmul.f32 %v1312, %v1333
      %v1361 = vmul.f32 %v1313, %v1333
      %v1362 = vmul.f32 %v1315, %v1333
      %v1363 = vmul.f32 %v1316, %v1333
      %v1364 = vmul.f32 %v1318, %v1333
      %v1365 = vmul.f32 %v1319, %v1333
      %v1366 = vadd.f32 %v1334, 0.0
      %v1367 = vadd.f32 %v1335, 0.0
      %v1368 = vadd.f32 %v1336, 0.0
      %v1369 = vadd.f32 %v1337, 0.0
      %v1370 = vadd.f32 %v1338, 0.0
      %v1371 = vadd.f32 %v1339, 0.0
      %v1372 = vadd.f32 %v1340, 0.0
      %v1373 = vadd.f32 %v1341, 0.0
      %v1374 = vadd.f32 %v1342, 0.0
      %v1375 = vadd.f32 %v1343, 0.0
      %v1376 = vadd.f32 %v1344, 0.0
      %v1377 = vadd.f32 %v1345, 0.0
      %v1378 = vadd.f32 %v1346, 0.0
      %v1379 = vadd.f32 %v1347, 0.0
      %v1380 = vadd.f32 %v1348, 0.0
      %v1381 = vadd.f32 %v1349, 0.0
      %v1382 = vadd.f32 %v1350, 0.0
      %v1383 = vadd.f32 %v1351, 0.0
      %v1384 = vadd.f32 %v1352, 0.0
      %v1385 = vadd.f32 %v1353, 0.0
      %v1386 = vadd.f32 %v1354, 0.0
      %v1387 = vadd.f32 %v1355, 0.0
      %v1388 = vadd.f32 %v1356, 0.0
      %v1389 = vadd.f32 %v1357, 0.0
      %v1390 = vadd.f32 %v1358, 0.0
      %v1391 = vadd.f32 %v1359, 0.0
      %v1392 = vadd.f32 %v1360, 0.0
      %v1393 = vadd.f32 %v1361, 0.0
      %v1394 = vadd.f32 %v1362, 0.0
      %v1395 = vadd.f32 %v1363, 0.0
      %v1396 = vadd.f32 %v1364, 0.0
      %v1397 = vadd.f32 %v1365, 0.0
      %v1398 = vlaneseq
      %v1399 = vshrl.u32 %v1398, 7
      %v1400 = vsub.s32 1, %v1399
      %v1401 = vrot.slane %v1327, %v1400
      %v1402 = vmul.f32 %v1273, %v1401
      %v1403 = vmul.f32 %v1274, %v1401
      %v1404 = vmul.f32 %v1275, %v1401
      %v1405 = vmul.f32 %v1276, %v1401
      %v1406 = vmul.f32 %v1277, %v1401
      %v1407 = vmul.f32 %v1278, %v1401
      %v1408 = vmul.f32 %v1279, %v1401
      %v1409 = vmul.f32 %v1280, %v1401
      %v1410 = vmul.f32 %v1281, %v1401
      %v1411 = vmul.f32 %v1282, %v1401
      %v1412 = vmul.f32 %v1283, %v1401
      %v1413 = vmul.f32 %v1284, %v1401
      %v1414 = vmul.f32 %v1285, %v1401
      %v1415 = vmul.f32 %v1286, %v1401
      %v1416 = vmul.f32 %v1287, %v1401
      %v1417 = vmul.f32 %v1288, %v1401
      %v1418 = vmul.f32 %v1289, %v1401
      %v1419 = vmul.f32 %v1290, %v1401
      %v1420 = vmul.f32 %v1291, %v1401
      %v1421 = vmul.f32 %v1292, %v1401
      %v1422 = vmul.f32 %v1293, %v1401
      %v1423 = vmul.f32 %v1294, %v1401
      %v1424 = vmul.f32 %v1295, %v1401
      %v1425 = vmul.f32 %v1296, %v1401
      %v1426 = vmul.f32 %v1297, %v1401
      %v1427 = vmul.f32 %v1298, %v1401
      %v1428 = vmul.f32 %v1299, %v1401
      %v1429 = vmul.f32 %v1300, %v1401
      %v1430 = vmul.f32 %v1301, %v1401
      %v1431 = vmul.f32 %v1302, %v1401
      %v1432 = vmul.f32 %v1303, %v1401
      %v1433 = vmul.f32 %v1304, %v1401
      %v1434 = vmul.f32 %v1305, %v1401
      %v1435 = vmul.f32 %v1306, %v1401
      %v1436 = vmul.f32 %v1307, %v1401
      %v1437 = vmul.f32 %v1308, %v1401
      %v1438 = vmul.f32 %v1309, %v1401
      %v1439 = vmul.f32 %v1310, %v1401
      %v1440 = vmul.f32 %v1311, %v1401
      %v1441 = vmul.f32 %v1312, %v1401
      %v1442 = vmul.f32 %v1313, %v1401
      %v1443 = vmul.f32 %v1314, %v1401
      %v1444 = vmul.f32 %v1315, %v1401
      %v1445 = vmul.f32 %v1316, %v1401
      %v1446 = vmul.f32 %v1317, %v1401
      %v1447 = vmul.f32 %v1318, %v1401
      %v1448 = vmul.f32 %v1319, %v1401
      %v1449 = vmul.f32 %v1320, %v1401
      %vm1498 = vcmask 1046528
      %v1499 = vrot.slane %v1402, 1
      %v1500 = vrot.slane %v1403, 1
      %v1501 = vsel %vm1498, %v1499, %v1500
      %v1502 = vrot.slane %v1404, 1
      %v1503 = vsel %vm1498, %v1500, %v1502
      %v1504 = vrot.slane %v1405, 1
      %v1505 = vrot.slane %v1406, 1
      %v1506 = vsel %vm1498, %v1504, %v1505
      %v1507 = vrot.slane %v1407, 1
      %v1508 = vsel %vm1498, %v1505, %v1507
      %v1509 = vrot.slane %v1408, 1
      %v1510 = vrot.slane %v1409, 1
      %v1511 = vsel %vm1498, %v1509, %v1510
      %v1512 = vrot.slane %v1410, 1
      %v1513 = vsel %vm1498, %v1510, %v1512
      %v1514 = vrot.slane %v1411, 1
      %v1515 = vrot.slane %v1412, 1
      %v1516 = vsel %vm1498, %v1514, %v1515
      %v1517 = vrot.slane %v1413, 1
      %v1518 = vsel %vm1498, %v1515, %v1517
      %v1519 = vrot.slane %v1414, 1
      %v1520 = vrot.slane %v1415, 1
      %v1521 = vsel %vm1498, %v1519, %v1520
      %v1522 = vrot.slane %v1416, 1
      %v1523 = vsel %vm1498, %v1520, %v1522
      %v1524 = vrot.slane %v1417, 1
      %v1525 = vrot.slane %v1418, 1
      %v1526 = vsel %vm1498, %v1524, %v1525
      %v1527 = vrot.slane %v1419, 1
      %v1528 = vsel %vm1498, %v1525, %v1527
      %v1529 = vrot.slane %v1420, 1
      %v1530 = vrot.slane %v1421, 1
      %v1531 = vsel %vm1498, %v1529, %v1530
      %v1532 = vrot.slane %v1422, 1
      %v1533 = vsel %vm1498, %v1530, %v1532
      %v1534 = vrot.slane %v1423, 1
      %v1535 = vrot.slane %v1424, 1
      %v1536 = vsel %vm1498, %v1534, %v1535
      %v1537 = vrot.slane %v1425, 1
      %v1538 = vsel %vm1498, %v1535, %v1537
      %v1539 = vrot.slane %v1426, 1
      %v1540 = vrot.slane %v1427, 1
      %v1541 = vsel %vm1498, %v1539, %v1540
      %v1542 = vrot.slane %v1428, 1
      %v1543 = vsel %vm1498, %v1540, %v1542
      %v1544 = vrot.slane %v1429, 1
      %v1545 = vrot.slane %v1430, 1
      %v1546 = vsel %vm1498, %v1544, %v1545
      %v1547 = vrot.slane %v1431, 1
      %v1548 = vsel %vm1498, %v1545, %v1547
      %v1549 = vrot.slane %v1432, 1
      %v1550 = vrot.slane %v1433, 1
      %v1551 = vsel %vm1498, %v1549, %v1550
      %v1552 = vrot.slane %v1434, 1
      %v1553 = vsel %vm1498, %v1550, %v1552
      %v1554 = vrot.slane %v1435, 1
      %v1555 = vrot.slane %v1436, 1
      %v1556 = vsel %vm1498, %v1554, %v1555
      %v1557 = vrot.slane %v1437, 1
      %v1558 = vsel %vm1498, %v1555, %v1557
      %v1559 = vrot.slane %v1438, 1
      %v1560 = vrot.slane %v1439, 1
      %v1561 = vsel %vm1498, %v1559, %v1560
      %v1562 = vrot.slane %v1440, 1
      %v1563 = vsel %vm1498, %v1560, %v1562
      %v1564 = vrot.slane %v1441, 1
      %v1565 = vrot.slane %v1442, 1
      %v1566 = vsel %vm1498, %v1564, %v1565
      %v1567 = vrot.slane %v1443, 1
      %v1568 = vsel %vm1498, %v1565, %v1567
      %v1569 = vrot.slane %v1444, 1
      %v1570 = vrot.slane %v1445, 1
      %v1571 = vsel %vm1498, %v1569, %v1570
      %v1572 = vrot.slane %v1446, 1
      %v1573 = vsel %vm1498, %v1570, %v1572
      %v1574 = vrot.slane %v1447, 1
      %v1575 = vrot.slane %v1448, 1
      %v1576 = vsel %vm1498, %v1574, %v1575
      %v1577 = vrot.slane %v1449, 1
      %v1578 = vsel %vm1498, %v1575, %v1577
      %v1611 = vadd.f32 %v1366, %v1501
      %v1612 = vadd.f32 %v1367, %v1503
      %v1613 = vadd.f32 %v1368, %v1506
      %v1614 = vadd.f32 %v1369, %v1508
      %v1615 = vadd.f32 %v1370, %v1511
      %v1616 = vadd.f32 %v1371, %v1513
      %v1617 = vadd.f32 %v1372, %v1516
      %v1618 = vadd.f32 %v1373, %v1518
      %v1619 = vadd.f32 %v1374, %v1521
      %v1620 = vadd.f32 %v1375, %v1523
      %v1621 = vadd.f32 %v1376, %v1526
      %v1622 = vadd.f32 %v1377, %v1528
      %v1623 = vadd.f32 %v1378, %v1531
      %v1624 = vadd.f32 %v1379, %v1533
      %v1625 = vadd.f32 %v1380, %v1536
      %v1626 = vadd.f32 %v1381, %v1538
      %v1627 = vadd.f32 %v1382, %v1541
      %v1628 = vadd.f32 %v1383, %v1543
      %v1629 = vadd.f32 %v1384, %v1546
      %v1630 = vadd.f32 %v1385, %v1548
      %v1631 = vadd.f32 %v1386, %v1551
      %v1632 = vadd.f32 %v1387, %v1553
      %v1633 = vadd.f32 %v1388, %v1556
      %v1634 = vadd.f32 %v1389, %v1558
      %v1635 = vadd.f32 %v1390, %v1561
      %v1636 = vadd.f32 %v1391, %v1563
      %v1637 = vadd.f32 %v1392, %v1566
      %v1638 = vadd.f32 %v1393, %v1568
      %v1639 = vadd.f32 %v1394, %v1571
      %v1640 = vadd.f32 %v1395, %v1573
      %v1641 = vadd.f32 %v1396, %v1576
      %v1642 = vadd.f32 %v1397, %v1578
      %v1643 = vlaneseq
      %v1644 = vshrl.u32 %v1643, 7
      %v1645 = vsub.s32 2, %v1644
      %v1646 = vrot.slane %v1327, %v1645
      %v1647 = vmul.f32 %v1273, %v1646
      %v1648 = vmul.f32 %v1274, %v1646
      %v1649 = vmul.f32 %v1275, %v1646
      %v1650 = vmul.f32 %v1276, %v1646
      %v1651 = vmul.f32 %v1277, %v1646
      %v1652 = vmul.f32 %v1278, %v1646
      %v1653 = vmul.f32 %v1279, %v1646
      %v1654 = vmul.f32 %v1280, %v1646
      %v1655 = vmul.f32 %v1281, %v1646
      %v1656 = vmul.f32 %v1282, %v1646
      %v1657 = vmul.f32 %v1283, %v1646
      %v1658 = vmul.f32 %v1284, %v1646
      %v1659 = vmul.f32 %v1285, %v1646
      %v1660 = vmul.f32 %v1286, %v1646
      %v1661 = vmul.f32 %v1287, %v1646
      %v1662 = vmul.f32 %v1288, %v1646
      %v1663 = vmul.f32 %v1289, %v1646
      %v1664 = vmul.f32 %v1290, %v1646
      %v1665 = vmul.f32 %v1291, %v1646
      %v1666 = vmul.f32 %v1292, %v1646
      %v1667 = vmul.f32 %v1293, %v1646
      %v1668 = vmul.f32 %v1294, %v1646
      %v1669 = vmul.f32 %v1295, %v1646
      %v1670 = vmul.f32 %v1296, %v1646
      %v1671 = vmul.f32 %v1297, %v1646
      %v1672 = vmul.f32 %v1298, %v1646
      %v1673 = vmul.f32 %v1299, %v1646
      %v1674 = vmul.f32 %v1300, %v1646
      %v1675 = vmul.f32 %v1301, %v1646
      %v1676 = vmul.f32 %v1302, %v1646
      %v1677 = vmul.f32 %v1303, %v1646
      %v1678 = vmul.f32 %v1304, %v1646
      %v1679 = vmul.f32 %v1305, %v1646
      %v1680 = vmul.f32 %v1306, %v1646
      %v1681 = vmul.f32 %v1307, %v1646
      %v1682 = vmul.f32 %v1308, %v1646
      %v1683 = vmul.f32 %v1309, %v1646
      %v1684 = vmul.f32 %v1310, %v1646
      %v1685 = vmul.f32 %v1311, %v1646
      %v1686 = vmul.f32 %v1312, %v1646
      %v1687 = vmul.f32 %v1313, %v1646
      %v1688 = vmul.f32 %v1314, %v1646
      %v1689 = vmul.f32 %v1315, %v1646
      %v1690 = vmul.f32 %v1316, %v1646
      %v1691 = vmul.f32 %v1317, %v1646
      %v1692 = vmul.f32 %v1318, %v1646
      %v1693 = vmul.f32 %v1319, %v1646
      %v1694 = vmul.f32 %v1320, %v1646
      %vm1743 = vcmask 1045504
      %v1744 = vrot.slane %v1647, 2
      %v1745 = vrot.slane %v1648, 2
      %v1746 = vsel %vm1743, %v1744, %v1745
      %v1747 = vrot.slane %v1649, 2
      %v1748 = vsel %vm1743, %v1745, %v1747
      %v1749 = vrot.slane %v1650, 2
      %v1750 = vrot.slane %v1651, 2
      %v1751 = vsel %vm1743, %v1749, %v1750
      %v1752 = vrot.slane %v1652, 2
      %v1753 = vsel %vm1743, %v1750, %v1752
      %v1754 = vrot.slane %v1653, 2
      %v1755 = vrot.slane %v1654, 2
      %v1756 = vsel %vm1743, %v1754, %v1755
      %v1757 = vrot.slane %v1655, 2
      %v1758 = vsel %vm1743, %v1755, %v1757
      %v1759 = vrot.slane %v1656, 2
      %v1760 = vrot.slane %v1657, 2
      %v1761 = vsel %vm1743, %v1759, %v1760
      %v1762 = vrot.slane %v1658, 2
      %v1763 = vsel %vm1743, %v1760, %v1762
      %v1764 = vrot.slane %v1659, 2
      %v1765 = vrot.slane %v1660, 2
      %v1766 = vsel %vm1743, %v1764, %v1765
      %v1767 = vrot.slane %v1661, 2
      %v1768 = vsel %vm1743, %v1765, %v1767
      %v1769 = vrot.slane %v1662, 2
      %v1770 = vrot.slane %v1663, 2
      %v1771 = vsel %vm1743, %v1769, %v1770
      %v1772 = vrot.slane %v1664, 2
      %v1773 = vsel %vm1743, %v1770, %v1772
      %v1774 = vrot.slane %v1665, 2
      %v1775 = vrot.slane %v1666, 2
      %v1776 = vsel %vm1743, %v1774, %v1775
      %v1777 = vrot.slane %v1667, 2
      %v1778 = vsel %vm1743, %v1775, %v1777
      %v1779 = vrot.slane %v1668, 2
      %v1780 = vrot.slane %v1669, 2
      %v1781 = vsel %vm1743, %v1779, %v1780
      %v1782 = vrot.slane %v1670, 2
      %v1783 = vsel %vm1743, %v1780, %v1782
      %v1784 = vrot.slane %v1671, 2
      %v1785 = vrot.slane %v1672, 2
      %v1786 = vsel %vm1743, %v1784, %v1785
      %v1787 = vrot.slane %v1673, 2
      %v1788 = vsel %vm1743, %v1785, %v1787
      %v1789 = vrot.slane %v1674, 2
      %v1790 = vrot.slane %v1675, 2
      %v1791 = vsel %vm1743, %v1789, %v1790
      %v1792 = vrot.slane %v1676, 2
      %v1793 = vsel %vm1743, %v1790, %v1792
      %v1794 = vrot.slane %v1677, 2
      %v1795 = vrot.slane %v1678, 2
      %v1796 = vsel %vm1743, %v1794, %v1795
      %v1797 = vrot.slane %v1679, 2
      %v1798 = vsel %vm1743, %v1795, %v1797
      %v1799 = vrot.slane %v1680, 2
      %v1800 = vrot.slane %v1681, 2
      %v1801 = vsel %vm1743, %v1799, %v1800
      %v1802 = vrot.slane %v1682, 2
      %v1803 = vsel %vm1743, %v1800, %v1802
      %v1804 = vrot.slane %v1683, 2
      %v1805 = vrot.slane %v1684, 2
      %v1806 = vsel %vm1743, %v1804, %v1805
      %v1807 = vrot.slane %v1685, 2
      %v1808 = vsel %vm1743, %v1805, %v1807
      %v1809 = vrot.slane %v1686, 2
      %v1810 = vrot.slane %v1687, 2
      %v1811 = vsel %vm1743, %v1809, %v1810
      %v1812 = vrot.slane %v1688, 2
      %v1813 = vsel %vm1743, %v1810, %v1812
      %v1814 = vrot.slane %v1689, 2
      %v1815 = vrot.slane %v1690, 2
      %v1816 = vsel %vm1743, %v1814, %v1815
      %v1817 = vrot.slane %v1691, 2
      %v1818 = vsel %vm1743, %v1815, %v1817
      %v1819 = vrot.slane %v1692, 2
      %v1820 = vrot.slane %v1693, 2
      %v1821 = vsel %vm1743, %v1819, %v1820
      %v1822 = vrot.slane %v1694, 2
      %v1823 = vsel %vm1743, %v1820, %v1822
      %v1856 = vadd.f32 %v1611, %v1746
      %v1857 = vadd.f32 %v1612, %v1748
      %v1858 = vadd.f32 %v1613, %v1751
      %v1859 = vadd.f32 %v1614, %v1753
      %v1860 = vadd.f32 %v1615, %v1756
      %v1861 = vadd.f32 %v1616, %v1758
      %v1862 = vadd.f32 %v1617, %v1761
      %v1863 = vadd.f32 %v1618, %v1763
      %v1864 = vadd.f32 %v1619, %v1766
      %v1865 = vadd.f32 %v1620, %v1768
      %v1866 = vadd.f32 %v1621, %v1771
      %v1867 = vadd.f32 %v1622, %v1773
      %v1868 = vadd.f32 %v1623, %v1776
      %v1869 = vadd.f32 %v1624, %v1778
      %v1870 = vadd.f32 %v1625, %v1781
      %v1871 = vadd.f32 %v1626, %v1783
      %v1872 = vadd.f32 %v1627, %v1786
      %v1873 = vadd.f32 %v1628, %v1788
      %v1874 = vadd.f32 %v1629, %v1791
      %v1875 = vadd.f32 %v1630, %v1793
      %v1876 = vadd.f32 %v1631, %v1796
      %v1877 = vadd.f32 %v1632, %v1798
      %v1878 = vadd.f32 %v1633, %v1801
      %v1879 = vadd.f32 %v1634, %v1803
      %v1880 = vadd.f32 %v1635, %v1806
      %v1881 = vadd.f32 %v1636, %v1808
      %v1882 = vadd.f32 %v1637, %v1811
      %v1883 = vadd.f32 %v1638, %v1813
      %v1884 = vadd.f32 %v1639, %v1816
      %v1885 = vadd.f32 %v1640, %v1818
      %v1886 = vadd.f32 %v1641, %v1821
      %v1887 = vadd.f32 %v1642, %v1823
      %v1888 = vlaneseq
      %v1889 = vshrl.u32 %v1888, 7
      %v1890 = vsub.s32 0, %v1889
      %v1891 = vrot.slane %v1328, %v1890
      %v1892 = vmul.f32 %v1276, %v1891
      %v1893 = vmul.f32 %v1277, %v1891
      %v1894 = vmul.f32 %v1279, %v1891
      %v1895 = vmul.f32 %v1280, %v1891
      %v1896 = vmul.f32 %v1282, %v1891
      %v1897 = vmul.f32 %v1283, %v1891
      %v1898 = vmul.f32 %v1285, %v1891
      %v1899 = vmul.f32 %v1286, %v1891
      %v1900 = vmul.f32 %v1288, %v1891
      %v1901 = vmul.f32 %v1289, %v1891
      %v1902 = vmul.f32 %v1291, %v1891
      %v1903 = vmul.f32 %v1292, %v1891
      %v1904 = vmul.f32 %v1294, %v1891
      %v1905 = vmul.f32 %v1295, %v1891
      %v1906 = vmul.f32 %v1297, %v1891
      %v1907 = vmul.f32 %v1298, %v1891
      %v1908 = vmul.f32 %v1300, %v1891
      %v1909 = vmul.f32 %v1301, %v1891
      %v1910 = vmul.f32 %v1303, %v1891
      %v1911 = vmul.f32 %v1304, %v1891
      %v1912 = vmul.f32 %v1306, %v1891
      %v1913 = vmul.f32 %v1307, %v1891
      %v1914 = vmul.f32 %v1309, %v1891
      %v1915 = vmul.f32 %v1310, %v1891
      %v1916 = vmul.f32 %v1312, %v1891
      %v1917 = vmul.f32 %v1313, %v1891
      %v1918 = vmul.f32 %v1315, %v1891
      %v1919 = vmul.f32 %v1316, %v1891
      %v1920 = vmul.f32 %v1318, %v1891
      %v1921 = vmul.f32 %v1319, %v1891
      %v1922 = vmul.f32 %v1321, %v1891
      %v1923 = vmul.f32 %v1322, %v1891
      %v1924 = vadd.f32 %v1856, %v1892
      %v1925 = vadd.f32 %v1857, %v1893
      %v1926 = vadd.f32 %v1858, %v1894
      %v1927 = vadd.f32 %v1859, %v1895
      %v1928 = vadd.f32 %v1860, %v1896
      %v1929 = vadd.f32 %v1861, %v1897
      %v1930 = vadd.f32 %v1862, %v1898
      %v1931 = vadd.f32 %v1863, %v1899
      %v1932 = vadd.f32 %v1864, %v1900
      %v1933 = vadd.f32 %v1865, %v1901
      %v1934 = vadd.f32 %v1866, %v1902
      %v1935 = vadd.f32 %v1867, %v1903
      %v1936 = vadd.f32 %v1868, %v1904
      %v1937 = vadd.f32 %v1869, %v1905
      %v1938 = vadd.f32 %v1870, %v1906
      %v1939 = vadd.f32 %v1871, %v1907
      %v1940 = vadd.f32 %v1872, %v1908
      %v1941 = vadd.f32 %v1873, %v1909
      %v1942 = vadd.f32 %v1874, %v1910
      %v1943 = vadd.f32 %v1875, %v1911
      %v1944 = vadd.f32 %v1876, %v1912
      %v1945 = vadd.f32 %v1877, %v1913
      %v1946 = vadd.f32 %v1878, %v1914
      %v1947 = vadd.f32 %v1879, %v1915
      %v1948 = vadd.f32 %v1880, %v1916
      %v1949 = vadd.f32 %v1881, %v1917
      %v1950 = vadd.f32 %v1882, %v1918
      %v1951 = vadd.f32 %v1883, %v1919
      %v1952 = vadd.f32 %v1884, %v1920
      %v1953 = vadd.f32 %v1885, %v1921
      %v1954 = vadd.f32 %v1886, %v1922
      %v1955 = vadd.f32 %v1887, %v1923
      %v1956 = vlaneseq
      %v1957 = vshrl.u32 %v1956, 7
      %v1958 = vsub.s32 1, %v1957
      %v1959 = vrot.slane %v1328, %v1958
      %v1960 = vmul.f32 %v1276, %v1959
      %v1961 = vmul.f32 %v1277, %v1959
      %v1962 = vmul.f32 %v1278, %v1959
      %v1963 = vmul.f32 %v1279, %v1959
      %v1964 = vmul.f32 %v1280, %v1959
      %v1965 = vmul.f32 %v1281, %v1959
      %v1966 = vmul.f32 %v1282, %v1959
      %v1967 = vmul.f32 %v1283, %v1959
      %v1968 = vmul.f32 %v1284, %v1959
      %v1969 = vmul.f32 %v1285, %v1959
      %v1970 = vmul.f32 %v1286, %v1959
      %v1971 = vmul.f32 %v1287, %v1959
      %v1972 = vmul.f32 %v1288, %v1959
      %v1973 = vmul.f32 %v1289, %v1959
      %v1974 = vmul.f32 %v1290, %v1959
      %v1975 = vmul.f32 %v1291, %v1959
      %v1976 = vmul.f32 %v1292, %v1959
      %v1977 = vmul.f32 %v1293, %v1959
      %v1978 = vmul.f32 %v1294, %v1959
      %v1979 = vmul.f32 %v1295, %v1959
      %v1980 = vmul.f32 %v1296, %v1959
      %v1981 = vmul.f32 %v1297, %v1959
      %v1982 = vmul.f32 %v1298, %v1959
      %v1983 = vmul.f32 %v1299, %v1959
      %v1984 = vmul.f32 %v1300, %v1959
      %v1985 = vmul.f32 %v1301, %v1959
      %v1986 = vmul.f32 %v1302, %v1959
      %v1987 = vmul.f32 %v1303, %v1959
      %v1988 = vmul.f32 %v1304, %v1959
      %v1989 = vmul.f32 %v1305, %v1959
      %v1990 = vmul.f32 %v1306, %v1959
      %v1991 = vmul.f32 %v1307, %v1959
      %v1992 = vmul.f32 %v1308, %v1959
      %v1993 = vmul.f32 %v1309, %v1959
      %v1994 = vmul.f32 %v1310, %v1959
      %v1995 = vmul.f32 %v1311, %v1959
      %v1996 = vmul.f32 %v1312, %v1959
      %v1997 = vmul.f32 %v1313, %v1959
      %v1998 = vmul.f32 %v1314, %v1959
      %v1999 = vmul.f32 %v1315, %v1959
      %v2000 = vmul.f32 %v1316, %v1959
      %v2001 = vmul.f32 %v1317, %v1959
      %v2002 = vmul.f32 %v1318, %v1959
      %v2003 = vmul.f32 %v1319, %v1959
      %v2004 = vmul.f32 %v1320, %v1959
      %v2005 = vmul.f32 %v1321, %v1959
      %v2006 = vmul.f32 %v1322, %v1959
      %v2007 = vmul.f32 %v1323, %v1959
      %v2056 = vrot.slane %v1960, 1
      %v2057 = vrot.slane %v1961, 1
      %v2058 = vsel %vm1498, %v2056, %v2057
      %v2059 = vrot.slane %v1962, 1
      %v2060 = vsel %vm1498, %v2057, %v2059
      %v2061 = vrot.slane %v1963, 1
      %v2062 = vrot.slane %v1964, 1
      %v2063 = vsel %vm1498, %v2061, %v2062
      %v2064 = vrot.slane %v1965, 1
      %v2065 = vsel %vm1498, %v2062, %v2064
      %v2066 = vrot.slane %v1966, 1
      %v2067 = vrot.slane %v1967, 1
      %v2068 = vsel %vm1498, %v2066, %v2067
      %v2069 = vrot.slane %v1968, 1
      %v2070 = vsel %vm1498, %v2067, %v2069
      %v2071 = vrot.slane %v1969, 1
      %v2072 = vrot.slane %v1970, 1
      %v2073 = vsel %vm1498, %v2071, %v2072
      %v2074 = vrot.slane %v1971, 1
      %v2075 = vsel %vm1498, %v2072, %v2074
      %v2076 = vrot.slane %v1972, 1
      %v2077 = vrot.slane %v1973, 1
      %v2078 = vsel %vm1498, %v2076, %v2077
      %v2079 = vrot.slane %v1974, 1
      %v2080 = vsel %vm1498, %v2077, %v2079
      %v2081 = vrot.slane %v1975, 1
      %v2082 = vrot.slane %v1976, 1
      %v2083 = vsel %vm1498, %v2081, %v2082
      %v2084 = vrot.slane %v1977, 1
      %v2085 = vsel %vm1498, %v2082, %v2084
      %v2086 = vrot.slane %v1978, 1
      %v2087 = vrot.slane %v1979, 1
      %v2088 = vsel %vm1498, %v2086, %v2087
      %v2089 = vrot.slane %v1980, 1
      %v2090 = vsel %vm1498, %v2087, %v2089
      %v2091 = vrot.slane %v1981, 1
      %v2092 = vrot.slane %v1982, 1
      %v2093 = vsel %vm1498, %v2091, %v2092
      %v2094 = vrot.slane %v1983, 1
      %v2095 = vsel %vm1498, %v2092, %v2094
      %v2096 = vrot.slane %v1984, 1
      %v2097 = vrot.slane %v1985, 1
      %v2098 = vsel %vm1498, %v2096, %v2097
      %v2099 = vrot.slane %v1986, 1
      %v2100 = vsel %vm1498, %v2097, %v2099
      %v2101 = vrot.slane %v1987, 1
      %v2102 = vrot.slane %v1988, 1
      %v2103 = vsel %vm1498, %v2101, %v2102
      %v2104 = vrot.slane %v1989, 1
      %v2105 = vsel %vm1498, %v2102, %v2104
      %v2106 = vrot.slane %v1990, 1
      %v2107 = vrot.slane %v1991, 1
      %v2108 = vsel %vm1498, %v2106, %v2107
      %v2109 = vrot.slane %v1992, 1
      %v2110 = vsel %vm1498, %v2107, %v2109
      %v2111 = vrot.slane %v1993, 1
      %v2112 = vrot.slane %v1994, 1
      %v2113 = vsel %vm1498, %v2111, %v2112
      %v2114 = vrot.slane %v1995, 1
      %v2115 = vsel %vm1498, %v2112, %v2114
      %v2116 = vrot.slane %v1996, 1
      %v2117 = vrot.slane %v1997, 1
      %v2118 = vsel %vm1498, %v2116, %v2117
      %v2119 = vrot.slane %v1998, 1
      %v2120 = vsel %vm1498, %v2117, %v2119
      %v2121 = vrot.slane %v1999, 1
      %v2122 = vrot.slane %v2000, 1
      %v2123 = vsel %vm1498, %v2121, %v2122
      %v2124 = vrot.slane %v2001, 1
      %v2125 = vsel %vm1498, %v2122, %v2124
      %v2126 = vrot.slane %v2002, 1
      %v2127 = vrot.slane %v2003, 1
      %v2128 = vsel %vm1498, %v2126, %v2127
      %v2129 = vrot.slane %v2004, 1
      %v2130 = vsel %vm1498, %v2127, %v2129
      %v2131 = vrot.slane %v2005, 1
      %v2132 = vrot.slane %v2006, 1
      %v2133 = vsel %vm1498, %v2131, %v2132
      %v2134 = vrot.slane %v2007, 1
      %v2135 = vsel %vm1498, %v2132, %v2134
      %v2168 = vadd.f32 %v1924, %v2058
      %v2169 = vadd.f32 %v1925, %v2060
      %v2170 = vadd.f32 %v1926, %v2063
      %v2171 = vadd.f32 %v1927, %v2065
      %v2172 = vadd.f32 %v1928, %v2068
      %v2173 = vadd.f32 %v1929, %v2070
      %v2174 = vadd.f32 %v1930, %v2073
      %v2175 = vadd.f32 %v1931, %v2075
      %v2176 = vadd.f32 %v1932, %v2078
      %v2177 = vadd.f32 %v1933, %v2080
      %v2178 = vadd.f32 %v1934, %v2083
      %v2179 = vadd.f32 %v1935, %v2085
      %v2180 = vadd.f32 %v1936, %v2088
      %v2181 = vadd.f32 %v1937, %v2090
      %v2182 = vadd.f32 %v1938, %v2093
      %v2183 = vadd.f32 %v1939, %v2095
      %v2184 = vadd.f32 %v1940, %v2098
      %v2185 = vadd.f32 %v1941, %v2100
      %v2186 = vadd.f32 %v1942, %v2103
      %v2187 = vadd.f32 %v1943, %v2105
      %v2188 = vadd.f32 %v1944, %v2108
      %v2189 = vadd.f32 %v1945, %v2110
      %v2190 = vadd.f32 %v1946, %v2113
      %v2191 = vadd.f32 %v1947, %v2115
      %v2192 = vadd.f32 %v1948, %v2118
      %v2193 = vadd.f32 %v1949, %v2120
      %v2194 = vadd.f32 %v1950, %v2123
      %v2195 = vadd.f32 %v1951, %v2125
      %v2196 = vadd.f32 %v1952, %v2128
      %v2197 = vadd.f32 %v1953, %v2130
      %v2198 = vadd.f32 %v1954, %v2133
      %v2199 = vadd.f32 %v1955, %v2135
      %v2200 = vlaneseq
      %v2201 = vshrl.u32 %v2200, 7
      %v2202 = vsub.s32 2, %v2201
      %v2203 = vrot.slane %v1328, %v2202
      %v2204 = vmul.f32 %v1276, %v2203
      %v2205 = vmul.f32 %v1277, %v2203
      %v2206 = vmul.f32 %v1278, %v2203
      %v2207 = vmul.f32 %v1279, %v2203
      %v2208 = vmul.f32 %v1280, %v2203
      %v2209 = vmul.f32 %v1281, %v2203
      %v2210 = vmul.f32 %v1282, %v2203
      %v2211 = vmul.f32 %v1283, %v2203
      %v2212 = vmul.f32 %v1284, %v2203
      %v2213 = vmul.f32 %v1285, %v2203
      %v2214 = vmul.f32 %v1286, %v2203
      %v2215 = vmul.f32 %v1287, %v2203
      %v2216 = vmul.f32 %v1288, %v2203
      %v2217 = vmul.f32 %v1289, %v2203
      %v2218 = vmul.f32 %v1290, %v2203
      %v2219 = vmul.f32 %v1291, %v2203
      %v2220 = vmul.f32 %v1292, %v2203
      %v2221 = vmul.f32 %v1293, %v2203
      %v2222 = vmul.f32 %v1294, %v2203
      %v2223 = vmul.f32 %v1295, %v2203
      %v2224 = vmul.f32 %v1296, %v2203
      %v2225 = vmul.f32 %v1297, %v2203
      %v2226 = vmul.f32 %v1298, %v2203
      %v2227 = vmul.f32 %v1299, %v2203
      %v2228 = vmul.f32 %v1300, %v2203
      %v2229 = vmul.f32 %v1301, %v2203
      %v2230 = vmul.f32 %v1302, %v2203
      %v2231 = vmul.f32 %v1303, %v2203
      %v2232 = vmul.f32 %v1304, %v2203
      %v2233 = vmul.f32 %v1305, %v2203
      %v2234 = vmul.f32 %v1306, %v2203
      %v2235 = vmul.f32 %v1307, %v2203
      %v2236 = vmul.f32 %v1308, %v2203
      %v2237 = vmul.f32 %v1309, %v2203
      %v2238 = vmul.f32 %v1310, %v2203
      %v2239 = vmul.f32 %v1311, %v2203
      %v2240 = vmul.f32 %v1312, %v2203
      %v2241 = vmul.f32 %v1313, %v2203
      %v2242 = vmul.f32 %v1314, %v2203
      %v2243 = vmul.f32 %v1315, %v2203
      %v2244 = vmul.f32 %v1316, %v2203
      %v2245 = vmul.f32 %v1317, %v2203
      %v2246 = vmul.f32 %v1318, %v2203
      %v2247 = vmul.f32 %v1319, %v2203
      %v2248 = vmul.f32 %v1320, %v2203
      %v2249 = vmul.f32 %v1321, %v2203
      %v2250 = vmul.f32 %v1322, %v2203
      %v2251 = vmul.f32 %v1323, %v2203
      %v2300 = vrot.slane %v2204, 2
      %v2301 = vrot.slane %v2205, 2
      %v2302 = vsel %vm1743, %v2300, %v2301
      %v2303 = vrot.slane %v2206, 2
      %v2304 = vsel %vm1743, %v2301, %v2303
      %v2305 = vrot.slane %v2207, 2
      %v2306 = vrot.slane %v2208, 2
      %v2307 = vsel %vm1743, %v2305, %v2306
      %v2308 = vrot.slane %v2209, 2
      %v2309 = vsel %vm1743, %v2306, %v2308
      %v2310 = vrot.slane %v2210, 2
      %v2311 = vrot.slane %v2211, 2
      %v2312 = vsel %vm1743, %v2310, %v2311
      %v2313 = vrot.slane %v2212, 2
      %v2314 = vsel %vm1743, %v2311, %v2313
      %v2315 = vrot.slane %v2213, 2
      %v2316 = vrot.slane %v2214, 2
      %v2317 = vsel %vm1743, %v2315, %v2316
      %v2318 = vrot.slane %v2215, 2
      %v2319 = vsel %vm1743, %v2316, %v2318
      %v2320 = vrot.slane %v2216, 2
      %v2321 = vrot.slane %v2217, 2
      %v2322 = vsel %vm1743, %v2320, %v2321
      %v2323 = vrot.slane %v2218, 2
      %v2324 = vsel %vm1743, %v2321, %v2323
      %v2325 = vrot.slane %v2219, 2
      %v2326 = vrot.slane %v2220, 2
      %v2327 = vsel %vm1743, %v2325, %v2326
      %v2328 = vrot.slane %v2221, 2
      %v2329 = vsel %vm1743, %v2326, %v2328
      %v2330 = vrot.slane %v2222, 2
      %v2331 = vrot.slane %v2223, 2
      %v2332 = vsel %vm1743, %v2330, %v2331
      %v2333 = vrot.slane %v2224, 2
      %v2334 = vsel %vm1743, %v2331, %v2333
      %v2335 = vrot.slane %v2225, 2
      %v2336 = vrot.slane %v2226, 2
      %v2337 = vsel %vm1743, %v2335, %v2336
      %v2338 = vrot.slane %v2227, 2
      %v2339 = vsel %vm1743, %v2336, %v2338
      %v2340 = vrot.slane %v2228, 2
      %v2341 = vrot.slane %v2229, 2
      %v2342 = vsel %vm1743, %v2340, %v2341
      %v2343 = vrot.slane %v2230, 2
      %v2344 = vsel %vm1743, %v2341, %v2343
      %v2345 = vrot.slane %v2231, 2
      %v2346 = vrot.slane %v2232, 2
      %v2347 = vsel %vm1743, %v2345, %v2346
      %v2348 = vrot.slane %v2233, 2
      %v2349 = vsel %vm1743, %v2346, %v2348
      %v2350 = vrot.slane %v2234, 2
      %v2351 = vrot.slane %v2235, 2
      %v2352 = vsel %vm1743, %v2350, %v2351
      %v2353 = vrot.slane %v2236, 2
      %v2354 = vsel %vm1743, %v2351, %v2353
      %v2355 = vrot.slane %v2237, 2
      %v2356 = vrot.slane %v2238, 2
      %v2357 = vsel %vm1743, %v2355, %v2356
      %v2358 = vrot.slane %v2239, 2
      %v2359 = vsel %vm1743, %v2356, %v2358
      %v2360 = vrot.slane %v2240, 2
      %v2361 = vrot.slane %v2241, 2
      %v2362 = vsel %vm1743, %v2360, %v2361
      %v2363 = vrot.slane %v2242, 2
      %v2364 = vsel %vm1743, %v2361, %v2363
      %v2365 = vrot.slane %v2243, 2
      %v2366 = vrot.slane %v2244, 2
      %v2367 = vsel %vm1743, %v2365, %v2366
      %v2368 = vrot.slane %v2245, 2
      %v2369 = vsel %vm1743, %v2366, %v2368
      %v2370 = vrot.slane %v2246, 2
      %v2371 = vrot.slane %v2247, 2
      %v2372 = vsel %vm1743, %v2370, %v2371
      %v2373 = vrot.slane %v2248, 2
      %v2374 = vsel %vm1743, %v2371, %v2373
      %v2375 = vrot.slane %v2249, 2
      %v2376 = vrot.slane %v2250, 2
      %v2377 = vsel %vm1743, %v2375, %v2376
      %v2378 = vrot.slane %v2251, 2
      %v2379 = vsel %vm1743, %v2376, %v2378
      %v2412 = vadd.f32 %v2168, %v2302
      %v2413 = vadd.f32 %v2169, %v2304
      %v2414 = vadd.f32 %v2170, %v2307
      %v2415 = vadd.f32 %v2171, %v2309
      %v2416 = vadd.f32 %v2172, %v2312
      %v2417 = vadd.f32 %v2173, %v2314
      %v2418 = vadd.f32 %v2174, %v2317
      %v2419 = vadd.f32 %v2175, %v2319
      %v2420 = vadd.f32 %v2176, %v2322
      %v2421 = vadd.f32 %v2177, %v2324
      %v2422 = vadd.f32 %v2178, %v2327
      %v2423 = vadd.f32 %v2179, %v2329
      %v2424 = vadd.f32 %v2180, %v2332
      %v2425 = vadd.f32 %v2181, %v2334
      %v2426 = vadd.f32 %v2182, %v2337
      %v2427 = vadd.f32 %v2183, %v2339
      %v2428 = vadd.f32 %v2184, %v2342
      %v2429 = vadd.f32 %v2185, %v2344
      %v2430 = vadd.f32 %v2186, %v2347
      %v2431 = vadd.f32 %v2187, %v2349
      %v2432 = vadd.f32 %v2188, %v2352
      %v2433 = vadd.f32 %v2189, %v2354
      %v2434 = vadd.f32 %v2190, %v2357
      %v2435 = vadd.f32 %v2191, %v2359
      %v2436 = vadd.f32 %v2192, %v2362
      %v2437 = vadd.f32 %v2193, %v2364
      %v2438 = vadd.f32 %v2194, %v2367
      %v2439 = vadd.f32 %v2195, %v2369
      %v2440 = vadd.f32 %v2196, %v2372
      %v2441 = vadd.f32 %v2197, %v2374
      %v2442 = vadd.f32 %v2198, %v2377
      %v2443 = vadd.f32 %v2199, %v2379
      %v2444 = vlaneseq
      %v2445 = vshrl.u32 %v2444, 7
      %v2446 = vsub.s32 0, %v2445
      %v2447 = vrot.slane %v1329, %v2446
      %v2448 = vmul.f32 %v1279, %v2447
      %v2449 = vmul.f32 %v1280, %v2447
      %v2450 = vmul.f32 %v1282, %v2447
      %v2451 = vmul.f32 %v1283, %v2447
      %v2452 = vmul.f32 %v1285, %v2447
      %v2453 = vmul.f32 %v1286, %v2447
      %v2454 = vmul.f32 %v1288, %v2447
      %v2455 = vmul.f32 %v1289, %v2447
      %v2456 = vmul.f32 %v1291, %v2447
      %v2457 = vmul.f32 %v1292, %v2447
      %v2458 = vmul.f32 %v1294, %v2447
      %v2459 = vmul.f32 %v1295, %v2447
      %v2460 = vmul.f32 %v1297, %v2447
      %v2461 = vmul.f32 %v1298, %v2447
      %v2462 = vmul.f32 %v1300, %v2447
      %v2463 = vmul.f32 %v1301, %v2447
      %v2464 = vmul.f32 %v1303, %v2447
      %v2465 = vmul.f32 %v1304, %v2447
      %v2466 = vmul.f32 %v1306, %v2447
      %v2467 = vmul.f32 %v1307, %v2447
      %v2468 = vmul.f32 %v1309, %v2447
      %v2469 = vmul.f32 %v1310, %v2447
      %v2470 = vmul.f32 %v1312, %v2447
      %v2471 = vmul.f32 %v1313, %v2447
      %v2472 = vmul.f32 %v1315, %v2447
      %v2473 = vmul.f32 %v1316, %v2447
      %v2474 = vmul.f32 %v1318, %v2447
      %v2475 = vmul.f32 %v1319, %v2447
      %v2476 = vmul.f32 %v1321, %v2447
      %v2477 = vmul.f32 %v1322, %v2447
      %v2478 = vmul.f32 %v1324, %v2447
      %v2479 = vmul.f32 %v1325, %v2447
      %v2480 = vadd.f32 %v2412, %v2448
      %v2481 = vadd.f32 %v2413, %v2449
      %v2482 = vadd.f32 %v2414, %v2450
      %v2483 = vadd.f32 %v2415, %v2451
      %v2484 = vadd.f32 %v2416, %v2452
      %v2485 = vadd.f32 %v2417, %v2453
      %v2486 = vadd.f32 %v2418, %v2454
      %v2487 = vadd.f32 %v2419, %v2455
      %v2488 = vadd.f32 %v2420, %v2456
      %v2489 = vadd.f32 %v2421, %v2457
      %v2490 = vadd.f32 %v2422, %v2458
      %v2491 = vadd.f32 %v2423, %v2459
      %v2492 = vadd.f32 %v2424, %v2460
      %v2493 = vadd.f32 %v2425, %v2461
      %v2494 = vadd.f32 %v2426, %v2462
      %v2495 = vadd.f32 %v2427, %v2463
      %v2496 = vadd.f32 %v2428, %v2464
      %v2497 = vadd.f32 %v2429, %v2465
      %v2498 = vadd.f32 %v2430, %v2466
      %v2499 = vadd.f32 %v2431, %v2467
      %v2500 = vadd.f32 %v2432, %v2468
      %v2501 = vadd.f32 %v2433, %v2469
      %v2502 = vadd.f32 %v2434, %v2470
      %v2503 = vadd.f32 %v2435, %v2471
      %v2504 = vadd.f32 %v2436, %v2472
      %v2505 = vadd.f32 %v2437, %v2473
      %v2506 = vadd.f32 %v2438, %v2474
      %v2507 = vadd.f32 %v2439, %v2475
      %v2508 = vadd.f32 %v2440, %v2476
      %v2509 = vadd.f32 %v2441, %v2477
      %v2510 = vadd.f32 %v2442, %v2478
      %v2511 = vadd.f32 %v2443, %v2479
      %v2512 = vlaneseq
      %v2513 = vshrl.u32 %v2512, 7
      %v2514 = vsub.s32 1, %v2513
      %v2515 = vrot.slane %v1329, %v2514
      %v2516 = vmul.f32 %v1279, %v2515
      %v2517 = vmul.f32 %v1280, %v2515
      %v2518 = vmul.f32 %v1281, %v2515
      %v2519 = vmul.f32 %v1282, %v2515
      %v2520 = vmul.f32 %v1283, %v2515
      %v2521 = vmul.f32 %v1284, %v2515
      %v2522 = vmul.f32 %v1285, %v2515
      %v2523 = vmul.f32 %v1286, %v2515
      %v2524 = vmul.f32 %v1287, %v2515
      %v2525 = vmul.f32 %v1288, %v2515
      %v2526 = vmul.f32 %v1289, %v2515
      %v2527 = vmul.f32 %v1290, %v2515
      %v2528 = vmul.f32 %v1291, %v2515
      %v2529 = vmul.f32 %v1292, %v2515
      %v2530 = vmul.f32 %v1293, %v2515
      %v2531 = vmul.f32 %v1294, %v2515
      %v2532 = vmul.f32 %v1295, %v2515
      %v2533 = vmul.f32 %v1296, %v2515
      %v2534 = vmul.f32 %v1297, %v2515
      %v2535 = vmul.f32 %v1298, %v2515
      %v2536 = vmul.f32 %v1299, %v2515
      %v2537 = vmul.f32 %v1300, %v2515
      %v2538 = vmul.f32 %v1301, %v2515
      %v2539 = vmul.f32 %v1302, %v2515
      %v2540 = vmul.f32 %v1303, %v2515
      %v2541 = vmul.f32 %v1304, %v2515
      %v2542 = vmul.f32 %v1305, %v2515
      %v2543 = vmul.f32 %v1306, %v2515
      %v2544 = vmul.f32 %v1307, %v2515
      %v2545 = vmul.f32 %v1308, %v2515
      %v2546 = vmul.f32 %v1309, %v2515
      %v2547 = vmul.f32 %v1310, %v2515
      %v2548 = vmul.f32 %v1311, %v2515
      %v2549 = vmul.f32 %v1312, %v2515
      %v2550 = vmul.f32 %v1313, %v2515
      %v2551 = vmul.f32 %v1314, %v2515
      %v2552 = vmul.f32 %v1315, %v2515
      %v2553 = vmul.f32 %v1316, %v2515
      %v2554 = vmul.f32 %v1317, %v2515
      %v2555 = vmul.f32 %v1318, %v2515
      %v2556 = vmul.f32 %v1319, %v2515
      %v2557 = vmul.f32 %v1320, %v2515
      %v2558 = vmul.f32 %v1321, %v2515
      %v2559 = vmul.f32 %v1322, %v2515
      %v2560 = vmul.f32 %v1323, %v2515
      %v2561 = vmul.f32 %v1324, %v2515
      %v2562 = vmul.f32 %v1325, %v2515
      %v2563 = vmul.f32 %v1326, %v2515
      %v2612 = vrot.slane %v2516, 1
      %v2613 = vrot.slane %v2517, 1
      %v2614 = vsel %vm1498, %v2612, %v2613
      %v2615 = vrot.slane %v2518, 1
      %v2616 = vsel %vm1498, %v2613, %v2615
      %v2617 = vrot.slane %v2519, 1
      %v2618 = vrot.slane %v2520, 1
      %v2619 = vsel %vm1498, %v2617, %v2618
      %v2620 = vrot.slane %v2521, 1
      %v2621 = vsel %vm1498, %v2618, %v2620
      %v2622 = vrot.slane %v2522, 1
      %v2623 = vrot.slane %v2523, 1
      %v2624 = vsel %vm1498, %v2622, %v2623
      %v2625 = vrot.slane %v2524, 1
      %v2626 = vsel %vm1498, %v2623, %v2625
      %v2627 = vrot.slane %v2525, 1
      %v2628 = vrot.slane %v2526, 1
      %v2629 = vsel %vm1498, %v2627, %v2628
      %v2630 = vrot.slane %v2527, 1
      %v2631 = vsel %vm1498, %v2628, %v2630
      %v2632 = vrot.slane %v2528, 1
      %v2633 = vrot.slane %v2529, 1
      %v2634 = vsel %vm1498, %v2632, %v2633
      %v2635 = vrot.slane %v2530, 1
      %v2636 = vsel %vm1498, %v2633, %v2635
      %v2637 = vrot.slane %v2531, 1
      %v2638 = vrot.slane %v2532, 1
      %v2639 = vsel %vm1498, %v2637, %v2638
      %v2640 = vrot.slane %v2533, 1
      %v2641 = vsel %vm1498, %v2638, %v2640
      %v2642 = vrot.slane %v2534, 1
      %v2643 = vrot.slane %v2535, 1
      %v2644 = vsel %vm1498, %v2642, %v2643
      %v2645 = vrot.slane %v2536, 1
      %v2646 = vsel %vm1498, %v2643, %v2645
      %v2647 = vrot.slane %v2537, 1
      %v2648 = vrot.slane %v2538, 1
      %v2649 = vsel %vm1498, %v2647, %v2648
      %v2650 = vrot.slane %v2539, 1
      %v2651 = vsel %vm1498, %v2648, %v2650
      %v2652 = vrot.slane %v2540, 1
      %v2653 = vrot.slane %v2541, 1
      %v2654 = vsel %vm1498, %v2652, %v2653
      %v2655 = vrot.slane %v2542, 1
      %v2656 = vsel %vm1498, %v2653, %v2655
      %v2657 = vrot.slane %v2543, 1
      %v2658 = vrot.slane %v2544, 1
      %v2659 = vsel %vm1498, %v2657, %v2658
      %v2660 = vrot.slane %v2545, 1
      %v2661 = vsel %vm1498, %v2658, %v2660
      %v2662 = vrot.slane %v2546, 1
      %v2663 = vrot.slane %v2547, 1
      %v2664 = vsel %vm1498, %v2662, %v2663
      %v2665 = vrot.slane %v2548, 1
      %v2666 = vsel %vm1498, %v2663, %v2665
      %v2667 = vrot.slane %v2549, 1
      %v2668 = vrot.slane %v2550, 1
      %v2669 = vsel %vm1498, %v2667, %v2668
      %v2670 = vrot.slane %v2551, 1
      %v2671 = vsel %vm1498, %v2668, %v2670
      %v2672 = vrot.slane %v2552, 1
      %v2673 = vrot.slane %v2553, 1
      %v2674 = vsel %vm1498, %v2672, %v2673
      %v2675 = vrot.slane %v2554, 1
      %v2676 = vsel %vm1498, %v2673, %v2675
      %v2677 = vrot.slane %v2555, 1
      %v2678 = vrot.slane %v2556, 1
      %v2679 = vsel %vm1498, %v2677, %v2678
      %v2680 = vrot.slane %v2557, 1
      %v2681 = vsel %vm1498, %v2678, %v2680
      %v2682 = vrot.slane %v2558, 1
      %v2683 = vrot.slane %v2559, 1
      %v2684 = vsel %vm1498, %v2682, %v2683
      %v2685 = vrot.slane %v2560, 1
      %v2686 = vsel %vm1498, %v2683, %v2685
      %v2687 = vrot.slane %v2561, 1
      %v2688 = vrot.slane %v2562, 1
      %v2689 = vsel %vm1498, %v2687, %v2688
      %v2690 = vrot.slane %v2563, 1
      %v2691 = vsel %vm1498, %v2688, %v2690
      %v2724 = vadd.f32 %v2480, %v2614
      %v2725 = vadd.f32 %v2481, %v2616
      %v2726 = vadd.f32 %v2482, %v2619
      %v2727 = vadd.f32 %v2483, %v2621
      %v2728 = vadd.f32 %v2484, %v2624
      %v2729 = vadd.f32 %v2485, %v2626
      %v2730 = vadd.f32 %v2486, %v2629
      %v2731 = vadd.f32 %v2487, %v2631
      %v2732 = vadd.f32 %v2488, %v2634
      %v2733 = vadd.f32 %v2489, %v2636
      %v2734 = vadd.f32 %v2490, %v2639
      %v2735 = vadd.f32 %v2491, %v2641
      %v2736 = vadd.f32 %v2492, %v2644
      %v2737 = vadd.f32 %v2493, %v2646
      %v2738 = vadd.f32 %v2494, %v2649
      %v2739 = vadd.f32 %v2495, %v2651
      %v2740 = vadd.f32 %v2496, %v2654
      %v2741 = vadd.f32 %v2497, %v2656
      %v2742 = vadd.f32 %v2498, %v2659
      %v2743 = vadd.f32 %v2499, %v2661
      %v2744 = vadd.f32 %v2500, %v2664
      %v2745 = vadd.f32 %v2501, %v2666
      %v2746 = vadd.f32 %v2502, %v2669
      %v2747 = vadd.f32 %v2503, %v2671
      %v2748 = vadd.f32 %v2504, %v2674
      %v2749 = vadd.f32 %v2505, %v2676
      %v2750 = vadd.f32 %v2506, %v2679
      %v2751 = vadd.f32 %v2507, %v2681
      %v2752 = vadd.f32 %v2508, %v2684
      %v2753 = vadd.f32 %v2509, %v2686
      %v2754 = vadd.f32 %v2510, %v2689
      %v2755 = vadd.f32 %v2511, %v2691
      %v2756 = vlaneseq
      %v2757 = vshrl.u32 %v2756, 7
      %v2758 = vsub.s32 2, %v2757
      %v2759 = vrot.slane %v1329, %v2758
      %v2760 = vmul.f32 %v1279, %v2759
      %v2761 = vmul.f32 %v1280, %v2759
      %v2762 = vmul.f32 %v1281, %v2759
      %v2763 = vmul.f32 %v1282, %v2759
      %v2764 = vmul.f32 %v1283, %v2759
      %v2765 = vmul.f32 %v1284, %v2759
      %v2766 = vmul.f32 %v1285, %v2759
      %v2767 = vmul.f32 %v1286, %v2759
      %v2768 = vmul.f32 %v1287, %v2759
      %v2769 = vmul.f32 %v1288, %v2759
      %v2770 = vmul.f32 %v1289, %v2759
      %v2771 = vmul.f32 %v1290, %v2759
      %v2772 = vmul.f32 %v1291, %v2759
      %v2773 = vmul.f32 %v1292, %v2759
      %v2774 = vmul.f32 %v1293, %v2759
      %v2775 = vmul.f32 %v1294, %v2759
      %v2776 = vmul.f32 %v1295, %v2759
      %v2777 = vmul.f32 %v1296, %v2759
      %v2778 = vmul.f32 %v1297, %v2759
      %v2779 = vmul.f32 %v1298, %v2759
      %v2780 = vmul.f32 %v1299, %v2759
      %v2781 = vmul.f32 %v1300, %v2759
      %v2782 = vmul.f32 %v1301, %v2759
      %v2783 = vmul.f32 %v1302, %v2759
      %v2784 = vmul.f32 %v1303, %v2759
      %v2785 = vmul.f32 %v1304, %v2759
      %v2786 = vmul.f32 %v1305, %v2759
      %v2787 = vmul.f32 %v1306, %v2759
      %v2788 = vmul.f32 %v1307, %v2759
      %v2789 = vmul.f32 %v1308, %v2759
      %v2790 = vmul.f32 %v1309, %v2759
      %v2791 = vmul.f32 %v1310, %v2759
      %v2792 = vmul.f32 %v1311, %v2759
      %v2793 = vmul.f32 %v1312, %v2759
      %v2794 = vmul.f32 %v1313, %v2759
      %v2795 = vmul.f32 %v1314, %v2759
      %v2796 = vmul.f32 %v1315, %v2759
      %v2797 = vmul.f32 %v1316, %v2759
      %v2798 = vmul.f32 %v1317, %v2759
      %v2799 = vmul.f32 %v1318, %v2759
      %v2800 = vmul.f32 %v1319, %v2759
      %v2801 = vmul.f32 %v1320, %v2759
      %v2802 = vmul.f32 %v1321, %v2759
      %v2803 = vmul.f32 %v1322, %v2759
      %v2804 = vmul.f32 %v1323, %v2759
      %v2805 = vmul.f32 %v1324, %v2759
      %v2806 = vmul.f32 %v1325, %v2759
      %v2807 = vmul.f32 %v1326, %v2759
      %v2856 = vrot.slane %v2760, 2
      %v2857 = vrot.slane %v2761, 2
      %v2858 = vsel %vm1743, %v2856, %v2857
      %v2859 = vrot.slane %v2762, 2
      %v2860 = vsel %vm1743, %v2857, %v2859
      %v2861 = vrot.slane %v2763, 2
      %v2862 = vrot.slane %v2764, 2
      %v2863 = vsel %vm1743, %v2861, %v2862
      %v2864 = vrot.slane %v2765, 2
      %v2865 = vsel %vm1743, %v2862, %v2864
      %v2866 = vrot.slane %v2766, 2
      %v2867 = vrot.slane %v2767, 2
      %v2868 = vsel %vm1743, %v2866, %v2867
      %v2869 = vrot.slane %v2768, 2
      %v2870 = vsel %vm1743, %v2867, %v2869
      %v2871 = vrot.slane %v2769, 2
      %v2872 = vrot.slane %v2770, 2
      %v2873 = vsel %vm1743, %v2871, %v2872
      %v2874 = vrot.slane %v2771, 2
      %v2875 = vsel %vm1743, %v2872, %v2874
      %v2876 = vrot.slane %v2772, 2
      %v2877 = vrot.slane %v2773, 2
      %v2878 = vsel %vm1743, %v2876, %v2877
      %v2879 = vrot.slane %v2774, 2
      %v2880 = vsel %vm1743, %v2877, %v2879
      %v2881 = vrot.slane %v2775, 2
      %v2882 = vrot.slane %v2776, 2
      %v2883 = vsel %vm1743, %v2881, %v2882
      %v2884 = vrot.slane %v2777, 2
      %v2885 = vsel %vm1743, %v2882, %v2884
      %v2886 = vrot.slane %v2778, 2
      %v2887 = vrot.slane %v2779, 2
      %v2888 = vsel %vm1743, %v2886, %v2887
      %v2889 = vrot.slane %v2780, 2
      %v2890 = vsel %vm1743, %v2887, %v2889
      %v2891 = vrot.slane %v2781, 2
      %v2892 = vrot.slane %v2782, 2
      %v2893 = vsel %vm1743, %v2891, %v2892
      %v2894 = vrot.slane %v2783, 2
      %v2895 = vsel %vm1743, %v2892, %v2894
      %v2896 = vrot.slane %v2784, 2
      %v2897 = vrot.slane %v2785, 2
      %v2898 = vsel %vm1743, %v2896, %v2897
      %v2899 = vrot.slane %v2786, 2
      %v2900 = vsel %vm1743, %v2897, %v2899
      %v2901 = vrot.slane %v2787, 2
      %v2902 = vrot.slane %v2788, 2
      %v2903 = vsel %vm1743, %v2901, %v2902
      %v2904 = vrot.slane %v2789, 2
      %v2905 = vsel %vm1743, %v2902, %v2904
      %v2906 = vrot.slane %v2790, 2
      %v2907 = vrot.slane %v2791, 2
      %v2908 = vsel %vm1743, %v2906, %v2907
      %v2909 = vrot.slane %v2792, 2
      %v2910 = vsel %vm1743, %v2907, %v2909
      %v2911 = vrot.slane %v2793, 2
      %v2912 = vrot.slane %v2794, 2
      %v2913 = vsel %vm1743, %v2911, %v2912
      %v2914 = vrot.slane %v2795, 2
      %v2915 = vsel %vm1743, %v2912, %v2914
      %v2916 = vrot.slane %v2796, 2
      %v2917 = vrot.slane %v2797, 2
      %v2918 = vsel %vm1743, %v2916, %v2917
      %v2919 = vrot.slane %v2798, 2
      %v2920 = vsel %vm1743, %v2917, %v2919
      %v2921 = vrot.slane %v2799, 2
      %v2922 = vrot.slane %v2800, 2
      %v2923 = vsel %vm1743, %v2921, %v2922
      %v2924 = vrot.slane %v2801, 2
      %v2925 = vsel %vm1743, %v2922, %v2924
      %v2926 = vrot.slane %v2802, 2
      %v2927 = vrot.slane %v2803, 2
      %v2928 = vsel %vm1743, %v2926, %v2927
      %v2929 = vrot.slane %v2804, 2
      %v2930 = vsel %vm1743, %v2927, %v2929
      %v2931 = vrot.slane %v2805, 2
      %v2932 = vrot.slane %v2806, 2
      %v2933 = vsel %vm1743, %v2931, %v2932
      %v2934 = vrot.slane %v2807, 2
      %v2935 = vsel %vm1743, %v2932, %v2934
      %v2968 = vadd.f32 %v2724, %v2858
      %v2969 = vadd.f32 %v2725, %v2860
      %v2970 = vadd.f32 %v2726, %v2863
      %v2971 = vadd.f32 %v2727, %v2865
      %v2972 = vadd.f32 %v2728, %v2868
      %v2973 = vadd.f32 %v2729, %v2870
      %v2974 = vadd.f32 %v2730, %v2873
      %v2975 = vadd.f32 %v2731, %v2875
      %v2976 = vadd.f32 %v2732, %v2878
      %v2977 = vadd.f32 %v2733, %v2880
      %v2978 = vadd.f32 %v2734, %v2883
      %v2979 = vadd.f32 %v2735, %v2885
      %v2980 = vadd.f32 %v2736, %v2888
      %v2981 = vadd.f32 %v2737, %v2890
      %v2982 = vadd.f32 %v2738, %v2893
      %v2983 = vadd.f32 %v2739, %v2895
      %v2984 = vadd.f32 %v2740, %v2898
      %v2985 = vadd.f32 %v2741, %v2900
      %v2986 = vadd.f32 %v2742, %v2903
      %v2987 = vadd.f32 %v2743, %v2905
      %v2988 = vadd.f32 %v2744, %v2908
      %v2989 = vadd.f32 %v2745, %v2910
      %v2990 = vadd.f32 %v2746, %v2913
      %v2991 = vadd.f32 %v2747, %v2915
      %v2992 = vadd.f32 %v2748, %v2918
      %v2993 = vadd.f32 %v2749, %v2920
      %v2994 = vadd.f32 %v2750, %v2923
      %v2995 = vadd.f32 %v2751, %v2925
      %v2996 = vadd.f32 %v2752, %v2928
      %v2997 = vadd.f32 %v2753, %v2930
      %v2998 = vadd.f32 %v2754, %v2933
      %v2999 = vadd.f32 %v2755, %v2935
      %v3000 = vld [vmem:[%s4] sm:$0x1]
      %v3002 = vlaneseq
      %v3003 = vshrl.u32 %v3002, 7
      %v3004 = vsub.s32 0, %v3003
      %v3005 = vrot.slane %v3000, %v3004
      %v3007 = vadd.f32 %v2968, %v3005
      %v3008 = vadd.f32 %v2969, %v3005
      %v3009 = vadd.f32 %v2970, %v3005
      %v3010 = vadd.f32 %v2971, %v3005
      %v3011 = vadd.f32 %v2972, %v3005
      %v3012 = vadd.f32 %v2973, %v3005
      %v3013 = vadd.f32 %v2974, %v3005
      %v3014 = vadd.f32 %v2975, %v3005
      %v3015 = vadd.f32 %v2976, %v3005
      %v3016 = vadd.f32 %v2977, %v3005
      %v3017 = vadd.f32 %v2978, %v3005
      %v3018 = vadd.f32 %v2979, %v3005
      %v3019 = vadd.f32 %v2980, %v3005
      %v3020 = vadd.f32 %v2981, %v3005
      %v3021 = vadd.f32 %v2982, %v3005
      %v3022 = vadd.f32 %v2983, %v3005
      %v3023 = vadd.f32 %v2984, %v3005
      %v3024 = vadd.f32 %v2985, %v3005
      %v3025 = vadd.f32 %v2986, %v3005
      %v3026 = vadd.f32 %v2987, %v3005
      %v3027 = vadd.f32 %v2988, %v3005
      %v3028 = vadd.f32 %v2989, %v3005
      %v3029 = vadd.f32 %v2990, %v3005
      %v3030 = vadd.f32 %v2991, %v3005
      %v3031 = vadd.f32 %v2992, %v3005
      %v3032 = vadd.f32 %v2993, %v3005
      %v3033 = vadd.f32 %v2994, %v3005
      %v3034 = vadd.f32 %v2995, %v3005
      %v3035 = vadd.f32 %v2996, %v3005
      %v3036 = vadd.f32 %v2997, %v3005
      %v3037 = vadd.f32 %v2998, %v3005
      %v3038 = vadd.f32 %v2999, %v3005
      %v3039 = vmax.f32 %v3007, 0.0
      %v3040 = vmax.f32 %v3008, 0.0
      %v3041 = vmax.f32 %v3009, 0.0
      %v3042 = vmax.f32 %v3010, 0.0
      %v3043 = vmax.f32 %v3011, 0.0
      %v3044 = vmax.f32 %v3012, 0.0
      %v3045 = vmax.f32 %v3013, 0.0
      %v3046 = vmax.f32 %v3014, 0.0
      %v3047 = vmax.f32 %v3015, 0.0
      %v3048 = vmax.f32 %v3016, 0.0
      %v3049 = vmax.f32 %v3017, 0.0
      %v3050 = vmax.f32 %v3018, 0.0
      %v3051 = vmax.f32 %v3019, 0.0
      %v3052 = vmax.f32 %v3020, 0.0
      %v3053 = vmax.f32 %v3021, 0.0
      %v3054 = vmax.f32 %v3022, 0.0
      %v3055 = vmax.f32 %v3023, 0.0
      %v3056 = vmax.f32 %v3024, 0.0
      %v3057 = vmax.f32 %v3025, 0.0
      %v3058 = vmax.f32 %v3026, 0.0
      %v3059 = vmax.f32 %v3027, 0.0
      %v3060 = vmax.f32 %v3028, 0.0
      %v3061 = vmax.f32 %v3029, 0.0
      %v3062 = vmax.f32 %v3030, 0.0
      %v3063 = vmax.f32 %v3031, 0.0
      %v3064 = vmax.f32 %v3032, 0.0
      %v3065 = vmax.f32 %v3033, 0.0
      %v3066 = vmax.f32 %v3034, 0.0
      %v3067 = vmax.f32 %v3035, 0.0
      %v3068 = vmax.f32 %v3036, 0.0
      %v3069 = vmax.f32 %v3037, 0.0
      %v3070 = vmax.f32 %v3038, 0.0
      %v3071 = vmin.f32 %v3039, 6.0
      %v3072 = vmin.f32 %v3040, 6.0
      %v3073 = vmin.f32 %v3041, 6.0
      %v3074 = vmin.f32 %v3042, 6.0
      %v3075 = vmin.f32 %v3043, 6.0
      %v3076 = vmin.f32 %v3044, 6.0
      %v3077 = vmin.f32 %v3045, 6.0
      %v3078 = vmin.f32 %v3046, 6.0
      %v3079 = vmin.f32 %v3047, 6.0
      %v3080 = vmin.f32 %v3048, 6.0
      %v3081 = vmin.f32 %v3049, 6.0
      %v3082 = vmin.f32 %v3050, 6.0
      %v3083 = vmin.f32 %v3051, 6.0
      %v3084 = vmin.f32 %v3052, 6.0
      %v3085 = vmin.f32 %v3053, 6.0
      %v3086 = vmin.f32 %v3054, 6.0
      %v3087 = vmin.f32 %v3055, 6.0
      %v3088 = vmin.f32 %v3056, 6.0
      %v3089 = vmin.f32 %v3057, 6.0
      %v3090 = vmin.f32 %v3058, 6.0
      %v3091 = vmin.f32 %v3059, 6.0
      %v3092 = vmin.f32 %v3060, 6.0
      %v3093 = vmin.f32 %v3061, 6.0
      %v3094 = vmin.f32 %v3062, 6.0
      %v3095 = vmin.f32 %v3063, 6.0
      %v3096 = vmin.f32 %v3064, 6.0
      %v3097 = vmin.f32 %v3065, 6.0
      %v3098 = vmin.f32 %v3066, 6.0
      %v3099 = vmin.f32 %v3067, 6.0
      %v3100 = vmin.f32 %v3068, 6.0
      %v3101 = vmin.f32 %v3069, 6.0
      %v3102 = vmin.f32 %v3070, 6.0
      %v3103 = vld [vmem:[%s5] sm:$0xff]
      %v3104 = vld [vmem:[%s5 + $0x8] sm:$0xff]
      %v3105 = vld [vmem:[%s5 + $0x10] sm:$0xff]
      %v3106 = vld [vmem:[%s5 + $0x18] sm:$0xff]
      %v3107 = vld [vmem:[%s6] sm:$0x1]
      %v3109 = vlaneseq
      %v3110 = vshrl.u32 %v3109, 7
      %v3111 = vsub.s32 0, %v3110
      %v3112 = vrot.slane %v3107, %v3111
      %vm3114 = vcmask 261120
      %v3116 = vsel %vm3114, %v3071, 0
      %v3119 = vsel %vm3114, %v3072, 0
      %v3122 = vsel %vm3114, %v3073, 0
      %v3125 = vsel %vm3114, %v3074, 0
      %v3128 = vsel %vm3114, %v3075, 0
      %v3131 = vsel %vm3114, %v3076, 0
      %v3134 = vsel %vm3114, %v3077, 0
      %v3137 = vsel %vm3114, %v3078, 0
      %v3140 = vsel %vm3114, %v3079, 0
      %v3143 = vsel %vm3114, %v3080, 0
      %v3146 = vsel %vm3114, %v3081, 0
      %v3149 = vsel %vm3114, %v3082, 0
      %v3152 = vsel %vm3114, %v3083, 0
      %v3155 = vsel %vm3114, %v3084, 0
      %v3158 = vsel %vm3114, %v3085, 0
      %v3161 = vsel %vm3114, %v3086, 0
      %v3164 = vsel %vm3114, %v3087, 0
      %v3167 = vsel %vm3114, %v3088, 0
      %v3170 = vsel %vm3114, %v3089, 0
      %v3173 = vsel %vm3114, %v3090, 0
      %v3176 = vsel %vm3114, %v3091, 0
      %v3179 = vsel %vm3114, %v3092, 0
      %v3182 = vsel %vm3114, %v3093, 0
      %v3185 = vsel %vm3114, %v3094, 0
      %v3188 = vsel %vm3114, %v3095, 0
      %v3191 = vsel %vm3114, %v3096, 0
      %v3194 = vsel %vm3114, %v3097, 0
      %v3197 = vsel %vm3114, %v3098, 0
      %v3200 = vsel %vm3114, %v3099, 0
      %v3203 = vsel %vm3114, %v3100, 0
      %v3206 = vsel %vm3114, %v3101, 0
      %v3209 = vsel %vm3114, %v3102, 0
      %3211 = vmatprep.subr.mxu0 0.0
      %3212 = vmatpush1.msra.mxu0 %v3103
      %3213 = vmatprep.subr.mxu0 0.0
      %3214 = vmatpush1.msra.mxu0 %v3104
      %3215 = vmatprep.subr.mxu0 0.0
      %3216 = vmatpush1.msra.mxu0 %v3105
      %3217 = vmatprep.subr.mxu0 0.0
      %3218 = vmatpush1.msra.mxu0 %v3106
      %3219 = vmatprep.subr.mxu0 0.0
      %3220 = vmatpush1.msra.mxu0 0.0
      %3221 = vmatprep.subr.mxu0 0.0
      %3222 = vmatpush1.msra.mxu0 0.0
      %3223 = vmatprep.subr.mxu0 0.0
      %3224 = vmatpush1.msra.mxu0 0.0
      %3225 = vmatprep.subr.mxu0 0.0
      %3226 = vmatpush1.msra.mxu0 0.0
      %3227 = vmatprep.subr.mxu0 0.0
      %3228 = vmatpush1.msra.mxu0 0.0
      %3229 = vmatprep.subr.mxu0 0.0
      %3230 = vmatpush1.msra.mxu0 0.0
      %3231 = vmatprep.subr.mxu0 0.0
      %3232 = vmatpush1.msra.mxu0 0.0
      %3233 = vmatprep.subr.mxu0 0.0
      %3234 = vmatpush1.msra.mxu0 0.0
      %3235 = vmatprep.subr.mxu0 0.0
      %3236 = vmatpush1.msra.mxu0 0.0
      %3237 = vmatprep.subr.mxu0 0.0
      %3238 = vmatpush1.msra.mxu0 0.0
      %3239 = vmatprep.subr.mxu0 0.0
      %3240 = vmatpush1.msra.mxu0 0.0
      %3241 = vmatprep.subr.mxu0 0.0
      %3242 = vmatpush1.msra.mxu0 0.0
      %3243 = vmatprep.subr.mxu0 0.0
      %3244 = vmatpush1.msra.mxu0 0.0
      %3245 = vmatprep.subr.mxu0 0.0
      %3246 = vmatpush1.msra.mxu0 0.0
      %3247 = vmatprep.subr.mxu0 0.0
      %3248 = vmatpush1.msra.mxu0 0.0
      %3249 = vmatprep.subr.mxu0 0.0
      %3250 = vmatpush1.msra.mxu0 0.0
      %3251 = vmatprep.subr.mxu0 0.0
      %3252 = vmatpush1.msra.mxu0 0.0
      %3253 = vmatprep.subr.mxu0 0.0
      %3254 = vmatpush1.msra.mxu0 0.0
      %3255 = vmatprep.subr.mxu0 0.0
      %3256 = vmatpush1.msra.mxu0 0.0
      %3257 = vmatprep.subr.mxu0 0.0
      %3258 = vmatpush1.msra.mxu0 0.0
      %3259 = vmatprep.subr.mxu0 0.0
      %3260 = vmatpush1.msra.mxu0 0.0
      %3261 = vmatprep.subr.mxu0 0.0
      %3262 = vmatpush1.msra.mxu0 0.0
      %3263 = vmatprep.subr.mxu0 0.0
      %3264 = vmatpush1.msra.mxu0 0.0
      %3265 = vmatprep.subr.mxu0 0.0
      %3266 = vmatpush1.msra.mxu0 0.0
      %3267 = vmatprep.subr.mxu0 0.0
      %3268 = vmatpush1.msra.mxu0 0.0
      %3269 = vmatprep.subr.mxu0 0.0
      %3270 = vmatpush1.msra.mxu0 0.0
      %3271 = vmatprep.subr.mxu0 0.0
      %3272 = vmatpush1.msra.mxu0 0.0
      %3273 = vmatprep.subr.mxu0 0.0
      %3274 = vmatpush1.msra.mxu0 0.0
      %3275 = vmatprep.mubr.f32.mxu0 0.0
      %3276 = vmatmul.mubr.f32.gmra.mrb[0].mxu0 %v3116
      %v3277 = vpop.f32.mrb[0].mxu0
      %v3278 = vadd.f32 %v3112, %v3277
      %v3279 = vpop.f32.mrb[0].mxu0
      %3280 = vmatprep.mubr.f32.mxu0 0.0
      %3281 = vmatmul.mubr.f32.gmra.mrb[0].mxu0 %v3119
      %v3282 = vpop.f32.mrb[0].mxu0
      %v3283 = vadd.f32 %v3112, %v3282
      %v3284 = vpop.f32.mrb[0].mxu0
      %3285 = vmatprep.mubr.f32.mxu0 0.0
      %3286 = vmatmul.mubr.f32.gmra.mrb[0].mxu0 %v3122
      %v3287 = vpop.f32.mrb[0].mxu0
      %v3288 = vadd.f32 %v3112, %v3287
      %v3289 = vpop.f32.mrb[0].mxu0
      %3290 = vmatprep.mubr.f32.mxu0 0.0
      %3291 = vmatmul.mubr.f32.gmra.mrb[0].mxu0 %v3125
      %v3292 = vpop.f32.mrb[0].mxu0
      %v3293 = vadd.f32 %v3112, %v3292
      %v3294 = vpop.f32.mrb[0].mxu0
      %3295 = vmatprep.mubr.f32.mxu0 0.0
      %3296 = vmatmul.mubr.f32.gmra.mrb[0].mxu0 %v3128
      %v3297 = vpop.f32.mrb[0].mxu0
      %v3298 = vadd.f32 %v3112, %v3297
      %v3299 = vpop.f32.mrb[0].mxu0
      %3300 = vmatprep.mubr.f32.mxu0 0.0
      %3301 = vmatmul.mubr.f32.gmra.mrb[0].mxu0 %v3131
      %v3302 = vpop.f32.mrb[0].mxu0
      %v3303 = vadd.f32 %v3112, %v3302
      %v3304 = vpop.f32.mrb[0].mxu0
      %3305 = vmatprep.mubr.f32.mxu0 0.0
      %3306 = vmatmul.mubr.f32.gmra.mrb[0].mxu0 %v3134
      %v3307 = vpop.f32.mrb[0].mxu0
      %v3308 = vadd.f32 %v3112, %v3307
      %v3309 = vpop.f32.mrb[0].mxu0
      %3310 = vmatprep.mubr.f32.mxu0 0.0
      %3311 = vmatmul.mubr.f32.gmra.mrb[0].mxu0 %v3137
      %v3312 = vpop.f32.mrb[0].mxu0
      %v3313 = vadd.f32 %v3112, %v3312
      %v3314 = vpop.f32.mrb[0].mxu0
      %3315 = vmatprep.mubr.f32.mxu0 0.0
      %3316 = vmatmul.mubr.f32.gmra.mrb[0].mxu0 %v3140
      %v3317 = vpop.f32.mrb[0].mxu0
      %v3318 = vadd.f32 %v3112, %v3317
      %v3319 = vpop.f32.mrb[0].mxu0
      %3320 = vmatprep.mubr.f32.mxu0 0.0
      %3321 = vmatmul.mubr.f32.gmra.mrb[0].mxu0 %v3143
      %v3322 = vpop.f32.mrb[0].mxu0
      %v3323 = vadd.f32 %v3112, %v3322
      %v3324 = vpop.f32.mrb[0].mxu0
      %3325 = vmatprep.mubr.f32.mxu0 0.0
      %3326 = vmatmul.mubr.f32.gmra.mrb[0].mxu0 %v3146
      %v3327 = vpop.f32.mrb[0].mxu0
      %v3328 = vadd.f32 %v3112, %v3327
      %v3329 = vpop.f32.mrb[0].mxu0
      %3330 = vmatprep.mubr.f32.mxu0 0.0
      %3331 = vmatmul.mubr.f32.gmra.mrb[0].mxu0 %v3149
      %v3332 = vpop.f32.mrb[0].mxu0
      %v3333 = vadd.f32 %v3112, %v3332
      %v3334 = vpop.f32.mrb[0].mxu0
      %3335 = vmatprep.mubr.f32.mxu0 0.0
      %3336 = vmatmul.mubr.f32.gmra.mrb[0].mxu0 %v3152
      %v3337 = vpop.f32.mrb[0].mxu0
      %v3338 = vadd.f32 %v3112, %v3337
      %v3339 = vpop.f32.mrb[0].mxu0
      %3340 = vmatprep.mubr.f32.mxu0 0.0
      %3341 = vmatmul.mubr.f32.gmra.mrb[0].mxu0 %v3155
      %v3342 = vpop.f32.mrb[0].mxu0
      %v3343 = vadd.f32 %v3112, %v3342
      %v3344 = vpop.f32.mrb[0].mxu0
      %3345 = vmatprep.mubr.f32.mxu0 0.0
      %3346 = vmatmul.mubr.f32.gmra.mrb[0].mxu0 %v3158
      %v3347 = vpop.f32.mrb[0].mxu0
      %v3348 = vadd.f32 %v3112, %v3347
      %v3349 = vpop.f32.mrb[0].mxu0
      %3350 = vmatprep.mubr.f32.mxu0 0.0
      %3351 = vmatmul.mubr.f32.gmra.mrb[0].mxu0 %v3161
      %v3352 = vpop.f32.mrb[0].mxu0
      %v3353 = vadd.f32 %v3112, %v3352
      %v3354 = vpop.f32.mrb[0].mxu0
      %3355 = vmatprep.mubr.f32.mxu0 0.0
      %3356 = vmatmul.mubr.f32.gmra.mrb[0].mxu0 %v3164
      %v3357 = vpop.f32.mrb[0].mxu0
      %v3358 = vadd.f32 %v3112, %v3357
      %v3359 = vpop.f32.mrb[0].mxu0
      %3360 = vmatprep.mubr.f32.mxu0 0.0
      %3361 = vmatmul.mubr.f32.gmra.mrb[0].mxu0 %v3167
      %v3362 = vpop.f32.mrb[0].mxu0
      %v3363 = vadd.f32 %v3112, %v3362
      %v3364 = vpop.f32.mrb[0].mxu0
      %3365 = vmatprep.mubr.f32.mxu0 0.0
      %3366 = vmatmul.mubr.f32.gmra.mrb[0].mxu0 %v3170
      %v3367 = vpop.f32.mrb[0].mxu0
      %v3368 = vadd.f32 %v3112, %v3367
      %v3369 = vpop.f32.mrb[0].mxu0
      %3370 = vmatprep.mubr.f32.mxu0 0.0
      %3371 = vmatmul.mubr.f32.gmra.mrb[0].mxu0 %v3173
      %v3372 = vpop.f32.mrb[0].mxu0
      %v3373 = vadd.f32 %v3112, %v3372
      %v3374 = vpop.f32.mrb[0].mxu0
      %3375 = vmatprep.mubr.f32.mxu0 0.0
      %3376 = vmatmul.mubr.f32.gmra.mrb[0].mxu0 %v3176
      %v3377 = vpop.f32.mrb[0].mxu0
      %v3378 = vadd.f32 %v3112, %v3377
      %v3379 = vpop.f32.mrb[0].mxu0
      %3380 = vmatprep.mubr.f32.mxu0 0.0
      %3381 = vmatmul.mubr.f32.gmra.mrb[0].mxu0 %v3179
      %v3382 = vpop.f32.mrb[0].mxu0
      %v3383 = vadd.f32 %v3112, %v3382
      %v3384 = vpop.f32.mrb[0].mxu0
      %3385 = vmatprep.mubr.f32.mxu0 0.0
      %3386 = vmatmul.mubr.f32.gmra.mrb[0].mxu0 %v3182
      %v3387 = vpop.f32.mrb[0].mxu0
      %v3388 = vadd.f32 %v3112, %v3387
      %v3389 = vpop.f32.mrb[0].mxu0
      %3390 = vmatprep.mubr.f32.mxu0 0.0
      %3391 = vmatmul.mubr.f32.gmra.mrb[0].mxu0 %v3185
      %v3392 = vpop.f32.mrb[0].mxu0
      %v3393 = vadd.f32 %v3112, %v3392
      %v3394 = vpop.f32.mrb[0].mxu0
      %3395 = vmatprep.mubr.f32.mxu0 0.0
      %3396 = vmatmul.mubr.f32.gmra.mrb[0].mxu0 %v3188
      %v3397 = vpop.f32.mrb[0].mxu0
      %v3398 = vadd.f32 %v3112, %v3397
      %v3399 = vpop.f32.mrb[0].mxu0
      %3400 = vmatprep.mubr.f32.mxu0 0.0
      %3401 = vmatmul.mubr.f32.gmra.mrb[0].mxu0 %v3191
      %v3402 = vpop.f32.mrb[0].mxu0
      %v3403 = vadd.f32 %v3112, %v3402
      %v3404 = vpop.f32.mrb[0].mxu0
      %3405 = vmatprep.mubr.f32.mxu0 0.0
      %3406 = vmatmul.mubr.f32.gmra.mrb[0].mxu0 %v3194
      %v3407 = vpop.f32.mrb[0].mxu0
      %v3408 = vadd.f32 %v3112, %v3407
      %v3409 = vpop.f32.mrb[0].mxu0
      %3410 = vmatprep.mubr.f32.mxu0 0.0
      %3411 = vmatmul.mubr.f32.gmra.mrb[0].mxu0 %v3197
      %v3412 = vpop.f32.mrb[0].mxu0
      %v3413 = vadd.f32 %v3112, %v3412
      %v3414 = vpop.f32.mrb[0].mxu0
      %3415 = vmatprep.mubr.f32.mxu0 0.0
      %3416 = vmatmul.mubr.f32.gmra.mrb[0].mxu0 %v3200
      %v3417 = vpop.f32.mrb[0].mxu0
      %v3418 = vadd.f32 %v3112, %v3417
      %v3419 = vpop.f32.mrb[0].mxu0
      %3420 = vmatprep.mubr.f32.mxu0 0.0
      %3421 = vmatmul.mubr.f32.gmra.mrb[0].mxu0 %v3203
      %v3422 = vpop.f32.mrb[0].mxu0
      %v3423 = vadd.f32 %v3112, %v3422
      %v3424 = vpop.f32.mrb[0].mxu0
      %3425 = vmatprep.mubr.f32.mxu0 0.0
      %3426 = vmatmul.mubr.f32.gmra.mrb[0].mxu0 %v3206
      %v3427 = vpop.f32.mrb[0].mxu0
      %v3428 = vadd.f32 %v3112, %v3427
      %v3429 = vpop.f32.mrb[0].mxu0
      %3430 = vmatprep.mubr.f32.mxu0 0.0
      %3431 = vmatmul.mubr.f32.gmra.mrb[0].mxu0 %v3209
      %v3432 = vpop.f32.mrb[0].mxu0
      %v3433 = vadd.f32 %v3112, %v3432
      %v3434 = vpop.f32.mrb[0].mxu0
      %3435 = vdwg.mxu0
      %s3436 = sadd.s32 %s304, 1
      %s3437 = smul.u32 %s3436, 24
      %s3438 = scalar_lea.vmem %s292, %s3437
      %v3439 = vld [vmem:[%s3438] sm:$0xff]
      %v3440 = vld [vmem:[%s3438 + $0x8] sm:$0xff]
      %v3441 = vld [vmem:[%s3438 + $0x10] sm:$0xff]
      %v3442 = vld [vmem:[%s3438 + $0x18] sm:$0xff]
      %v3443 = vld [vmem:[%s3438 + $0x20] sm:$0xff]
      %v3444 = vld [vmem:[%s3438 + $0x28] sm:$0xff]
      %v3445 = vld [vmem:[%s3438 + $0x30] sm:$0xff]
      %v3446 = vld [vmem:[%s3438 + $0x38] sm:$0xff]
      %v3447 = vld [vmem:[%s3438 + $0x40] sm:$0xff]
      %v3448 = vld [vmem:[%s3438 + $0x48] sm:$0xff]
      %v3449 = vld [vmem:[%s3438 + $0x50] sm:$0xff]
      %v3450 = vld [vmem:[%s3438 + $0x58] sm:$0xff]
      %v3451 = vld [vmem:[%s3438 + $0x60] sm:$0xff]
      %v3452 = vld [vmem:[%s3438 + $0x68] sm:$0xff]
      %v3453 = vld [vmem:[%s3438 + $0x70] sm:$0xff]
      %v3454 = vld [vmem:[%s3438 + $0x78] sm:$0xff]
      %v3455 = vld [vmem:[%s3438 + $0x80] sm:$0xff]
      %v3456 = vld [vmem:[%s3438 + $0x88] sm:$0xff]
      %v3457 = vld [vmem:[%s3438 + $0x90] sm:$0xff]
      %v3458 = vld [vmem:[%s3438 + $0x98] sm:$0xff]
      %v3459 = vld [vmem:[%s3438 + $0xa0] sm:$0xff]
      %v3460 = vld [vmem:[%s3438 + $0xa8] sm:$0xff]
      %v3461 = vld [vmem:[%s3438 + $0xb0] sm:$0xff]
      %v3462 = vld [vmem:[%s3438 + $0xb8] sm:$0xff]
      %v3463 = vld [vmem:[%s3438 + $0xc0] sm:$0xff]
      %v3464 = vld [vmem:[%s3438 + $0xc8] sm:$0xff]
      %v3465 = vld [vmem:[%s3438 + $0xd0] sm:$0xff]
      %v3466 = vld [vmem:[%s3438 + $0xd8] sm:$0xff]
      %v3467 = vld [vmem:[%s3438 + $0xe0] sm:$0xff]
      %v3468 = vld [vmem:[%s3438 + $0xe8] sm:$0xff]
      %v3469 = vld [vmem:[%s3438 + $0xf0] sm:$0xff]
      %v3470 = vld [vmem:[%s3438 + $0xf8] sm:$0xff]
      %v3471 = vld [vmem:[%s3438 + $0x100] sm:$0xff]
      %v3472 = vld [vmem:[%s3438 + $0x108] sm:$0xff]
      %v3473 = vld [vmem:[%s3438 + $0x110] sm:$0xff]
      %v3474 = vld [vmem:[%s3438 + $0x118] sm:$0xff]
      %v3475 = vld [vmem:[%s3438 + $0x120] sm:$0xff]
      %v3476 = vld [vmem:[%s3438 + $0x128] sm:$0xff]
      %v3477 = vld [vmem:[%s3438 + $0x130] sm:$0xff]
      %v3478 = vld [vmem:[%s3438 + $0x138] sm:$0xff]
      %v3479 = vld [vmem:[%s3438 + $0x140] sm:$0xff]
      %v3480 = vld [vmem:[%s3438 + $0x148] sm:$0xff]
      %v3481 = vld [vmem:[%s3438 + $0x150] sm:$0xff]
      %v3482 = vld [vmem:[%s3438 + $0x158] sm:$0xff]
      %v3483 = vld [vmem:[%s3438 + $0x160] sm:$0xff]
      %v3484 = vld [vmem:[%s3438 + $0x168] sm:$0xff]
      %v3485 = vld [vmem:[%s3438 + $0x170] sm:$0xff]
      %v3486 = vld [vmem:[%s3438 + $0x178] sm:$0xff]
      %v3535 = vrot.slane %v3439, 1
      %v3536 = vrot.slane %v3440, 1
      %v3537 = vsel %vm1498, %v3535, %v3536
      %v3538 = vrot.slane %v3441, 1
      %v3539 = vsel %vm1498, %v3536, %v3538
      %v3540 = vrot.slane %v3442, 1
      %v3541 = vrot.slane %v3443, 1
      %v3542 = vsel %vm1498, %v3540, %v3541
      %v3543 = vrot.slane %v3444, 1
      %v3544 = vsel %vm1498, %v3541, %v3543
      %v3545 = vrot.slane %v3445, 1
      %v3546 = vrot.slane %v3446, 1
      %v3547 = vsel %vm1498, %v3545, %v3546
      %v3548 = vrot.slane %v3447, 1
      %v3549 = vsel %vm1498, %v3546, %v3548
      %v3550 = vrot.slane %v3448, 1
      %v3551 = vrot.slane %v3449, 1
      %v3552 = vsel %vm1498, %v3550, %v3551
      %v3553 = vrot.slane %v3450, 1
      %v3554 = vsel %vm1498, %v3551, %v3553
      %v3555 = vrot.slane %v3451, 1
      %v3556 = vrot.slane %v3452, 1
      %v3557 = vsel %vm1498, %v3555, %v3556
      %v3558 = vrot.slane %v3453, 1
      %v3559 = vsel %vm1498, %v3556, %v3558
      %v3560 = vrot.slane %v3454, 1
      %v3561 = vrot.slane %v3455, 1
      %v3562 = vsel %vm1498, %v3560, %v3561
      %v3563 = vrot.slane %v3456, 1
      %v3564 = vsel %vm1498, %v3561, %v3563
      %v3565 = vrot.slane %v3457, 1
      %v3566 = vrot.slane %v3458, 1
      %v3567 = vsel %vm1498, %v3565, %v3566
      %v3568 = vrot.slane %v3459, 1
      %v3569 = vsel %vm1498, %v3566, %v3568
      %v3570 = vrot.slane %v3460, 1
      %v3571 = vrot.slane %v3461, 1
      %v3572 = vsel %vm1498, %v3570, %v3571
      %v3573 = vrot.slane %v3462, 1
      %v3574 = vsel %vm1498, %v3571, %v3573
      %v3575 = vrot.slane %v3463, 1
      %v3576 = vrot.slane %v3464, 1
      %v3577 = vsel %vm1498, %v3575, %v3576
      %v3578 = vrot.slane %v3465, 1
      %v3579 = vsel %vm1498, %v3576, %v3578
      %v3580 = vrot.slane %v3466, 1
      %v3581 = vrot.slane %v3467, 1
      %v3582 = vsel %vm1498, %v3580, %v3581
      %v3583 = vrot.slane %v3468, 1
      %v3584 = vsel %vm1498, %v3581, %v3583
      %v3585 = vrot.slane %v3469, 1
      %v3586 = vrot.slane %v3470, 1
      %v3587 = vsel %vm1498, %v3585, %v3586
      %v3588 = vrot.slane %v3471, 1
      %v3589 = vsel %vm1498, %v3586, %v3588
      %v3590 = vrot.slane %v3472, 1
      %v3591 = vrot.slane %v3473, 1
      %v3592 = vsel %vm1498, %v3590, %v3591
      %v3593 = vrot.slane %v3474, 1
      %v3594 = vsel %vm1498, %v3591, %v3593
      %v3595 = vrot.slane %v3475, 1
      %v3596 = vrot.slane %v3476, 1
      %v3597 = vsel %vm1498, %v3595, %v3596
      %v3598 = vrot.slane %v3477, 1
      %v3599 = vsel %vm1498, %v3596, %v3598
      %v3600 = vrot.slane %v3478, 1
      %v3601 = vrot.slane %v3479, 1
      %v3602 = vsel %vm1498, %v3600, %v3601
      %v3603 = vrot.slane %v3480, 1
      %v3604 = vsel %vm1498, %v3601, %v3603
      %v3605 = vrot.slane %v3481, 1
      %v3606 = vrot.slane %v3482, 1
      %v3607 = vsel %vm1498, %v3605, %v3606
      %v3608 = vrot.slane %v3483, 1
      %v3609 = vsel %vm1498, %v3606, %v3608
      %v3610 = vrot.slane %v3484, 1
      %v3611 = vrot.slane %v3485, 1
      %v3612 = vsel %vm1498, %v3610, %v3611
      %v3613 = vrot.slane %v3486, 1
      %v3614 = vsel %vm1498, %v3611, %v3613
      %v3647 = vadd.f32 %v3278, %v3537
      %v3648 = vadd.f32 %v3283, %v3539
      %v3649 = vadd.f32 %v3288, %v3542
      %v3650 = vadd.f32 %v3293, %v3544
      %v3651 = vadd.f32 %v3298, %v3547
      %v3652 = vadd.f32 %v3303, %v3549
      %v3653 = vadd.f32 %v3308, %v3552
      %v3654 = vadd.f32 %v3313, %v3554
      %v3655 = vadd.f32 %v3318, %v3557
      %v3656 = vadd.f32 %v3323, %v3559
      %v3657 = vadd.f32 %v3328, %v3562
      %v3658 = vadd.f32 %v3333, %v3564
      %v3659 = vadd.f32 %v3338, %v3567
      %v3660 = vadd.f32 %v3343, %v3569
      %v3661 = vadd.f32 %v3348, %v3572
      %v3662 = vadd.f32 %v3353, %v3574
      %v3663 = vadd.f32 %v3358, %v3577
      %v3664 = vadd.f32 %v3363, %v3579
      %v3665 = vadd.f32 %v3368, %v3582
      %v3666 = vadd.f32 %v3373, %v3584
      %v3667 = vadd.f32 %v3378, %v3587
      %v3668 = vadd.f32 %v3383, %v3589
      %v3669 = vadd.f32 %v3388, %v3592
      %v3670 = vadd.f32 %v3393, %v3594
      %v3671 = vadd.f32 %v3398, %v3597
      %v3672 = vadd.f32 %v3403, %v3599
      %v3673 = vadd.f32 %v3408, %v3602
      %v3674 = vadd.f32 %v3413, %v3604
      %v3675 = vadd.f32 %v3418, %v3607
      %v3676 = vadd.f32 %v3423, %v3609
      %v3677 = vadd.f32 %v3428, %v3612
      %v3678 = vadd.f32 %v3433, %v3614
      %3679 = vst.msk [vmem:[%s302] sm:$0xff] %vm369, %v3647
      %3680 = vst.msk [vmem:[%s302 + $0x8] sm:$0xff] %vm369, %v3648
      %3681 = vst.msk [vmem:[%s302 + $0x10] sm:$0xff] %vm369, %v3649
      %3682 = vst.msk [vmem:[%s302 + $0x18] sm:$0xff] %vm369, %v3650
      %3683 = vst.msk [vmem:[%s302 + $0x20] sm:$0xff] %vm369, %v3651
      %3684 = vst.msk [vmem:[%s302 + $0x28] sm:$0xff] %vm369, %v3652
      %3685 = vst.msk [vmem:[%s302 + $0x30] sm:$0xff] %vm369, %v3653
      %3686 = vst.msk [vmem:[%s302 + $0x38] sm:$0xff] %vm369, %v3654
      %3687 = vst.msk [vmem:[%s302 + $0x40] sm:$0xff] %vm369, %v3655
      %3688 = vst.msk [vmem:[%s302 + $0x48] sm:$0xff] %vm369, %v3656
      %3689 = vst.msk [vmem:[%s302 + $0x50] sm:$0xff] %vm369, %v3657
      %3690 = vst.msk [vmem:[%s302 + $0x58] sm:$0xff] %vm369, %v3658
      %3691 = vst.msk [vmem:[%s302 + $0x60] sm:$0xff] %vm369, %v3659
      %3692 = vst.msk [vmem:[%s302 + $0x68] sm:$0xff] %vm369, %v3660
      %3693 = vst.msk [vmem:[%s302 + $0x70] sm:$0xff] %vm369, %v3661
      %3694 = vst.msk [vmem:[%s302 + $0x78] sm:$0xff] %vm369, %v3662
      %3695 = vst.msk [vmem:[%s302 + $0x80] sm:$0xff] %vm369, %v3663
      %3696 = vst.msk [vmem:[%s302 + $0x88] sm:$0xff] %vm369, %v3664
      %3697 = vst.msk [vmem:[%s302 + $0x90] sm:$0xff] %vm369, %v3665
      %3698 = vst.msk [vmem:[%s302 + $0x98] sm:$0xff] %vm369, %v3666
      %3699 = vst.msk [vmem:[%s302 + $0xa0] sm:$0xff] %vm369, %v3667
      %3700 = vst.msk [vmem:[%s302 + $0xa8] sm:$0xff] %vm369, %v3668
      %3701 = vst.msk [vmem:[%s302 + $0xb0] sm:$0xff] %vm369, %v3669
      %3702 = vst.msk [vmem:[%s302 + $0xb8] sm:$0xff] %vm369, %v3670
      %3703 = vst.msk [vmem:[%s302 + $0xc0] sm:$0xff] %vm369, %v3671
      %3704 = vst.msk [vmem:[%s302 + $0xc8] sm:$0xff] %vm369, %v3672
      %3705 = vst.msk [vmem:[%s302 + $0xd0] sm:$0xff] %vm369, %v3673
      %3706 = vst.msk [vmem:[%s302 + $0xd8] sm:$0xff] %vm369, %v3674
      %3707 = vst.msk [vmem:[%s302 + $0xe0] sm:$0xff] %vm369, %v3675
      %3708 = vst.msk [vmem:[%s302 + $0xe8] sm:$0xff] %vm369, %v3676
      %3709 = vst.msk [vmem:[%s302 + $0xf0] sm:$0xff] %vm369, %v3677
      %3710 = vst.msk [vmem:[%s302 + $0xf8] sm:$0xff] %vm369, %v3678
      %s3711 = smul.u32 16, %s23
      %p3712 = scmp.lt.s32.totalorder %s22, 1
      %s3713 = scalar_select %p3712, %s22, 1
      %p3714 = scmp.lt.s32.totalorder %s3711, 15
      %s3715 = scalar_select %p3714, %s3711, 15
      %s3716 = smul.addr %s3715, 2
      %s3717 = smul.addr %s3713, 32
      %s3718 = sadd.s32 %s3716, %s3717
      %s3719 = smul.addr %s3718, 8
      %s3720 = scalar_lea.vmem %s7, %s3719
      // Predicated region
      $region49: #{tpu_custom_call.1} parent=47 // pred_check
        %p3721 = pneg %p202
      $region50: #{tpu_custom_call.1} parent=47 // pred_check_branch
        %3723 = sbr.rel (%p3721) target = $region52
      $region51: #{tpu_custom_call.1} parent=47 // pred_region
        %s3724 = smul.u32 16, %s23
      $region52: #{tpu_custom_call.1} parent=47 // pred_fallthru
        _
    $region48: #{tpu_custom_call.1} parent=5 // pred_fallthru
      _
    %p3725 = scmp.le.s32.totalorder 2, %s13
    // Predicated region
    $region53: #{tpu_custom_call.1} parent=5 // pred_check
      %p3726 = pneg %p3725
    $region54: #{tpu_custom_call.1} parent=5 // pred_check_branch
      %3728 = sbr.rel (%p3726) target = $region56
    $region55: #{tpu_custom_call.1} parent=5 // pred_region
      %s3729 = ssub.s32 %s13, 2
      // Predicated region
      $region57: #{tpu_custom_call.1} parent=55 // pred_check
        %p3730 = pneg %p208
      $region58: #{tpu_custom_call.1} parent=55 // pred_check_branch
        %3732 = sbr.rel (%p3730) target = $region60
      $region59: #{tpu_custom_call.1} parent=55 // pred_region
        %s3733 = smul.u32 16, %s25
        %p3734 = scmp.lt.s32.totalorder %s24, 1
        %s3735 = scalar_select %p3734, %s24, 1
        %p3736 = scmp.lt.s32.totalorder %s3733, 15
        %s3737 = scalar_select %p3736, %s3733, 15
        %s3738 = smul.addr %s3737, 2
        %s3739 = smul.addr %s3735, 32
        %s3740 = sadd.s32 %s3738, %s3739
        %s3741 = smul.addr %s3740, 8
        %s3742 = scalar_lea.vmem %s7, %s3741
      $region60: #{tpu_custom_call.1} parent=55 // pred_fallthru
        _
    $region56: #{tpu_custom_call.1} parent=5 // pred_fallthru
      _
  $region6: #{tpu_custom_call.1} parent=0 // loop_footer
    %s17 = sadd.s32 1, %s13
  $region7: #{tpu_custom_call.1} parent=0 // loop_footer_branch
    %12 = sbr.rel target = $region3
  $region8: #{tpu_custom_call.1} parent=0 // loop_exit
    _

</llo_original>
